<compile_context>
chip_gen: v7x
topology: tpu7x:2x2x1
jax: 0.10.0
libtpu: 0.0.40
codegen_flags: <defaults>
</compile_context>

<pallas_src>
import math
import functools

import jax
import jax.numpy as jnp
from jax.experimental import pallas as pl
from jax.experimental.pallas import tpu as pltpu


def _round_up(x, m):
    return -(-x // m) * m


def _clustered_attention_kernel(*refs, masked, emit_attn, exp_bf16):
    # Ref layout per grid step (bi, ki, qi):
    #   [lab_col (1, tq, 1) int32, lab_row (1, 1, L) int32]   (only when masked)
    #   q      (1, tq, tv, D)   native dtype, original (b, l, v, d) layout
    #   ksum_t (1, D, L)        native dtype, softmax scale already folded in
    #   value  (1, L, tv, D)
    #   out    (1, tq, tv, D)
    #   [attn  (1, tq, tv, L) f32]                            (only when emit_attn)
    idx = 0
    if masked:
        lab_col_ref, lab_row_ref = refs[0], refs[1]
        idx = 2
    q_ref, ksum_ref, v_ref = refs[idx], refs[idx + 1], refs[idx + 2]
    out_ref = refs[idx + 3]
    attn_ref = refs[idx + 4] if emit_attn else None

    tv = q_ref.shape[2]
    ksum_t = ksum_ref[0]                                     # (D, L), native dtype

    if masked:
        # Cluster mask built once per grid step (invariant across the variable loop).
        # A row can never be fully masked (label[i] == label[i]), so the softmax
        # below never sees an all -inf row.
        allow = lab_col_ref[0] == lab_row_ref[0]             # (tq, L) bool

    for k in range(tv):                                      # static unroll over variables
        # scores[i, j] = <q[i, :], scale * k_sum[j, :]>  -- native-dtype MXU matmul,
        # f32 accumulation, no in-kernel reshapes/transposes.
        q_k = q_ref[0, :, k, :]                              # (tq, D)
        scores = jnp.dot(q_k, ksum_t, preferred_element_type=jnp.float32)   # (tq, L) f32
        if masked:
            scores = jnp.where(allow, scores, -jnp.inf)

        # Softmax along j: max / sum / normalization in f32; exp in bf16 only when
        # the inputs are bf16 (v6e/v7x EUP throughput), f32 otherwise (v5e-safe).
        m = jnp.max(scores, axis=-1, keepdims=True)
        z = scores - m
        if exp_bf16:
            e = jnp.exp(z.astype(jnp.bfloat16)).astype(jnp.float32)
        else:
            e = jnp.exp(z)
        denom = jnp.sum(e, axis=-1, keepdims=True)           # (tq, 1) f32
        a = e * (1.0 / denom)                                # exact recip (only tq elems)
        # TODO(synk): nn.Dropout(attention_dropout) is identity in eval mode; training
        # time stochastic dropout is not implemented in-kernel.

        if emit_attn:
            attn_ref[0, :, k, :] = a                         # f32, like the torch scores

        # V[i, d] = sum_j a[i, j] * value[j, d]  -- second native-dtype MXU matmul.
        v_k = v_ref[0, :, k, :]                              # (L, D)
        out = jnp.dot(a.astype(v_k.dtype), v_k, preferred_element_type=jnp.float32)
        out_ref[0, :, k, :] = out.astype(out_ref.dtype)


def _vmem_estimate(tq, tv, l, d, isz, emit_attn, masked):
    """Rough per-step VMEM footprint including (8,128) padding and double buffers."""
    dl = _round_up(d, 128)
    ll = _round_up(l, 128)
    tvp = _round_up(tv, 8)
    total = 0
    total += 2 * tq * tvp * dl * isz                 # q block
    total += 2 * l * tvp * dl * isz                  # value block
    total += 2 * tq * tvp * dl * isz                 # V output block
    if emit_attn:
        total += 2 * tq * tvp * ll * 4               # attention output block (f32)
    total += 1 * _round_up(d, 8) * ll * isz          # ksum_t (single buffered)
    if masked:
        total += 2 * _round_up(tq, 8) * 128 * 4      # column labels (lane-padded)
        total += 1 * 8 * ll * 4                      # row labels (single buffered)
    # f32 in-kernel intermediates (scores / exp / attn / mask / per-k operands).
    total += 6 * tq * ll * 4 + 4 * tq * dl * 4 + l * dl * 4
    return total


def _tile_candidates(full, cap):
    """Divisors of `full` that satisfy the (8,128) block rule on the second-minor dim."""
    cands = [t for t in range(full, 0, -1)
             if full % t == 0 and (t % 8 == 0 or t == full) and t <= cap]
    return cands if cands else [full]


def _valid_tile(t, full):
    return full % t == 0 and (t % 8 == 0 or t == full)


def _pick_tiles(l, v, d, isz, emit_attn, masked, budget):
    tq_cands = _tile_candidates(l, 1024)   # prefer the largest MXU M dimension first
    tv_cands = _tile_candidates(v, 16)     # then the widest variable tile (bounded unroll)
    for tq in tq_cands:
        for tv in tv_cands:
            if _vmem_estimate(tq, tv, l, d, isz, emit_attn, masked) <= budget:
                return tq, tv
    return tq_cands[-1], tv_cands[-1]


def _default_vmem_budget():
    """~70% of the current generation's VMEM capacity (v5e/v6e 128 MiB, v7x 64 MiB)."""
    try:
        info = pltpu.get_tpu_info()
        cap = int(getattr(info, "vmem_capacity_bytes", 0)) or (64 * 1024 * 1024)
    except Exception:
        cap = 64 * 1024 * 1024
    return int(cap * 0.70)


def clustered_attention(query, key, value, label_arr, *, scale=None,
                        attention_masking=0, output_attention=False,
                        tile_q=None, tile_v=None, vmem_budget_bytes=None):
    """query/key/value: (b, l, v, d) arrays (f32 or bf16); label_arr: (b, l) ints."""
    b, l, v, d = query.shape
    sc = float(scale) if scale is not None else 1.0 / math.sqrt(d)
    dtype = query.dtype
    masked = bool(attention_masking)
    emit_attn = bool(output_attention)

    if vmem_budget_bytes is None:
        vmem_budget_bytes = _default_vmem_budget()

    # k_sum: accumulate in f32, fold the softmax scale in f32, then a single downcast.
    # Pre-transpose to (b, D, L) so the in-kernel scores matmul contracts q's last dim
    # against ksum_t's first dim with no reshape / transpose. Tiny tensor => cheap.
    ksum_t = jnp.transpose(key.sum(axis=2, dtype=jnp.float32) * jnp.float32(sc),
                           (0, 2, 1)).astype(dtype)                      # (b, D, L)

    itemsize = jnp.dtype(dtype).itemsize
    tq, tv = _pick_tiles(l, v, d, itemsize, emit_attn, masked, vmem_budget_bytes)
    if tile_q is not None and _valid_tile(int(tile_q), l):
        tq = int(tile_q)
    if tile_v is not None and _valid_tile(int(tile_v), v):
        tv = int(tile_v)
    n_v, n_q = v // tv, l // tq

    kernel = functools.partial(_clustered_attention_kernel, masked=masked,
                               emit_attn=emit_attn,
                               exp_bf16=(dtype == jnp.bfloat16))

    def _run(use_single_buffer):
        # k_sum / row-labels only change at batch boundaries -> single buffer is enough.
        const_kw = {"pipeline_mode": pl.Buffered(1)} if use_single_buffer else {}

        in_arrays, in_specs = [], []
        if masked:
            labels = jnp.asarray(label_arr).astype(jnp.int32)
            in_arrays += [labels.reshape(b, l, 1), labels.reshape(b, 1, l)]
            in_specs += [
                pl.BlockSpec((1, tq, 1), lambda bi, ki, qi: (bi, qi, 0)),
                pl.BlockSpec((1, 1, l), lambda bi, ki, qi: (bi, 0, 0), **const_kw),
            ]
        in_arrays += [query, ksum_t, value]
        in_specs += [
            pl.BlockSpec((1, tq, tv, d), lambda bi, ki, qi: (bi, qi, ki, 0)),
            pl.BlockSpec((1, d, l), lambda bi, ki, qi: (bi, 0, 0), **const_kw),
            # value block index is constant along the innermost q-row axis -> reused.
            pl.BlockSpec((1, l, tv, d), lambda bi, ki, qi: (bi, 0, ki, 0)),
        ]

        out_shapes = [jax.ShapeDtypeStruct((b, l, v, d), dtype)]
        out_specs = [pl.BlockSpec((1, tq, tv, d), lambda bi, ki, qi: (bi, qi, ki, 0))]
        if emit_attn:
            out_shapes.append(jax.ShapeDtypeStruct((b, l, v, l), jnp.float32))
            out_specs.append(
                pl.BlockSpec((1, tq, tv, l), lambda bi, ki, qi: (bi, qi, ki, 0)))

        return pl.pallas_call(
            kernel,
            out_shape=tuple(out_shapes),
            grid_spec=pltpu.PrefetchScalarGridSpec(
                num_scalar_prefetch=0,
                grid=(b, n_v, n_q),
                in_specs=in_specs,
                out_specs=tuple(out_specs),
            ),
            compiler_params=pltpu.CompilerParams(
                dimension_semantics=("parallel", "parallel", "parallel"),
                vmem_limit_bytes=int(vmem_budget_bytes),
            ),
        )(*in_arrays)

    try:
        outs = _run(True)
    except Exception:
        outs = _run(False)   # fallback if pipeline_mode / Buffered(1) is unsupported
    if not isinstance(outs, (tuple, list)):
        outs = (outs,)

    V_out = outs[0]                                   # (b, l, v, d), no transpose needed
    if emit_attn:
        return V_out, outs[1]                         # (b, l, v, l) f32
    return V_out, None


def _reference(query, key, value, label_arr, *, scale=None, attention_masking=0):
    """Pure-JAX reference mirroring the PyTorch forward (eval mode), f32 math."""
    b, l, v, d = query.shape
    sc = float(scale) if scale is not None else 1.0 / math.sqrt(d)
    qf = query.astype(jnp.float32)
    kf = key.astype(jnp.float32)
    vf = value.astype(jnp.float32)
    k_sum = kf.sum(axis=2)                                      # (b, l, d)
    scores = jnp.einsum("bivd,bjd->bivj", qf, k_sum)            # (b, l, v, l)
    if attention_masking:
        mask = label_arr[:, :, None] == label_arr[:, None, :]   # (b, l, l)
        scores = jnp.where(mask[:, :, None, :], scores, -jnp.inf)
    A = jax.nn.softmax(sc * scores, axis=-1)
    V = jnp.einsum("bivj,bjvd->bivd", A, vf)
    return V, A


if __name__ == "__main__":
    key0 = jax.random.PRNGKey(0)
    kq, kk, kv, kl = jax.random.split(key0, 4)

    # Config 1: small canonical shapes, masked, attention requested.
    b, l, v, d = 2, 8, 4, 32
    query = jax.random.normal(kq, (b, l, v, d), dtype=jnp.float32)
    key_t = jax.random.normal(kk, (b, l, v, d), dtype=jnp.float32)
    value = jax.random.normal(kv, (b, l, v, d), dtype=jnp.float32)
    label_arr = jax.random.randint(kl, (b, l), 0, 3, dtype=jnp.int32)

    V_pal, A_pal = clustered_attention(query, key_t, value, label_arr,
                                       attention_masking=1, output_attention=True)
    jax.block_until_ready(V_pal)
    jax.block_until_ready(A_pal)
    V_ref, A_ref = _reference(query, key_t, value, label_arr, attention_masking=1)
    assert V_pal.shape == (b, l, v, d)
    assert A_pal.shape == (b, l, v, l)
    assert A_pal.dtype == jnp.float32
    assert jnp.allclose(V_pal, V_ref, rtol=2e-2, atol=2e-2)
    assert jnp.allclose(A_pal, A_ref, rtol=2e-2, atol=2e-2)

    # Unmasked fast path: no attention output is computed or written.
    V_nom, A_none = clustered_attention(query, key_t, value, label_arr,
                                        attention_masking=0, output_attention=False)
    jax.block_until_ready(V_nom)
    V_ref2, _ = _reference(query, key_t, value, label_arr, attention_masking=0)
    assert A_none is None
    assert jnp.allclose(V_nom, V_ref2, rtol=2e-2, atol=2e-2)

    # Config 2: exercise the (batch, v-tiles, q-row-tiles) grid explicitly.
    b2, l2, v2, d2 = 1, 16, 16, 32
    q2 = jax.random.normal(kq, (b2, l2, v2, d2), dtype=jnp.float32)
    k2 = jax.random.normal(kk, (b2, l2, v2, d2), dtype=jnp.float32)
    v2a = jax.random.normal(kv, (b2, l2, v2, d2), dtype=jnp.float32)
    lab2 = jax.random.randint(kl, (b2, l2), 0, 3, dtype=jnp.int32)
    V_t, A_t = clustered_attention(q2, k2, v2a, lab2, attention_masking=1,
                                   output_attention=True, tile_q=8, tile_v=8)
    jax.block_until_ready(V_t)
    V_ref3, A_ref3 = _reference(q2, k2, v2a, lab2, attention_masking=1)
    assert jnp.allclose(V_t, V_ref3, rtol=2e-2, atol=2e-2)
    assert jnp.allclose(A_t, A_ref3, rtol=2e-2, atol=2e-2)

    # bf16 passthrough smoke test (native-dtype MXU matmuls, f32 accumulation).
    V_bf, _ = clustered_attention(query.astype(jnp.bfloat16),
                                  key_t.astype(jnp.bfloat16),
                                  value.astype(jnp.bfloat16),
                                  label_arr,
                                  attention_masking=1, output_attention=False)
    jax.block_until_ready(V_bf)
    assert V_bf.dtype == jnp.bfloat16
    assert jnp.allclose(V_bf.astype(jnp.float32), V_ref, rtol=1e-1, atol=1e-1)

    print("KERNEL_OK")
</pallas_src>

<mosaic_0001>
module attributes {stable_mosaic.version = 11 : i64} {
  func.func @_clustered_attention_kernel(%arg0: i32, %arg1: i32, %arg2: i32, %arg3: memref<1x8x1xi32, #tpu.memory_space<vmem>>, %arg4: memref<1x1x8xi32, #tpu.memory_space<vmem>>, %arg5: memref<1x8x4x32xf32, #tpu.memory_space<vmem>>, %arg6: memref<1x32x8xf32, #tpu.memory_space<vmem>>, %arg7: memref<1x8x4x32xf32, #tpu.memory_space<vmem>>, %arg8: memref<1x8x4x32xf32, #tpu.memory_space<vmem>>, %arg9: memref<1x8x4x8xf32, #tpu.memory_space<vmem>>) attributes {dimension_semantics = [#tpu.dimension_semantics<parallel>, #tpu.dimension_semantics<parallel>, #tpu.dimension_semantics<parallel>], iteration_bounds = array<i64: 2, 1, 1>, scalar_prefetch = 0 : i64, scratch_operands = 0 : i64, tpu.core_type = #tpu.core_type<tc>, window_params = [{transform_indices = @transform_0, window_bounds = array<i64: 1, 8, 1>}, {pipeline_mode = #tpu.pipeline_mode<synchronous>, transform_indices = @transform_1, window_bounds = array<i64: 1, 1, 8>}, {transform_indices = @transform_2, window_bounds = array<i64: 1, 8, 4, 32>}, {pipeline_mode = #tpu.pipeline_mode<synchronous>, transform_indices = @transform_3, window_bounds = array<i64: 1, 32, 8>}, {transform_indices = @transform_4, window_bounds = array<i64: 1, 8, 4, 32>}, {transform_indices = @transform_5, window_bounds = array<i64: 1, 8, 4, 32>}, {transform_indices = @transform_6, window_bounds = array<i64: 1, 8, 4, 8>}]} {
    %c0 = arith.constant 0 : index
    %c0_0 = arith.constant 0 : index
    %c0_1 = arith.constant 0 : index
    %0 = vector.load %arg6[%c0, %c0_0, %c0_1] : memref<1x32x8xf32, #tpu.memory_space<vmem>>, vector<1x32x8xf32>
    %1 = vector.shape_cast %0 : vector<1x32x8xf32> to vector<32x8xf32>
    %c0_2 = arith.constant 0 : index
    %c0_3 = arith.constant 0 : index
    %c0_4 = arith.constant 0 : index
    %2 = vector.load %arg3[%c0_2, %c0_3, %c0_4] : memref<1x8x1xi32, #tpu.memory_space<vmem>>, vector<1x8x1xi32>
    %3 = vector.shape_cast %2 : vector<1x8x1xi32> to vector<8x1xi32>
    %c0_5 = arith.constant 0 : index
    %c0_6 = arith.constant 0 : index
    %c0_7 = arith.constant 0 : index
    %4 = vector.load %arg4[%c0_5, %c0_6, %c0_7] : memref<1x1x8xi32, #tpu.memory_space<vmem>>, vector<1x1x8xi32>
    %5 = vector.shape_cast %4 : vector<1x1x8xi32> to vector<1x8xi32>
    %6 = vector.broadcast %3 : vector<8x1xi32> to vector<8x8xi32>
    %7 = vector.broadcast %5 : vector<1x8xi32> to vector<8x8xi32>
    %8 = arith.cmpi eq, %6, %7 : vector<8x8xi32>
    %c0_8 = arith.constant 0 : index
    %c0_9 = arith.constant 0 : index
    %c0_10 = arith.constant 0 : index
    %c0_11 = arith.constant 0 : index
    %9 = vector.load %arg5[%c0_8, %c0_9, %c0_10, %c0_11] : memref<1x8x4x32xf32, #tpu.memory_space<vmem>>, vector<1x8x1x32xf32>
    %10 = vector.shape_cast %9 : vector<1x8x1x32xf32> to vector<8x32xf32>
    %cst = arith.constant dense<0.000000e+00> : vector<8x8xf32>
    %11 = tpu.matmul %10, %1, %cst {dimension_numbers = #tpu.dot_dimension_numbers<[1], [0], [0], [1], [0, 0, 1, 1], [], []>} : vector<8x32xf32>, vector<32x8xf32>, vector<8x8xf32> -> vector<8x8xf32>
    %cst_12 = arith.constant 0xFF800000 : f32
    %12 = vector.broadcast %cst_12 : f32 to vector<8x8xf32>
    %13 = arith.select %8, %11, %12 : vector<8x8xi1>, vector<8x8xf32>
    %cst_13 = arith.constant dense<0xFF800000> : vector<8xf32>
    %14 = vector.multi_reduction <maximumf>, %13, %cst_13 [1] : vector<8x8xf32> to vector<8xf32>
    %15 = vector.shape_cast %14 : vector<8xf32> to vector<8x1xf32>
    %16 = vector.broadcast %15 : vector<8x1xf32> to vector<8x8xf32>
    %17 = arith.subf %13, %16 : vector<8x8xf32>
    %18 = math.exp %17 : vector<8x8xf32>
    %cst_14 = arith.constant dense<0.000000e+00> : vector<8xf32>
    %19 = vector.multi_reduction <add>, %18, %cst_14 [1] : vector<8x8xf32> to vector<8xf32>
    %20 = vector.shape_cast %19 : vector<8xf32> to vector<8x1xf32>
    %cst_15 = arith.constant 1.000000e+00 : f32
    %21 = vector.broadcast %cst_15 : f32 to vector<8x1xf32>
    %22 = arith.divf %21, %20 : vector<8x1xf32>
    %23 = vector.broadcast %22 : vector<8x1xf32> to vector<8x8xf32>
    %24 = arith.mulf %18, %23 : vector<8x8xf32>
    %c0_16 = arith.constant 0 : index
    %c0_17 = arith.constant 0 : index
    %c0_18 = arith.constant 0 : index
    %c0_19 = arith.constant 0 : index
    %25 = vector.load %arg9[%c0_16, %c0_17, %c0_18, %c0_19] : memref<1x8x4x8xf32, #tpu.memory_space<vmem>>, vector<1x8x1x8xf32>
    %26 = vector.shape_cast %25 : vector<1x8x1x8xf32> to vector<8x8xf32>
    %27 = vector.shape_cast %24 : vector<8x8xf32> to vector<1x8x1x8xf32>
    tpu.vector_store %arg9[%c0_16, %c0_17, %c0_18, %c0_19], %27 {strides = array<i32>} : memref<1x8x4x8xf32, #tpu.memory_space<vmem>>, vector<1x8x1x8xf32>,
    %c0_20 = arith.constant 0 : index
    %c0_21 = arith.constant 0 : index
    %c0_22 = arith.constant 0 : index
    %c0_23 = arith.constant 0 : index
    %28 = vector.load %arg7[%c0_20, %c0_21, %c0_22, %c0_23] : memref<1x8x4x32xf32, #tpu.memory_space<vmem>>, vector<1x8x1x32xf32>
    %29 = vector.shape_cast %28 : vector<1x8x1x32xf32> to vector<8x32xf32>
    %cst_24 = arith.constant dense<0.000000e+00> : vector<8x32xf32>
    %30 = tpu.matmul %24, %29, %cst_24 {dimension_numbers = #tpu.dot_dimension_numbers<[1], [0], [0], [1], [0, 0, 1, 1], [], []>} : vector<8x8xf32>, vector<8x32xf32>, vector<8x32xf32> -> vector<8x32xf32>
    %c0_25 = arith.constant 0 : index
    %c0_26 = arith.constant 0 : index
    %c0_27 = arith.constant 0 : index
    %c0_28 = arith.constant 0 : index
    %31 = vector.load %arg8[%c0_25, %c0_26, %c0_27, %c0_28] : memref<1x8x4x32xf32, #tpu.memory_space<vmem>>, vector<1x8x1x32xf32>
    %32 = vector.shape_cast %31 : vector<1x8x1x32xf32> to vector<8x32xf32>
    %33 = vector.shape_cast %30 : vector<8x32xf32> to vector<1x8x1x32xf32>
    tpu.vector_store %arg8[%c0_25, %c0_26, %c0_27, %c0_28], %33 {strides = array<i32>} : memref<1x8x4x32xf32, #tpu.memory_space<vmem>>, vector<1x8x1x32xf32>,
    %c0_29 = arith.constant 0 : index
    %c0_30 = arith.constant 0 : index
    %c1 = arith.constant 1 : index
    %c0_31 = arith.constant 0 : index
    %34 = vector.load %arg5[%c0_29, %c0_30, %c1, %c0_31] : memref<1x8x4x32xf32, #tpu.memory_space<vmem>>, vector<1x8x1x32xf32>
    %35 = vector.shape_cast %34 : vector<1x8x1x32xf32> to vector<8x32xf32>
    %cst_32 = arith.constant dense<0.000000e+00> : vector<8x8xf32>
    %36 = tpu.matmul %35, %1, %cst_32 {dimension_numbers = #tpu.dot_dimension_numbers<[1], [0], [0], [1], [0, 0, 1, 1], [], []>} : vector<8x32xf32>, vector<32x8xf32>, vector<8x8xf32> -> vector<8x8xf32>
    %cst_33 = arith.constant 0xFF800000 : f32
    %37 = vector.broadcast %cst_33 : f32 to vector<8x8xf32>
    %38 = arith.select %8, %36, %37 : vector<8x8xi1>, vector<8x8xf32>
    %cst_34 = arith.constant dense<0xFF800000> : vector<8xf32>
    %39 = vector.multi_reduction <maximumf>, %38, %cst_34 [1] : vector<8x8xf32> to vector<8xf32>
    %40 = vector.shape_cast %39 : vector<8xf32> to vector<8x1xf32>
    %41 = vector.broadcast %40 : vector<8x1xf32> to vector<8x8xf32>
    %42 = arith.subf %38, %41 : vector<8x8xf32>
    %43 = math.exp %42 : vector<8x8xf32>
    %cst_35 = arith.constant dense<0.000000e+00> : vector<8xf32>
    %44 = vector.multi_reduction <add>, %43, %cst_35 [1] : vector<8x8xf32> to vector<8xf32>
    %45 = vector.shape_cast %44 : vector<8xf32> to vector<8x1xf32>
    %cst_36 = arith.constant 1.000000e+00 : f32
    %46 = vector.broadcast %cst_36 : f32 to vector<8x1xf32>
    %47 = arith.divf %46, %45 : vector<8x1xf32>
    %48 = vector.broadcast %47 : vector<8x1xf32> to vector<8x8xf32>
    %49 = arith.mulf %43, %48 : vector<8x8xf32>
    %c0_37 = arith.constant 0 : index
    %c0_38 = arith.constant 0 : index
    %c1_39 = arith.constant 1 : index
    %c0_40 = arith.constant 0 : index
    %50 = vector.load %arg9[%c0_37, %c0_38, %c1_39, %c0_40] : memref<1x8x4x8xf32, #tpu.memory_space<vmem>>, vector<1x8x1x8xf32>
    %51 = vector.shape_cast %50 : vector<1x8x1x8xf32> to vector<8x8xf32>
    %52 = vector.shape_cast %49 : vector<8x8xf32> to vector<1x8x1x8xf32>
    tpu.vector_store %arg9[%c0_37, %c0_38, %c1_39, %c0_40], %52 {strides = array<i32>} : memref<1x8x4x8xf32, #tpu.memory_space<vmem>>, vector<1x8x1x8xf32>,
    %c0_41 = arith.constant 0 : index
    %c0_42 = arith.constant 0 : index
    %c1_43 = arith.constant 1 : index
    %c0_44 = arith.constant 0 : index
    %53 = vector.load %arg7[%c0_41, %c0_42, %c1_43, %c0_44] : memref<1x8x4x32xf32, #tpu.memory_space<vmem>>, vector<1x8x1x32xf32>
    %54 = vector.shape_cast %53 : vector<1x8x1x32xf32> to vector<8x32xf32>
    %cst_45 = arith.constant dense<0.000000e+00> : vector<8x32xf32>
    %55 = tpu.matmul %49, %54, %cst_45 {dimension_numbers = #tpu.dot_dimension_numbers<[1], [0], [0], [1], [0, 0, 1, 1], [], []>} : vector<8x8xf32>, vector<8x32xf32>, vector<8x32xf32> -> vector<8x32xf32>
    %c0_46 = arith.constant 0 : index
    %c0_47 = arith.constant 0 : index
    %c1_48 = arith.constant 1 : index
    %c0_49 = arith.constant 0 : index
    %56 = vector.load %arg8[%c0_46, %c0_47, %c1_48, %c0_49] : memref<1x8x4x32xf32, #tpu.memory_space<vmem>>, vector<1x8x1x32xf32>
    %57 = vector.shape_cast %56 : vector<1x8x1x32xf32> to vector<8x32xf32>
    %58 = vector.shape_cast %55 : vector<8x32xf32> to vector<1x8x1x32xf32>
    tpu.vector_store %arg8[%c0_46, %c0_47, %c1_48, %c0_49], %58 {strides = array<i32>} : memref<1x8x4x32xf32, #tpu.memory_space<vmem>>, vector<1x8x1x32xf32>,
    %c0_50 = arith.constant 0 : index
    %c0_51 = arith.constant 0 : index
    %c2 = arith.constant 2 : index
    %c0_52 = arith.constant 0 : index
    %59 = vector.load %arg5[%c0_50, %c0_51, %c2, %c0_52] : memref<1x8x4x32xf32, #tpu.memory_space<vmem>>, vector<1x8x1x32xf32>
    %60 = vector.shape_cast %59 : vector<1x8x1x32xf32> to vector<8x32xf32>
    %cst_53 = arith.constant dense<0.000000e+00> : vector<8x8xf32>
    %61 = tpu.matmul %60, %1, %cst_53 {dimension_numbers = #tpu.dot_dimension_numbers<[1], [0], [0], [1], [0, 0, 1, 1], [], []>} : vector<8x32xf32>, vector<32x8xf32>, vector<8x8xf32> -> vector<8x8xf32>
    %cst_54 = arith.constant 0xFF800000 : f32
    %62 = vector.broadcast %cst_54 : f32 to vector<8x8xf32>
    %63 = arith.select %8, %61, %62 : vector<8x8xi1>, vector<8x8xf32>
    %cst_55 = arith.constant dense<0xFF800000> : vector<8xf32>
    %64 = vector.multi_reduction <maximumf>, %63, %cst_55 [1] : vector<8x8xf32> to vector<8xf32>
    %65 = vector.shape_cast %64 : vector<8xf32> to vector<8x1xf32>
    %66 = vector.broadcast %65 : vector<8x1xf32> to vector<8x8xf32>
    %67 = arith.subf %63, %66 : vector<8x8xf32>
    %68 = math.exp %67 : vector<8x8xf32>
    %cst_56 = arith.constant dense<0.000000e+00> : vector<8xf32>
    %69 = vector.multi_reduction <add>, %68, %cst_56 [1] : vector<8x8xf32> to vector<8xf32>
    %70 = vector.shape_cast %69 : vector<8xf32> to vector<8x1xf32>
    %cst_57 = arith.constant 1.000000e+00 : f32
    %71 = vector.broadcast %cst_57 : f32 to vector<8x1xf32>
    %72 = arith.divf %71, %70 : vector<8x1xf32>
    %73 = vector.broadcast %72 : vector<8x1xf32> to vector<8x8xf32>
    %74 = arith.mulf %68, %73 : vector<8x8xf32>
    %c0_58 = arith.constant 0 : index
    %c0_59 = arith.constant 0 : index
    %c2_60 = arith.constant 2 : index
    %c0_61 = arith.constant 0 : index
    %75 = vector.load %arg9[%c0_58, %c0_59, %c2_60, %c0_61] : memref<1x8x4x8xf32, #tpu.memory_space<vmem>>, vector<1x8x1x8xf32>
    %76 = vector.shape_cast %75 : vector<1x8x1x8xf32> to vector<8x8xf32>
    %77 = vector.shape_cast %74 : vector<8x8xf32> to vector<1x8x1x8xf32>
    tpu.vector_store %arg9[%c0_58, %c0_59, %c2_60, %c0_61], %77 {strides = array<i32>} : memref<1x8x4x8xf32, #tpu.memory_space<vmem>>, vector<1x8x1x8xf32>,
    %c0_62 = arith.constant 0 : index
    %c0_63 = arith.constant 0 : index
    %c2_64 = arith.constant 2 : index
    %c0_65 = arith.constant 0 : index
    %78 = vector.load %arg7[%c0_62, %c0_63, %c2_64, %c0_65] : memref<1x8x4x32xf32, #tpu.memory_space<vmem>>, vector<1x8x1x32xf32>
    %79 = vector.shape_cast %78 : vector<1x8x1x32xf32> to vector<8x32xf32>
    %cst_66 = arith.constant dense<0.000000e+00> : vector<8x32xf32>
    %80 = tpu.matmul %74, %79, %cst_66 {dimension_numbers = #tpu.dot_dimension_numbers<[1], [0], [0], [1], [0, 0, 1, 1], [], []>} : vector<8x8xf32>, vector<8x32xf32>, vector<8x32xf32> -> vector<8x32xf32>
    %c0_67 = arith.constant 0 : index
    %c0_68 = arith.constant 0 : index
    %c2_69 = arith.constant 2 : index
    %c0_70 = arith.constant 0 : index
    %81 = vector.load %arg8[%c0_67, %c0_68, %c2_69, %c0_70] : memref<1x8x4x32xf32, #tpu.memory_space<vmem>>, vector<1x8x1x32xf32>
    %82 = vector.shape_cast %81 : vector<1x8x1x32xf32> to vector<8x32xf32>
    %83 = vector.shape_cast %80 : vector<8x32xf32> to vector<1x8x1x32xf32>
    tpu.vector_store %arg8[%c0_67, %c0_68, %c2_69, %c0_70], %83 {strides = array<i32>} : memref<1x8x4x32xf32, #tpu.memory_space<vmem>>, vector<1x8x1x32xf32>,
    %c0_71 = arith.constant 0 : index
    %c0_72 = arith.constant 0 : index
    %c3 = arith.constant 3 : index
    %c0_73 = arith.constant 0 : index
    %84 = vector.load %arg5[%c0_71, %c0_72, %c3, %c0_73] : memref<1x8x4x32xf32, #tpu.memory_space<vmem>>, vector<1x8x1x32xf32>
    %85 = vector.shape_cast %84 : vector<1x8x1x32xf32> to vector<8x32xf32>
    %cst_74 = arith.constant dense<0.000000e+00> : vector<8x8xf32>
    %86 = tpu.matmul %85, %1, %cst_74 {dimension_numbers = #tpu.dot_dimension_numbers<[1], [0], [0], [1], [0, 0, 1, 1], [], []>} : vector<8x32xf32>, vector<32x8xf32>, vector<8x8xf32> -> vector<8x8xf32>
    %cst_75 = arith.constant 0xFF800000 : f32
    %87 = vector.broadcast %cst_75 : f32 to vector<8x8xf32>
    %88 = arith.select %8, %86, %87 : vector<8x8xi1>, vector<8x8xf32>
    %cst_76 = arith.constant dense<0xFF800000> : vector<8xf32>
    %89 = vector.multi_reduction <maximumf>, %88, %cst_76 [1] : vector<8x8xf32> to vector<8xf32>
    %90 = vector.shape_cast %89 : vector<8xf32> to vector<8x1xf32>
    %91 = vector.broadcast %90 : vector<8x1xf32> to vector<8x8xf32>
    %92 = arith.subf %88, %91 : vector<8x8xf32>
    %93 = math.exp %92 : vector<8x8xf32>
    %cst_77 = arith.constant dense<0.000000e+00> : vector<8xf32>
    %94 = vector.multi_reduction <add>, %93, %cst_77 [1] : vector<8x8xf32> to vector<8xf32>
    %95 = vector.shape_cast %94 : vector<8xf32> to vector<8x1xf32>
    %cst_78 = arith.constant 1.000000e+00 : f32
    %96 = vector.broadcast %cst_78 : f32 to vector<8x1xf32>
    %97 = arith.divf %96, %95 : vector<8x1xf32>
    %98 = vector.broadcast %97 : vector<8x1xf32> to vector<8x8xf32>
    %99 = arith.mulf %93, %98 : vector<8x8xf32>
    %c0_79 = arith.constant 0 : index
    %c0_80 = arith.constant 0 : index
    %c3_81 = arith.constant 3 : index
    %c0_82 = arith.constant 0 : index
    %100 = vector.load %arg9[%c0_79, %c0_80, %c3_81, %c0_82] : memref<1x8x4x8xf32, #tpu.memory_space<vmem>>, vector<1x8x1x8xf32>
    %101 = vector.shape_cast %100 : vector<1x8x1x8xf32> to vector<8x8xf32>
    %102 = vector.shape_cast %99 : vector<8x8xf32> to vector<1x8x1x8xf32>
    tpu.vector_store %arg9[%c0_79, %c0_80, %c3_81, %c0_82], %102 {strides = array<i32>} : memref<1x8x4x8xf32, #tpu.memory_space<vmem>>, vector<1x8x1x8xf32>,
    %c0_83 = arith.constant 0 : index
    %c0_84 = arith.constant 0 : index
    %c3_85 = arith.constant 3 : index
    %c0_86 = arith.constant 0 : index
    %103 = vector.load %arg7[%c0_83, %c0_84, %c3_85, %c0_86] : memref<1x8x4x32xf32, #tpu.memory_space<vmem>>, vector<1x8x1x32xf32>
    %104 = vector.shape_cast %103 : vector<1x8x1x32xf32> to vector<8x32xf32>
    %cst_87 = arith.constant dense<0.000000e+00> : vector<8x32xf32>
    %105 = tpu.matmul %99, %104, %cst_87 {dimension_numbers = #tpu.dot_dimension_numbers<[1], [0], [0], [1], [0, 0, 1, 1], [], []>} : vector<8x8xf32>, vector<8x32xf32>, vector<8x32xf32> -> vector<8x32xf32>
    %c0_88 = arith.constant 0 : index
    %c0_89 = arith.constant 0 : index
    %c3_90 = arith.constant 3 : index
    %c0_91 = arith.constant 0 : index
    %106 = vector.load %arg8[%c0_88, %c0_89, %c3_90, %c0_91] : memref<1x8x4x32xf32, #tpu.memory_space<vmem>>, vector<1x8x1x32xf32>
    %107 = vector.shape_cast %106 : vector<1x8x1x32xf32> to vector<8x32xf32>
    %108 = vector.shape_cast %105 : vector<8x32xf32> to vector<1x8x1x32xf32>
    tpu.vector_store %arg8[%c0_88, %c0_89, %c3_90, %c0_91], %108 {strides = array<i32>} : memref<1x8x4x32xf32, #tpu.memory_space<vmem>>, vector<1x8x1x32xf32>,
    return
  }
  func.func @transform_0(%arg0: i32, %arg1: i32, %arg2: i32) -> (i32, i32, i32) {
    %c0_i32 = arith.constant 0 : i32
    %c0_i32_0 = arith.constant 0 : i32
    return %arg0, %arg2, %c0_i32 : i32, i32, i32
  }
  func.func @transform_1(%arg0: i32, %arg1: i32, %arg2: i32) -> (i32, i32, i32) {
    %c0_i32 = arith.constant 0 : i32
    %c0_i32_0 = arith.constant 0 : i32
    %c0_i32_1 = arith.constant 0 : i32
    return %arg0, %c0_i32, %c0_i32_0 : i32, i32, i32
  }
  func.func @transform_2(%arg0: i32, %arg1: i32, %arg2: i32) -> (i32, i32, i32, i32) {
    %c0_i32 = arith.constant 0 : i32
    %c0_i32_0 = arith.constant 0 : i32
    return %arg0, %arg2, %arg1, %c0_i32 : i32, i32, i32, i32
  }
  func.func @transform_3(%arg0: i32, %arg1: i32, %arg2: i32) -> (i32, i32, i32) {
    %c0_i32 = arith.constant 0 : i32
    %c0_i32_0 = arith.constant 0 : i32
    %c0_i32_1 = arith.constant 0 : i32
    return %arg0, %c0_i32, %c0_i32_0 : i32, i32, i32
  }
  func.func @transform_4(%arg0: i32, %arg1: i32, %arg2: i32) -> (i32, i32, i32, i32) {
    %c0_i32 = arith.constant 0 : i32
    %c0_i32_0 = arith.constant 0 : i32
    %c0_i32_1 = arith.constant 0 : i32
    return %arg0, %c0_i32, %arg1, %c0_i32_0 : i32, i32, i32, i32
  }
  func.func @transform_5(%arg0: i32, %arg1: i32, %arg2: i32) -> (i32, i32, i32, i32) {
    %c0_i32 = arith.constant 0 : i32
    %c0_i32_0 = arith.constant 0 : i32
    return %arg0, %arg2, %arg1, %c0_i32 : i32, i32, i32, i32
  }
  func.func @transform_6(%arg0: i32, %arg1: i32, %arg2: i32) -> (i32, i32, i32, i32) {
    %c0_i32 = arith.constant 0 : i32
    %c0_i32_0 = arith.constant 0 : i32
    return %arg0, %arg2, %arg1, %c0_i32 : i32, i32, i32, i32
  }
}

module attributes {stable_mosaic.version = 11 : i64} {
  func.func @_clustered_attention_kernel(%arg0: i32, %arg1: i32, %arg2: i32, %arg3: memref<1x8x1xi32, #tpu.memory_space<vmem>>, %arg4: memref<1x1x8xi32, #tpu.memory_space<vmem>>, %arg5: memref<1x8x4x32xf32, #tpu.memory_space<vmem>>, %arg6: memref<1x32x8xf32, #tpu.memory_space<vmem>>, %arg7: memref<1x8x4x32xf32, #tpu.memory_space<vmem>>, %arg8: memref<1x8x4x32xf32, #tpu.memory_space<vmem>>, %arg9: memref<1x8x4x8xf32, #tpu.memory_space<vmem>>) attributes {dimension_semantics = [#tpu.dimension_semantics<parallel>, #tpu.dimension_semantics<parallel>, #tpu.dimension_semantics<parallel>], iteration_bounds = array<i64: 2, 1, 1>, scalar_prefetch = 0 : i64, scratch_operands = 0 : i64, tpu.core_type = #tpu.core_type<tc>, window_params = [{transform_indices = @transform_0, window_bounds = array<i64: 1, 8, 1>}, {transform_indices = @transform_1, window_bounds = array<i64: 1, 1, 8>}, {transform_indices = @transform_2, window_bounds = array<i64: 1, 8, 4, 32>}, {transform_indices = @transform_3, window_bounds = array<i64: 1, 32, 8>}, {transform_indices = @transform_4, window_bounds = array<i64: 1, 8, 4, 32>}, {transform_indices = @transform_5, window_bounds = array<i64: 1, 8, 4, 32>}, {transform_indices = @transform_6, window_bounds = array<i64: 1, 8, 4, 8>}]} {
    %c0 = arith.constant 0 : index
    %c0_0 = arith.constant 0 : index
    %c0_1 = arith.constant 0 : index
    %0 = vector.load %arg6[%c0, %c0_0, %c0_1] : memref<1x32x8xf32, #tpu.memory_space<vmem>>, vector<1x32x8xf32>
    %1 = vector.shape_cast %0 : vector<1x32x8xf32> to vector<32x8xf32>
    %c0_2 = arith.constant 0 : index
    %c0_3 = arith.constant 0 : index
    %c0_4 = arith.constant 0 : index
    %2 = vector.load %arg3[%c0_2, %c0_3, %c0_4] : memref<1x8x1xi32, #tpu.memory_space<vmem>>, vector<1x8x1xi32>
    %3 = vector.shape_cast %2 : vector<1x8x1xi32> to vector<8x1xi32>
    %c0_5 = arith.constant 0 : index
    %c0_6 = arith.constant 0 : index
    %c0_7 = arith.constant 0 : index
    %4 = vector.load %arg4[%c0_5, %c0_6, %c0_7] : memref<1x1x8xi32, #tpu.memory_space<vmem>>, vector<1x1x8xi32>
    %5 = vector.shape_cast %4 : vector<1x1x8xi32> to vector<1x8xi32>
    %6 = vector.broadcast %3 : vector<8x1xi32> to vector<8x8xi32>
    %7 = vector.broadcast %5 : vector<1x8xi32> to vector<8x8xi32>
    %8 = arith.cmpi eq, %6, %7 : vector<8x8xi32>
    %c0_8 = arith.constant 0 : index
    %c0_9 = arith.constant 0 : index
    %c0_10 = arith.constant 0 : index
    %c0_11 = arith.constant 0 : index
    %9 = vector.load %arg5[%c0_8, %c0_9, %c0_10, %c0_11] : memref<1x8x4x32xf32, #tpu.memory_space<vmem>>, vector<1x8x1x32xf32>
    %10 = vector.shape_cast %9 : vector<1x8x1x32xf32> to vector<8x32xf32>
    %cst = arith.constant dense<0.000000e+00> : vector<8x8xf32>
    %11 = tpu.matmul %10, %1, %cst {dimension_numbers = #tpu.dot_dimension_numbers<[1], [0], [0], [1], [0, 0, 1, 1], [], []>} : vector<8x32xf32>, vector<32x8xf32>, vector<8x8xf32> -> vector<8x8xf32>
    %cst_12 = arith.constant 0xFF800000 : f32
    %12 = vector.broadcast %cst_12 : f32 to vector<8x8xf32>
    %13 = arith.select %8, %11, %12 : vector<8x8xi1>, vector<8x8xf32>
    %cst_13 = arith.constant dense<0xFF800000> : vector<8xf32>
    %14 = vector.multi_reduction <maximumf>, %13, %cst_13 [1] : vector<8x8xf32> to vector<8xf32>
    %15 = vector.shape_cast %14 : vector<8xf32> to vector<8x1xf32>
    %16 = vector.broadcast %15 : vector<8x1xf32> to vector<8x8xf32>
    %17 = arith.subf %13, %16 : vector<8x8xf32>
    %18 = math.exp %17 : vector<8x8xf32>
    %cst_14 = arith.constant dense<0.000000e+00> : vector<8xf32>
    %19 = vector.multi_reduction <add>, %18, %cst_14 [1] : vector<8x8xf32> to vector<8xf32>
    %20 = vector.shape_cast %19 : vector<8xf32> to vector<8x1xf32>
    %cst_15 = arith.constant 1.000000e+00 : f32
    %21 = vector.broadcast %cst_15 : f32 to vector<8x1xf32>
    %22 = arith.divf %21, %20 : vector<8x1xf32>
    %23 = vector.broadcast %22 : vector<8x1xf32> to vector<8x8xf32>
    %24 = arith.mulf %18, %23 : vector<8x8xf32>
    %c0_16 = arith.constant 0 : index
    %c0_17 = arith.constant 0 : index
    %c0_18 = arith.constant 0 : index
    %c0_19 = arith.constant 0 : index
    %25 = vector.load %arg9[%c0_16, %c0_17, %c0_18, %c0_19] : memref<1x8x4x8xf32, #tpu.memory_space<vmem>>, vector<1x8x1x8xf32>
    %26 = vector.shape_cast %25 : vector<1x8x1x8xf32> to vector<8x8xf32>
    %27 = vector.shape_cast %24 : vector<8x8xf32> to vector<1x8x1x8xf32>
    tpu.vector_store %arg9[%c0_16, %c0_17, %c0_18, %c0_19], %27 {strides = array<i32>} : memref<1x8x4x8xf32, #tpu.memory_space<vmem>>, vector<1x8x1x8xf32>,
    %c0_20 = arith.constant 0 : index
    %c0_21 = arith.constant 0 : index
    %c0_22 = arith.constant 0 : index
    %c0_23 = arith.constant 0 : index
    %28 = vector.load %arg7[%c0_20, %c0_21, %c0_22, %c0_23] : memref<1x8x4x32xf32, #tpu.memory_space<vmem>>, vector<1x8x1x32xf32>
    %29 = vector.shape_cast %28 : vector<1x8x1x32xf32> to vector<8x32xf32>
    %cst_24 = arith.constant dense<0.000000e+00> : vector<8x32xf32>
    %30 = tpu.matmul %24, %29, %cst_24 {dimension_numbers = #tpu.dot_dimension_numbers<[1], [0], [0], [1], [0, 0, 1, 1], [], []>} : vector<8x8xf32>, vector<8x32xf32>, vector<8x32xf32> -> vector<8x32xf32>
    %c0_25 = arith.constant 0 : index
    %c0_26 = arith.constant 0 : index
    %c0_27 = arith.constant 0 : index
    %c0_28 = arith.constant 0 : index
    %31 = vector.load %arg8[%c0_25, %c0_26, %c0_27, %c0_28] : memref<1x8x4x32xf32, #tpu.memory_space<vmem>>, vector<1x8x1x32xf32>
    %32 = vector.shape_cast %31 : vector<1x8x1x32xf32> to vector<8x32xf32>
    %33 = vector.shape_cast %30 : vector<8x32xf32> to vector<1x8x1x32xf32>
    tpu.vector_store %arg8[%c0_25, %c0_26, %c0_27, %c0_28], %33 {strides = array<i32>} : memref<1x8x4x32xf32, #tpu.memory_space<vmem>>, vector<1x8x1x32xf32>,
    %c0_29 = arith.constant 0 : index
    %c0_30 = arith.constant 0 : index
    %c1 = arith.constant 1 : index
    %c0_31 = arith.constant 0 : index
    %34 = vector.load %arg5[%c0_29, %c0_30, %c1, %c0_31] : memref<1x8x4x32xf32, #tpu.memory_space<vmem>>, vector<1x8x1x32xf32>
    %35 = vector.shape_cast %34 : vector<1x8x1x32xf32> to vector<8x32xf32>
    %cst_32 = arith.constant dense<0.000000e+00> : vector<8x8xf32>
    %36 = tpu.matmul %35, %1, %cst_32 {dimension_numbers = #tpu.dot_dimension_numbers<[1], [0], [0], [1], [0, 0, 1, 1], [], []>} : vector<8x32xf32>, vector<32x8xf32>, vector<8x8xf32> -> vector<8x8xf32>
    %cst_33 = arith.constant 0xFF800000 : f32
    %37 = vector.broadcast %cst_33 : f32 to vector<8x8xf32>
    %38 = arith.select %8, %36, %37 : vector<8x8xi1>, vector<8x8xf32>
    %cst_34 = arith.constant dense<0xFF800000> : vector<8xf32>
    %39 = vector.multi_reduction <maximumf>, %38, %cst_34 [1] : vector<8x8xf32> to vector<8xf32>
    %40 = vector.shape_cast %39 : vector<8xf32> to vector<8x1xf32>
    %41 = vector.broadcast %40 : vector<8x1xf32> to vector<8x8xf32>
    %42 = arith.subf %38, %41 : vector<8x8xf32>
    %43 = math.exp %42 : vector<8x8xf32>
    %cst_35 = arith.constant dense<0.000000e+00> : vector<8xf32>
    %44 = vector.multi_reduction <add>, %43, %cst_35 [1] : vector<8x8xf32> to vector<8xf32>
    %45 = vector.shape_cast %44 : vector<8xf32> to vector<8x1xf32>
    %cst_36 = arith.constant 1.000000e+00 : f32
    %46 = vector.broadcast %cst_36 : f32 to vector<8x1xf32>
    %47 = arith.divf %46, %45 : vector<8x1xf32>
    %48 = vector.broadcast %47 : vector<8x1xf32> to vector<8x8xf32>
    %49 = arith.mulf %43, %48 : vector<8x8xf32>
    %c0_37 = arith.constant 0 : index
    %c0_38 = arith.constant 0 : index
    %c1_39 = arith.constant 1 : index
    %c0_40 = arith.constant 0 : index
    %50 = vector.load %arg9[%c0_37, %c0_38, %c1_39, %c0_40] : memref<1x8x4x8xf32, #tpu.memory_space<vmem>>, vector<1x8x1x8xf32>
    %51 = vector.shape_cast %50 : vector<1x8x1x8xf32> to vector<8x8xf32>
    %52 = vector.shape_cast %49 : vector<8x8xf32> to vector<1x8x1x8xf32>
    tpu.vector_store %arg9[%c0_37, %c0_38, %c1_39, %c0_40], %52 {strides = array<i32>} : memref<1x8x4x8xf32, #tpu.memory_space<vmem>>, vector<1x8x1x8xf32>,
    %c0_41 = arith.constant 0 : index
    %c0_42 = arith.constant 0 : index
    %c1_43 = arith.constant 1 : index
    %c0_44 = arith.constant 0 : index
    %53 = vector.load %arg7[%c0_41, %c0_42, %c1_43, %c0_44] : memref<1x8x4x32xf32, #tpu.memory_space<vmem>>, vector<1x8x1x32xf32>
    %54 = vector.shape_cast %53 : vector<1x8x1x32xf32> to vector<8x32xf32>
    %cst_45 = arith.constant dense<0.000000e+00> : vector<8x32xf32>
    %55 = tpu.matmul %49, %54, %cst_45 {dimension_numbers = #tpu.dot_dimension_numbers<[1], [0], [0], [1], [0, 0, 1, 1], [], []>} : vector<8x8xf32>, vector<8x32xf32>, vector<8x32xf32> -> vector<8x32xf32>
    %c0_46 = arith.constant 0 : index
    %c0_47 = arith.constant 0 : index
    %c1_48 = arith.constant 1 : index
    %c0_49 = arith.constant 0 : index
    %56 = vector.load %arg8[%c0_46, %c0_47, %c1_48, %c0_49] : memref<1x8x4x32xf32, #tpu.memory_space<vmem>>, vector<1x8x1x32xf32>
    %57 = vector.shape_cast %56 : vector<1x8x1x32xf32> to vector<8x32xf32>
    %58 = vector.shape_cast %55 : vector<8x32xf32> to vector<1x8x1x32xf32>
    tpu.vector_store %arg8[%c0_46, %c0_47, %c1_48, %c0_49], %58 {strides = array<i32>} : memref<1x8x4x32xf32, #tpu.memory_space<vmem>>, vector<1x8x1x32xf32>,
    %c0_50 = arith.constant 0 : index
    %c0_51 = arith.constant 0 : index
    %c2 = arith.constant 2 : index
    %c0_52 = arith.constant 0 : index
    %59 = vector.load %arg5[%c0_50, %c0_51, %c2, %c0_52] : memref<1x8x4x32xf32, #tpu.memory_space<vmem>>, vector<1x8x1x32xf32>
    %60 = vector.shape_cast %59 : vector<1x8x1x32xf32> to vector<8x32xf32>
    %cst_53 = arith.constant dense<0.000000e+00> : vector<8x8xf32>
    %61 = tpu.matmul %60, %1, %cst_53 {dimension_numbers = #tpu.dot_dimension_numbers<[1], [0], [0], [1], [0, 0, 1, 1], [], []>} : vector<8x32xf32>, vector<32x8xf32>, vector<8x8xf32> -> vector<8x8xf32>
    %cst_54 = arith.constant 0xFF800000 : f32
    %62 = vector.broadcast %cst_54 : f32 to vector<8x8xf32>
    %63 = arith.select %8, %61, %62 : vector<8x8xi1>, vector<8x8xf32>
    %cst_55 = arith.constant dense<0xFF800000> : vector<8xf32>
    %64 = vector.multi_reduction <maximumf>, %63, %cst_55 [1] : vector<8x8xf32> to vector<8xf32>
    %65 = vector.shape_cast %64 : vector<8xf32> to vector<8x1xf32>
    %66 = vector.broadcast %65 : vector<8x1xf32> to vector<8x8xf32>
    %67 = arith.subf %63, %66 : vector<8x8xf32>
    %68 = math.exp %67 : vector<8x8xf32>
    %cst_56 = arith.constant dense<0.000000e+00> : vector<8xf32>
    %69 = vector.multi_reduction <add>, %68, %cst_56 [1] : vector<8x8xf32> to vector<8xf32>
    %70 = vector.shape_cast %69 : vector<8xf32> to vector<8x1xf32>
    %cst_57 = arith.constant 1.000000e+00 : f32
    %71 = vector.broadcast %cst_57 : f32 to vector<8x1xf32>
    %72 = arith.divf %71, %70 : vector<8x1xf32>
    %73 = vector.broadcast %72 : vector<8x1xf32> to vector<8x8xf32>
    %74 = arith.mulf %68, %73 : vector<8x8xf32>
    %c0_58 = arith.constant 0 : index
    %c0_59 = arith.constant 0 : index
    %c2_60 = arith.constant 2 : index
    %c0_61 = arith.constant 0 : index
    %75 = vector.load %arg9[%c0_58, %c0_59, %c2_60, %c0_61] : memref<1x8x4x8xf32, #tpu.memory_space<vmem>>, vector<1x8x1x8xf32>
    %76 = vector.shape_cast %75 : vector<1x8x1x8xf32> to vector<8x8xf32>
    %77 = vector.shape_cast %74 : vector<8x8xf32> to vector<1x8x1x8xf32>
    tpu.vector_store %arg9[%c0_58, %c0_59, %c2_60, %c0_61], %77 {strides = array<i32>} : memref<1x8x4x8xf32, #tpu.memory_space<vmem>>, vector<1x8x1x8xf32>,
    %c0_62 = arith.constant 0 : index
    %c0_63 = arith.constant 0 : index
    %c2_64 = arith.constant 2 : index
    %c0_65 = arith.constant 0 : index
    %78 = vector.load %arg7[%c0_62, %c0_63, %c2_64, %c0_65] : memref<1x8x4x32xf32, #tpu.memory_space<vmem>>, vector<1x8x1x32xf32>
    %79 = vector.shape_cast %78 : vector<1x8x1x32xf32> to vector<8x32xf32>
    %cst_66 = arith.constant dense<0.000000e+00> : vector<8x32xf32>
    %80 = tpu.matmul %74, %79, %cst_66 {dimension_numbers = #tpu.dot_dimension_numbers<[1], [0], [0], [1], [0, 0, 1, 1], [], []>} : vector<8x8xf32>, vector<8x32xf32>, vector<8x32xf32> -> vector<8x32xf32>
    %c0_67 = arith.constant 0 : index
    %c0_68 = arith.constant 0 : index
    %c2_69 = arith.constant 2 : index
    %c0_70 = arith.constant 0 : index
    %81 = vector.load %arg8[%c0_67, %c0_68, %c2_69, %c0_70] : memref<1x8x4x32xf32, #tpu.memory_space<vmem>>, vector<1x8x1x32xf32>
    %82 = vector.shape_cast %81 : vector<1x8x1x32xf32> to vector<8x32xf32>
    %83 = vector.shape_cast %80 : vector<8x32xf32> to vector<1x8x1x32xf32>
    tpu.vector_store %arg8[%c0_67, %c0_68, %c2_69, %c0_70], %83 {strides = array<i32>} : memref<1x8x4x32xf32, #tpu.memory_space<vmem>>, vector<1x8x1x32xf32>,
    %c0_71 = arith.constant 0 : index
    %c0_72 = arith.constant 0 : index
    %c3 = arith.constant 3 : index
    %c0_73 = arith.constant 0 : index
    %84 = vector.load %arg5[%c0_71, %c0_72, %c3, %c0_73] : memref<1x8x4x32xf32, #tpu.memory_space<vmem>>, vector<1x8x1x32xf32>
    %85 = vector.shape_cast %84 : vector<1x8x1x32xf32> to vector<8x32xf32>
    %cst_74 = arith.constant dense<0.000000e+00> : vector<8x8xf32>
    %86 = tpu.matmul %85, %1, %cst_74 {dimension_numbers = #tpu.dot_dimension_numbers<[1], [0], [0], [1], [0, 0, 1, 1], [], []>} : vector<8x32xf32>, vector<32x8xf32>, vector<8x8xf32> -> vector<8x8xf32>
    %cst_75 = arith.constant 0xFF800000 : f32
    %87 = vector.broadcast %cst_75 : f32 to vector<8x8xf32>
    %88 = arith.select %8, %86, %87 : vector<8x8xi1>, vector<8x8xf32>
    %cst_76 = arith.constant dense<0xFF800000> : vector<8xf32>
    %89 = vector.multi_reduction <maximumf>, %88, %cst_76 [1] : vector<8x8xf32> to vector<8xf32>
    %90 = vector.shape_cast %89 : vector<8xf32> to vector<8x1xf32>
    %91 = vector.broadcast %90 : vector<8x1xf32> to vector<8x8xf32>
    %92 = arith.subf %88, %91 : vector<8x8xf32>
    %93 = math.exp %92 : vector<8x8xf32>
    %cst_77 = arith.constant dense<0.000000e+00> : vector<8xf32>
    %94 = vector.multi_reduction <add>, %93, %cst_77 [1] : vector<8x8xf32> to vector<8xf32>
    %95 = vector.shape_cast %94 : vector<8xf32> to vector<8x1xf32>
    %cst_78 = arith.constant 1.000000e+00 : f32
    %96 = vector.broadcast %cst_78 : f32 to vector<8x1xf32>
    %97 = arith.divf %96, %95 : vector<8x1xf32>
    %98 = vector.broadcast %97 : vector<8x1xf32> to vector<8x8xf32>
    %99 = arith.mulf %93, %98 : vector<8x8xf32>
    %c0_79 = arith.constant 0 : index
    %c0_80 = arith.constant 0 : index
    %c3_81 = arith.constant 3 : index
    %c0_82 = arith.constant 0 : index
    %100 = vector.load %arg9[%c0_79, %c0_80, %c3_81, %c0_82] : memref<1x8x4x8xf32, #tpu.memory_space<vmem>>, vector<1x8x1x8xf32>
    %101 = vector.shape_cast %100 : vector<1x8x1x8xf32> to vector<8x8xf32>
    %102 = vector.shape_cast %99 : vector<8x8xf32> to vector<1x8x1x8xf32>
    tpu.vector_store %arg9[%c0_79, %c0_80, %c3_81, %c0_82], %102 {strides = array<i32>} : memref<1x8x4x8xf32, #tpu.memory_space<vmem>>, vector<1x8x1x8xf32>,
    %c0_83 = arith.constant 0 : index
    %c0_84 = arith.constant 0 : index
    %c3_85 = arith.constant 3 : index
    %c0_86 = arith.constant 0 : index
    %103 = vector.load %arg7[%c0_83, %c0_84, %c3_85, %c0_86] : memref<1x8x4x32xf32, #tpu.memory_space<vmem>>, vector<1x8x1x32xf32>
    %104 = vector.shape_cast %103 : vector<1x8x1x32xf32> to vector<8x32xf32>
    %cst_87 = arith.constant dense<0.000000e+00> : vector<8x32xf32>
    %105 = tpu.matmul %99, %104, %cst_87 {dimension_numbers = #tpu.dot_dimension_numbers<[1], [0], [0], [1], [0, 0, 1, 1], [], []>} : vector<8x8xf32>, vector<8x32xf32>, vector<8x32xf32> -> vector<8x32xf32>
    %c0_88 = arith.constant 0 : index
    %c0_89 = arith.constant 0 : index
    %c3_90 = arith.constant 3 : index
    %c0_91 = arith.constant 0 : index
    %106 = vector.load %arg8[%c0_88, %c0_89, %c3_90, %c0_91] : memref<1x8x4x32xf32, #tpu.memory_space<vmem>>, vector<1x8x1x32xf32>
    %107 = vector.shape_cast %106 : vector<1x8x1x32xf32> to vector<8x32xf32>
    %108 = vector.shape_cast %105 : vector<8x32xf32> to vector<1x8x1x32xf32>
    tpu.vector_store %arg8[%c0_88, %c0_89, %c3_90, %c0_91], %108 {strides = array<i32>} : memref<1x8x4x32xf32, #tpu.memory_space<vmem>>, vector<1x8x1x32xf32>,
    return
  }
  func.func @transform_0(%arg0: i32, %arg1: i32, %arg2: i32) -> (i32, i32, i32) {
    %c0_i32 = arith.constant 0 : i32
    %c0_i32_0 = arith.constant 0 : i32
    return %arg0, %arg2, %c0_i32 : i32, i32, i32
  }
  func.func @transform_1(%arg0: i32, %arg1: i32, %arg2: i32) -> (i32, i32, i32) {
    %c0_i32 = arith.constant 0 : i32
    %c0_i32_0 = arith.constant 0 : i32
    %c0_i32_1 = arith.constant 0 : i32
    return %arg0, %c0_i32, %c0_i32_0 : i32, i32, i32
  }
  func.func @transform_2(%arg0: i32, %arg1: i32, %arg2: i32) -> (i32, i32, i32, i32) {
    %c0_i32 = arith.constant 0 : i32
    %c0_i32_0 = arith.constant 0 : i32
    return %arg0, %arg2, %arg1, %c0_i32 : i32, i32, i32, i32
  }
  func.func @transform_3(%arg0: i32, %arg1: i32, %arg2: i32) -> (i32, i32, i32) {
    %c0_i32 = arith.constant 0 : i32
    %c0_i32_0 = arith.constant 0 : i32
    %c0_i32_1 = arith.constant 0 : i32
    return %arg0, %c0_i32, %c0_i32_0 : i32, i32, i32
  }
  func.func @transform_4(%arg0: i32, %arg1: i32, %arg2: i32) -> (i32, i32, i32, i32) {
    %c0_i32 = arith.constant 0 : i32
    %c0_i32_0 = arith.constant 0 : i32
    %c0_i32_1 = arith.constant 0 : i32
    return %arg0, %c0_i32, %arg1, %c0_i32_0 : i32, i32, i32, i32
  }
  func.func @transform_5(%arg0: i32, %arg1: i32, %arg2: i32) -> (i32, i32, i32, i32) {
    %c0_i32 = arith.constant 0 : i32
    %c0_i32_0 = arith.constant 0 : i32
    return %arg0, %arg2, %arg1, %c0_i32 : i32, i32, i32, i32
  }
  func.func @transform_6(%arg0: i32, %arg1: i32, %arg2: i32) -> (i32, i32, i32, i32) {
    %c0_i32 = arith.constant 0 : i32
    %c0_i32_0 = arith.constant 0 : i32
    return %arg0, %arg2, %arg1, %c0_i32 : i32, i32, i32, i32
  }
}

</mosaic_0001>

<llo_original>
// kernel: tpu_custom_call.1
$region0: #{tpu_custom_call.1}
  #allocation0 [shape = 'u32[]', space=smem, size = 0x4, offset = 0x4, fixed_abs, tag = 'smem constant byte address 0x4 - core index']
  #allocation1 [shape = 'u32[144,128]{1,0:T(1,128)}', space=vmem, size = 0x12000, scoped, tag = 'internal scratch']
  %s0 = inlined_call_operand.vmem [shape: s32[2,8,1], index: 0, kind: input, shape index: {}]
  %s1 = inlined_call_operand.vmem [shape: s32[2,1,8], index: 1, kind: input, shape index: {}]
  %s2 = inlined_call_operand.vmem [shape: f32[2,8,4,32], index: 2, kind: input, shape index: {}]
  %s3 = inlined_call_operand.vmem [shape: f32[2,32,8], index: 3, kind: input, shape index: {}]
  %s4 = inlined_call_operand.hbm [shape: f32[2,8,4,32], index: 4, kind: input, shape index: {}]
  %s5 = inlined_call_operand.hbm [shape: f32[2,8,4,32], index: 5, kind: output, shape index: {0}]
  %s6 = inlined_call_operand.hbm [shape: f32[2,8,4,8], index: 6, kind: output, shape index: {1}]
  %7 = xla_tuple %s5, %s6
  %s8 = sld [smem:[#allocation0]]
  $region65: #{tpu_custom_call.1} parent=0
    _
  %s10 = ssub.s32 1, %s8
  %s11 = scalar_select 0, %s10, %s8
  $region1: #{tpu_custom_call.1} parent=0
    #allocation2 [shape = 'u8[32768]{0}', space=vmem, size = 0x8000, scoped, tag = 'input window, operand 4']
    #allocation3 [shape = 's32[2]{0}', space=sflag, size = 0x8, scoped, tag = 'scoped memory for tpu_custom_call.1']
    #allocation4 [shape = 's32[2]{0}', space=sflag, size = 0x8, scoped, tag = 'scoped memory for tpu_custom_call.1']
    #allocation5 [shape = 'u8[32768]{0}', space=vmem, size = 0x8000, scoped, tag = 'output window, operand 0']
    #allocation6 [shape = 'u8[32768]{0}', space=vmem, size = 0x8000, scoped, tag = 'output window, operand 1']
    #allocation7 [shape = 's32[2]{0}', space=sflag, size = 0x8, scoped, tag = 'scoped memory for tpu_custom_call.1']
    %12 = vsyncpa [#allocation3], 0
    %s13 = scalar_lea.sflag [#allocation3], 1
    %14 = vsyncpa %s13, 0
    %15 = vsyncpa [#allocation4], 0
    %s16 = scalar_lea.sflag [#allocation4], 1
    %17 = vsyncpa %s16, 0
    %18 = vsyncpa [#allocation7], 0
    %s19 = scalar_lea.sflag [#allocation7], 1
    %20 = vsyncpa %s19, 0
    loop: start=0, step=1, limit=4
    $region2: #{tpu_custom_call.1} parent=1 // loop_pre_header
      _
    $region3: #{tpu_custom_call.1} parent=1 // loop_header
      %s22 = sphi 0, %s26
      %p23 = scmp.ge.s32.totalorder %s22, 4
      %s29 = sphi 0, %s48
      %s30 = sphi 0, %s44
      %s31 = sphi 0, %s40
      %s32 = sphi 0, %s29
      %s33 = sphi 0, %s30
      %s34 = sphi 0, %s31
      %s35 = sphi 0, %s32
      %s36 = sphi 0, %s33
      %s37 = sphi 0, %s34
      %s53 = sphi 0, %s55
      %s56 = sphi 0, %s53
      %s57 = sphi 0, %s56
      %s73 = sphi 0, %s57
      %s79 = sphi 0, %s81
      %s82 = sphi 0, %s79
      %s83 = sphi 0, %s82
      %s99 = sphi 0, %s83
      %s109 = sphi 0, %s111
      %s112 = sphi 0, %s109
      %s113 = sphi 0, %s112
      %s129 = sphi 0, %s113
      %s135 = sphi 0, %s137
      %s138 = sphi 0, %s135
      %s139 = sphi 0, %s138
      %s155 = sphi 0, %s139
      %s163 = sphi 0, %s165
      %s166 = sphi 0, %s163
      %s167 = sphi 0, %s166
      %s183 = sphi 0, %s167
      %s193 = sphi 0, %s195
      %s196 = sphi 0, %s193
      %s197 = sphi 0, %s196
      %s213 = sphi 0, %s197
      %s223 = sphi 0, %s225
      %s226 = sphi 0, %s223
      %s227 = sphi 0, %s226
      %s243 = sphi 0, %s227
    $region4: #{tpu_custom_call.1} parent=1 // loop_header_branch
      %25 = sbr.rel (%p23) target = $region8
    $region5: #{tpu_custom_call.1} parent=1 // loop_body
      %s27 = ssub.s32 %s22, 1
      %s28 = ssub.s32 %s22, 2
      %s38 = sadd.s32 1, %s31
      %p39 = scmp.ge.s32.totalorder %s38, 1
      %s40 = scalar_select %p39, 0, %s38
      %s41 = sadd.s32 1, %s30
      %s42 = scalar_select %p39, %s41, %s30
      %p43 = scmp.ge.s32.totalorder %s42, 1
      %s44 = scalar_select %p43, 0, %s42
      %s45 = sadd.s32 1, %s29
      %s46 = scalar_select %p43, %s45, %s29
      %p47 = scmp.ge.s32.totalorder %s46, 2
      %s48 = scalar_select %p47, 0, %s46
      %s49 = ssub.s32 %s29, %s48
      %s50 = ssub.s32 %s31, %s40
      %s51 = sor.u32 %s49, %s50
      %p52 = scmp.eq.s32.totalorder %s51, 0
      %s54 = sadd.s32 %s53, 1
      %s55 = scalar_select %p52, %s53, %s54
      %p58 = pneg %p52
      %p59 = scmp.eq.s32.totalorder %s22, 1
      %p60 = por %p58, %p59
      %p61 = scmp.ne.s32.totalorder %s53, %s56
      %p62 = scmp.eq.s32.totalorder %s22, 0
      %p63 = por %p61, %p62
      %p64 = scmp.ne.s32.totalorder %s53, %s56
      %p65 = scmp.eq.s32.totalorder %s27, 1
      %p66 = por %p64, %p65
      %p67 = scmp.ne.s32.totalorder %s56, %s57
      %p68 = scmp.eq.s32.totalorder %s27, 0
      %p69 = por %p67, %p68
      %p70 = scmp.ne.s32.totalorder %s56, %s57
      %p71 = scmp.eq.s32.totalorder %s28, 1
      %p72 = por %p70, %p71
      %p74 = scmp.ne.s32.totalorder %s57, %s73
      %p75 = scmp.eq.s32.totalorder %s28, 0
      %p76 = por %p74, %p75
      %s77 = ssub.s32 %s29, %s48
      %p78 = scmp.eq.s32.totalorder %s77, 0
      %s80 = sadd.s32 %s79, 1
      %s81 = scalar_select %p78, %s79, %s80
      %p84 = pneg %p78
      %p85 = scmp.eq.s32.totalorder %s22, 1
      %p86 = por %p84, %p85
      %p87 = scmp.ne.s32.totalorder %s79, %s82
      %p88 = scmp.eq.s32.totalorder %s22, 0
      %p89 = por %p87, %p88
      %p90 = scmp.ne.s32.totalorder %s79, %s82
      %p91 = scmp.eq.s32.totalorder %s27, 1
      %p92 = por %p90, %p91
      %p93 = scmp.ne.s32.totalorder %s82, %s83
      %p94 = scmp.eq.s32.totalorder %s27, 0
      %p95 = por %p93, %p94
      %p96 = scmp.ne.s32.totalorder %s82, %s83
      %p97 = scmp.eq.s32.totalorder %s28, 1
      %p98 = por %p96, %p97
      %p100 = scmp.ne.s32.totalorder %s83, %s99
      %p101 = scmp.eq.s32.totalorder %s28, 0
      %p102 = por %p100, %p101
      %s103 = ssub.s32 %s29, %s48
      %s104 = ssub.s32 %s31, %s40
      %s105 = sor.u32 %s103, %s104
      %s106 = ssub.s32 %s30, %s44
      %s107 = sor.u32 %s105, %s106
      %p108 = scmp.eq.s32.totalorder %s107, 0
      %s110 = sadd.s32 %s109, 1
      %s111 = scalar_select %p108, %s109, %s110
      %p114 = pneg %p108
      %p115 = scmp.eq.s32.totalorder %s22, 1
      %p116 = por %p114, %p115
      %p117 = scmp.ne.s32.totalorder %s109, %s112
      %p118 = scmp.eq.s32.totalorder %s22, 0
      %p119 = por %p117, %p118
      %p120 = scmp.ne.s32.totalorder %s109, %s112
      %p121 = scmp.eq.s32.totalorder %s27, 1
      %p122 = por %p120, %p121
      %p123 = scmp.ne.s32.totalorder %s112, %s113
      %p124 = scmp.eq.s32.totalorder %s27, 0
      %p125 = por %p123, %p124
      %p126 = scmp.ne.s32.totalorder %s112, %s113
      %p127 = scmp.eq.s32.totalorder %s28, 1
      %p128 = por %p126, %p127
      %p130 = scmp.ne.s32.totalorder %s113, %s129
      %p131 = scmp.eq.s32.totalorder %s28, 0
      %p132 = por %p130, %p131
      %s133 = ssub.s32 %s29, %s48
      %p134 = scmp.eq.s32.totalorder %s133, 0
      %s136 = sadd.s32 %s135, 1
      %s137 = scalar_select %p134, %s135, %s136
      %p140 = pneg %p134
      %p141 = scmp.eq.s32.totalorder %s22, 1
      %p142 = por %p140, %p141
      %p143 = scmp.ne.s32.totalorder %s135, %s138
      %p144 = scmp.eq.s32.totalorder %s22, 0
      %p145 = por %p143, %p144
      %p146 = scmp.ne.s32.totalorder %s135, %s138
      %p147 = scmp.eq.s32.totalorder %s27, 1
      %p148 = por %p146, %p147
      %p149 = scmp.ne.s32.totalorder %s138, %s139
      %p150 = scmp.eq.s32.totalorder %s27, 0
      %p151 = por %p149, %p150
      %p152 = scmp.ne.s32.totalorder %s138, %s139
      %p153 = scmp.eq.s32.totalorder %s28, 1
      %p154 = por %p152, %p153
      %p156 = scmp.ne.s32.totalorder %s139, %s155
      %p157 = scmp.eq.s32.totalorder %s28, 0
      %p158 = por %p156, %p157
      %s159 = ssub.s32 %s29, %s48
      %s160 = ssub.s32 %s30, %s44
      %s161 = sor.u32 %s159, %s160
      %p162 = scmp.eq.s32.totalorder %s161, 0
      %s164 = sadd.s32 %s163, 1
      %s165 = scalar_select %p162, %s163, %s164
      %p168 = pneg %p162
      %p169 = scmp.eq.s32.totalorder %s22, 1
      %p170 = por %p168, %p169
      %p171 = scmp.ne.s32.totalorder %s163, %s166
      %p172 = scmp.eq.s32.totalorder %s22, 0
      %p173 = por %p171, %p172
      %p174 = scmp.ne.s32.totalorder %s163, %s166
      %p175 = scmp.eq.s32.totalorder %s27, 1
      %p176 = por %p174, %p175
      %p177 = scmp.ne.s32.totalorder %s166, %s167
      %p178 = scmp.eq.s32.totalorder %s27, 0
      %p179 = por %p177, %p178
      %p180 = scmp.ne.s32.totalorder %s166, %s167
      %p181 = scmp.eq.s32.totalorder %s28, 1
      %p182 = por %p180, %p181
      %p184 = scmp.ne.s32.totalorder %s167, %s183
      %p185 = scmp.eq.s32.totalorder %s28, 0
      %p186 = por %p184, %p185
      %s187 = ssub.s32 %s29, %s48
      %s188 = ssub.s32 %s31, %s40
      %s189 = sor.u32 %s187, %s188
      %s190 = ssub.s32 %s30, %s44
      %s191 = sor.u32 %s189, %s190
      %p192 = scmp.eq.s32.totalorder %s191, 0
      %s194 = sadd.s32 %s193, 1
      %s195 = scalar_select %p192, %s193, %s194
      %p198 = pneg %p192
      %p199 = scmp.eq.s32.totalorder %s22, 1
      %p200 = por %p198, %p199
      %p201 = scmp.ne.s32.totalorder %s193, %s196
      %p202 = scmp.eq.s32.totalorder %s22, 0
      %p203 = por %p201, %p202
      %p204 = scmp.ne.s32.totalorder %s193, %s196
      %p205 = scmp.eq.s32.totalorder %s27, 1
      %p206 = por %p204, %p205
      %p207 = scmp.ne.s32.totalorder %s196, %s197
      %p208 = scmp.eq.s32.totalorder %s27, 0
      %p209 = por %p207, %p208
      %p210 = scmp.ne.s32.totalorder %s196, %s197
      %p211 = scmp.eq.s32.totalorder %s28, 1
      %p212 = por %p210, %p211
      %p214 = scmp.ne.s32.totalorder %s197, %s213
      %p215 = scmp.eq.s32.totalorder %s28, 0
      %p216 = por %p214, %p215
      %s217 = ssub.s32 %s29, %s48
      %s218 = ssub.s32 %s31, %s40
      %s219 = sor.u32 %s217, %s218
      %s220 = ssub.s32 %s30, %s44
      %s221 = sor.u32 %s219, %s220
      %p222 = scmp.eq.s32.totalorder %s221, 0
      %s224 = sadd.s32 %s223, 1
      %s225 = scalar_select %p222, %s223, %s224
      %p228 = pneg %p222
      %p229 = scmp.eq.s32.totalorder %s22, 1
      %p230 = por %p228, %p229
      %p231 = scmp.ne.s32.totalorder %s223, %s226
      %p232 = scmp.eq.s32.totalorder %s22, 0
      %p233 = por %p231, %p232
      %p234 = scmp.ne.s32.totalorder %s223, %s226
      %p235 = scmp.eq.s32.totalorder %s27, 1
      %p236 = por %p234, %p235
      %p237 = scmp.ne.s32.totalorder %s226, %s227
      %p238 = scmp.eq.s32.totalorder %s27, 0
      %p239 = por %p237, %p238
      %p240 = scmp.ne.s32.totalorder %s226, %s227
      %p241 = scmp.eq.s32.totalorder %s28, 1
      %p242 = por %p240, %p241
      %p244 = scmp.ne.s32.totalorder %s227, %s243
      %p245 = scmp.eq.s32.totalorder %s28, 0
      %p246 = por %p244, %p245
      %p247 = scmp.le.s32.totalorder 1, %s22
      %p248 = scmp.lt.s32.totalorder %s22, 3
      %p249 = pnand %p247, %p248
      %p250 = pneg %p249
      // Predicated region
      $region9: #{tpu_custom_call.1} parent=5 // pred_check
        _
      $region10: #{tpu_custom_call.1} parent=5 // pred_check_branch
        %252 = sbr.rel (%p249) target = $region12
      $region11: #{tpu_custom_call.1} parent=5 // pred_region
        %s253 = ssub.s32 %s22, 1
        // Predicated region
        $region13: #{tpu_custom_call.1} parent=11 // pred_check
          %p254 = pneg %p95
        $region14: #{tpu_custom_call.1} parent=11 // pred_check_branch
          %256 = sbr.rel (%p254) target = $region16
        $region15: #{tpu_custom_call.1} parent=11 // pred_region
          %p257 = scmp.lt.s32.totalorder %s32, 1
          %s258 = scalar_select %p257, %s32, 1
          %s259 = scalar_lea.vmem %s1, %s258
        $region16: #{tpu_custom_call.1} parent=11 // pred_fallthru
          _
        // Predicated region
        $region17: #{tpu_custom_call.1} parent=11 // pred_check
          %p260 = pneg %p151
        $region18: #{tpu_custom_call.1} parent=11 // pred_check_branch
          %262 = sbr.rel (%p260) target = $region20
        $region19: #{tpu_custom_call.1} parent=11 // pred_region
          %p263 = scmp.lt.s32.totalorder %s32, 1
          %s264 = scalar_select %p263, %s32, 1
          %s265 = smul.addr %s264, 4
          %s266 = smul.addr %s265, 8
          %s267 = scalar_lea.vmem %s3, %s266
        $region20: #{tpu_custom_call.1} parent=11 // pred_fallthru
          _
      $region12: #{tpu_custom_call.1} parent=5 // pred_fallthru
        _
      %p268 = scmp.lt.s32.totalorder %s22, 2
      // Predicated region
      $region21: #{tpu_custom_call.1} parent=5 // pred_check
        %p269 = pneg %p268
      $region22: #{tpu_custom_call.1} parent=5 // pred_check_branch
        %271 = sbr.rel (%p269) target = $region24
      $region23: #{tpu_custom_call.1} parent=5 // pred_region
        // Predicated region
        $region25: #{tpu_custom_call.1} parent=23 // pred_check
          %p272 = pneg %p63
        $region26: #{tpu_custom_call.1} parent=23 // pred_check_branch
          %274 = sbr.rel (%p272) target = $region28
        $region27: #{tpu_custom_call.1} parent=23 // pred_region
          %p275 = scmp.lt.s32.totalorder %s29, 1
          %s276 = scalar_select %p275, %s29, 1
          %p277 = scmp.lt.s32.totalorder %s31, 0
          %s278 = scalar_select %p277, %s31, 0
          %s279 = sadd.s32 %s278, %s276
          %s280 = smul.addr %s279, 8
          %s281 = scalar_lea.vmem %s0, %s280
        $region28: #{tpu_custom_call.1} parent=23 // pred_fallthru
          _
        // Predicated region
        $region29: #{tpu_custom_call.1} parent=23 // pred_check
          %p282 = pneg %p119
        $region30: #{tpu_custom_call.1} parent=23 // pred_check_branch
          %284 = sbr.rel (%p282) target = $region32
        $region31: #{tpu_custom_call.1} parent=23 // pred_region
          %s285 = smul.u32 8, %s31
          %p286 = scmp.lt.s32.totalorder %s29, 1
          %s287 = scalar_select %p286, %s29, 1
          %p288 = scmp.lt.s32.totalorder %s285, 7
          %s289 = scalar_select %p288, %s285, 7
          %p290 = scmp.lt.s32.totalorder %s30, 0
          %s291 = scalar_select %p290, %s30, 0
          %s292 = sadd.s32 %s291, %s289
          %s293 = smul.addr %s287, 8
          %s294 = sadd.s32 %s292, %s293
          %s295 = smul.addr %s294, 4
          %s296 = scalar_lea.vmem %s2, %s295
          %s297 = smul.u32 8, %s31
        $region32: #{tpu_custom_call.1} parent=23 // pred_fallthru
          _
        // Predicated region
        $region33: #{tpu_custom_call.1} parent=23 // pred_check
          %p298 = pneg %p173
        $region34: #{tpu_custom_call.1} parent=23 // pred_check_branch
          %300 = sbr.rel (%p298) target = $region36
        $region35: #{tpu_custom_call.1} parent=23 // pred_region
          %s301 = sand.u32 %s163, 1
          %s302 = scalar_lea.sflag [#allocation3], %s301
          %s303 = sand.u32 %s163, 1
          %s304 = smul.addr %s303, 32
          %s305 = scalar_lea.vmem [#allocation2], %s304
          %s307 = ssub.s32 512, 512
          %308 = vsyncadd %s302, %s307
          %s309 = smul.addr %s29, 8
          %s310 = sadd.s32 %s30, %s309
          %s311 = smul.addr %s310, 64
          %s312 = scalar_lea.hbm %s4, %s311
          %s313 = sshll.u32 %s305, 4
          %s314 = int_to_ptr.vmem [resolvable:$true] %s313
          %319 = dma.hbm_to_vmem [thread:$0]  %s312, 512, %s314, %s302, 64, 64, 4
        $region36: #{tpu_custom_call.1} parent=23 // pred_fallthru
          _
      $region24: #{tpu_custom_call.1} parent=5 // pred_fallthru
        _
      %p320 = scmp.le.s32.totalorder 1, %s22
      %p321 = scmp.lt.s32.totalorder %s22, 3
      %p322 = pnand %p320, %p321
      %p323 = pneg %p322
      // Predicated region
      $region37: #{tpu_custom_call.1} parent=5 // pred_check
        _
      $region38: #{tpu_custom_call.1} parent=5 // pred_check_branch
        %325 = sbr.rel (%p322) target = $region40
      $region39: #{tpu_custom_call.1} parent=5 // pred_region
        %s326 = ssub.s32 %s22, 1
        %s327 = sand.u32 %s166, 1
        %s328 = scalar_lea.sflag [#allocation3], %s327
        %s329 = sand.u32 %s166, 1
        %s330 = smul.addr %s329, 32
        %s331 = scalar_lea.vmem [#allocation2], %s330
        // Predicated region
        $region41: #{tpu_custom_call.1} parent=39 // pred_check
          %p332 = pneg %p179
        $region42: #{tpu_custom_call.1} parent=39 // pred_check_branch
          %334 = sbr.rel (%p332) target = $region44
        $region43: #{tpu_custom_call.1} parent=39 // pred_region
          %335 = dma.done %s328, 512
        $region44: #{tpu_custom_call.1} parent=39 // pred_fallthru
          _
        %p336 = scmp.lt.s32.totalorder %s32, 1
        %s337 = scalar_select %p336, %s32, 1
        %p338 = scmp.lt.s32.totalorder %s34, 0
        %s339 = scalar_select %p338, %s34, 0
        %s340 = sadd.s32 %s339, %s337
        %s341 = smul.addr %s340, 8
        %s342 = scalar_lea.vmem %s0, %s341
        %p343 = pneg %p69
        %p344 = pneg %p66
        %p345 = scmp.lt.s32.totalorder %s32, 1
        %s346 = scalar_select %p345, %s32, 1
        %s347 = scalar_lea.vmem %s1, %s346
        %p348 = pneg %p95
        %p349 = pneg %p92
        %s350 = smul.u32 8, %s34
        %p351 = scmp.lt.s32.totalorder %s32, 1
        %s352 = scalar_select %p351, %s32, 1
        %p353 = scmp.lt.s32.totalorder %s350, 7
        %s354 = scalar_select %p353, %s350, 7
        %p355 = scmp.lt.s32.totalorder %s33, 0
        %s356 = scalar_select %p355, %s33, 0
        %s357 = sadd.s32 %s356, %s354
        %s358 = smul.addr %s352, 8
        %s359 = sadd.s32 %s357, %s358
        %s360 = smul.addr %s359, 4
        %s361 = scalar_lea.vmem %s2, %s360
        %p362 = pneg %p125
        %p363 = pneg %p122
        %p364 = scmp.lt.s32.totalorder %s32, 1
        %s365 = scalar_select %p364, %s32, 1
        %s366 = smul.addr %s365, 4
        %s367 = smul.addr %s366, 8
        %s368 = scalar_lea.vmem %s3, %s367
        %p369 = pneg %p151
        %p370 = pneg %p148
        %s371 = sand.u32 %s166, 1
        %s372 = scalar_lea.sflag [#allocation3], %s371
        %s373 = sand.u32 %s166, 1
        %s374 = smul.addr %s373, 32
        %s375 = scalar_lea.vmem [#allocation2], %s374
        %p376 = pneg %p179
        %p377 = pneg %p176
        %p378 = pneg %p209
        %p379 = pneg %p206
        %s380 = sand.u32 %s196, 1
        %s381 = scalar_lea.sflag [#allocation4], %s380
        %s382 = sand.u32 %s196, 1
        %s383 = smul.addr %s382, 32
        %s384 = scalar_lea.vmem [#allocation5], %s383
        %p385 = pneg %p239
        %p386 = pneg %p236
        %s387 = sand.u32 %s226, 1
        %s388 = scalar_lea.sflag [#allocation7], %s387
        %s389 = sand.u32 %s226, 1
        %s390 = smul.addr %s389, 32
        %s391 = scalar_lea.vmem [#allocation6], %s390
        %p392 = scmp.lt.s32.totalorder %s32, 1
        %s393 = scalar_select %p392, %s32, 1
        %p394 = scmp.lt.s32.totalorder %s34, 0
        %s395 = scalar_select %p394, %s34, 0
        %s396 = sadd.s32 %s395, %s393
        %s397 = smul.addr %s396, 8
        %s398 = scalar_lea.vmem %s0, %s397
        %p399 = scmp.lt.s32.totalorder %s32, 1
        %s400 = scalar_select %p399, %s32, 1
        %s401 = scalar_lea.vmem %s1, %s400
        %s402 = smul.u32 8, %s34
        %p403 = scmp.lt.s32.totalorder %s32, 1
        %s404 = scalar_select %p403, %s32, 1
        %p405 = scmp.lt.s32.totalorder %s402, 7
        %s406 = scalar_select %p405, %s402, 7
        %p407 = scmp.lt.s32.totalorder %s33, 0
        %s408 = scalar_select %p407, %s33, 0
        %s409 = sadd.s32 %s408, %s406
        %s410 = smul.addr %s404, 8
        %s411 = sadd.s32 %s409, %s410
        %s412 = smul.addr %s411, 4
        %s413 = scalar_lea.vmem %s2, %s412
        %s414 = smul.u32 8, %s34
        %p415 = scmp.lt.s32.totalorder %s32, 1
        %s416 = scalar_select %p415, %s32, 1
        %s417 = smul.addr %s416, 4
        %s418 = smul.addr %s417, 8
        %s419 = scalar_lea.vmem %s3, %s418
        %s420 = smul.u32 8, %s34
        %s421 = smul.u32 8, %s34
        %v422 = vld [vmem:[%s419] sm:$0xff]
        %v423 = vld [vmem:[%s419 + $0x8] sm:$0xff]
        %v424 = vld [vmem:[%s419 + $0x10] sm:$0xff]
        %v425 = vld [vmem:[%s419 + $0x18] sm:$0xff]
        %v426 = vld [vmem:[%s398] sm:$0xff]
        %v427 = vld [vmem:[%s401] sm:$0x1]
        %428 = vset.pattern.permute.xlu0 0
        %429 = vperm.xlu0 %428, %v426
        %v430 = vpop.permute.xlu0 %429
        %v431 = vlaneseq
        %v432 = vshrl.u32 %v431, 7
        %v433 = vsub.s32 0, %v432
        %v434 = vrot.slane %v427, %v433
        %vm435 = vcmp.eq.s32.totalorder %v430, %v434
        %v436 = vld [vmem:[%s413] sm:$0x1]
        %v437 = vld [vmem:[%s413 + $0x4] sm:$0x1]
        %v438 = vld [vmem:[%s413 + $0x8] sm:$0x1]
        %v439 = vld [vmem:[%s413 + $0xc] sm:$0x1]
        %v440 = vld [vmem:[%s413 + $0x10] sm:$0x1]
        %v441 = vld [vmem:[%s413 + $0x14] sm:$0x1]
        %v442 = vld [vmem:[%s413 + $0x18] sm:$0x1]
        %v443 = vld [vmem:[%s413 + $0x1c] sm:$0x1]
        %v452 = vrot.slane %v437, 7
        %vm453 = vcmask 1041409
        %v454 = vsel %vm453, %v452, %v436
        %v455 = vrot.slane %v438, 6
        %vm456 = vcmask 1042434
        %v457 = vsel %vm456, %v455, %v454
        %v458 = vrot.slane %v439, 5
        %vm459 = vcmask 1043459
        %v460 = vsel %vm459, %v458, %v457
        %v461 = vrot.slane %v440, 4
        %vm462 = vcmask 1044484
        %v463 = vsel %vm462, %v461, %v460
        %v464 = vrot.slane %v441, 3
        %vm465 = vcmask 1045509
        %v466 = vsel %vm465, %v464, %v463
        %v467 = vrot.slane %v442, 2
        %vm468 = vcmask 1046534
        %v469 = vsel %vm468, %v467, %v466
        %v470 = vrot.slane %v443, 1
        %vm471 = vcmask 1047559
        %v472 = vsel %vm471, %v470, %v469
        %vm473 = vcmask 261120
        %v474 = vsel %vm473, %v472, 0
        %476 = vmatprep.subr.mxu0 0.0
        %477 = vmatpush1.msra.mxu0 %v422
        %478 = vmatprep.subr.mxu0 0.0
        %479 = vmatpush1.msra.mxu0 %v423
        %480 = vmatprep.subr.mxu0 0.0
        %481 = vmatpush1.msra.mxu0 %v424
        %482 = vmatprep.subr.mxu0 0.0
        %483 = vmatpush1.msra.mxu0 %v425
        %484 = vmatprep.subr.mxu0 0.0
        %485 = vmatpush1.msra.mxu0 0.0
        %486 = vmatprep.subr.mxu0 0.0
        %487 = vmatpush1.msra.mxu0 0.0
        %488 = vmatprep.subr.mxu0 0.0
        %489 = vmatpush1.msra.mxu0 0.0
        %490 = vmatprep.subr.mxu0 0.0
        %491 = vmatpush1.msra.mxu0 0.0
        %492 = vmatprep.subr.mxu0 0.0
        %493 = vmatpush1.msra.mxu0 0.0
        %494 = vmatprep.subr.mxu0 0.0
        %495 = vmatpush1.msra.mxu0 0.0
        %496 = vmatprep.subr.mxu0 0.0
        %497 = vmatpush1.msra.mxu0 0.0
        %498 = vmatprep.subr.mxu0 0.0
        %499 = vmatpush1.msra.mxu0 0.0
        %500 = vmatprep.subr.mxu0 0.0
        %501 = vmatpush1.msra.mxu0 0.0
        %502 = vmatprep.subr.mxu0 0.0
        %503 = vmatpush1.msra.mxu0 0.0
        %504 = vmatprep.subr.mxu0 0.0
        %505 = vmatpush1.msra.mxu0 0.0
        %506 = vmatprep.subr.mxu0 0.0
        %507 = vmatpush1.msra.mxu0 0.0
        %508 = vmatprep.subr.mxu0 0.0
        %509 = vmatpush1.msra.mxu0 0.0
        %510 = vmatprep.subr.mxu0 0.0
        %511 = vmatpush1.msra.mxu0 0.0
        %512 = vmatprep.subr.mxu0 0.0
        %513 = vmatpush1.msra.mxu0 0.0
        %514 = vmatprep.subr.mxu0 0.0
        %515 = vmatpush1.msra.mxu0 0.0
        %516 = vmatprep.subr.mxu0 0.0
        %517 = vmatpush1.msra.mxu0 0.0
        %518 = vmatprep.subr.mxu0 0.0
        %519 = vmatpush1.msra.mxu0 0.0
        %520 = vmatprep.subr.mxu0 0.0
        %521 = vmatpush1.msra.mxu0 0.0
        %522 = vmatprep.subr.mxu0 0.0
        %523 = vmatpush1.msra.mxu0 0.0
        %524 = vmatprep.subr.mxu0 0.0
        %525 = vmatpush1.msra.mxu0 0.0
        %526 = vmatprep.subr.mxu0 0.0
        %527 = vmatpush1.msra.mxu0 0.0
        %528 = vmatprep.subr.mxu0 0.0
        %529 = vmatpush1.msra.mxu0 0.0
        %530 = vmatprep.subr.mxu0 0.0
        %531 = vmatpush1.msra.mxu0 0.0
        %532 = vmatprep.subr.mxu0 0.0
        %533 = vmatpush1.msra.mxu0 0.0
        %534 = vmatprep.subr.mxu0 0.0
        %535 = vmatpush1.msra.mxu0 0.0
        %536 = vmatprep.subr.mxu0 0.0
        %537 = vmatpush1.msra.mxu0 0.0
        %538 = vmatprep.subr.mxu0 0.0
        %539 = vmatpush1.msra.mxu0 0.0
        %540 = vmatprep.mubr.f32.mxu0 0.0
        %541 = vmatmul.mubr.f32.gmra.mrb[0].mxu0 %v474
        %v542 = vpop.f32.mrb[0].mxu0
        %v543 = vadd.f32 0.0, %v542
        %v544 = vpop.f32.mrb[0].mxu0
        %545 = vdwg.mxu0
        %v546 = vsel %vm435, %v543, -inf
        %vm547 = vcmask 64512
        %v548 = vsel %vm547, %v546, -inf
        %549 = vmax.xlane.f32.xlu0 %v548
        %v550 = vpop.xlane.xlu0 %549
        %v551 = vsub.f32 %v546, %v550
        %v552 = vmul.f32 %v551, 1.442695
        %v553 = vpow.pop %v552
        %v554 = vsel %vm547, %v553, 0.0
        %555 = vadd.xlane.f32.xlu0 %v554
        %v556 = vpop.xlane.xlu0 %555
        %v557 = vrcp.pop %v556
        %v558 = vmul.f32 1.0, %v557
        %v559 = vmul.f32 %v553, %v558
        %v561 = vcombine.high %v559, %v559
        %v563 = vunpack.c.l.s4 1966171168
        %v564 = vunpack.c.0.s8 %v563
        %v565 = vlaneseq
        %v566 = vshrl.u32 %v565, 7
        %v567 = vsub.s32 %v564, %v566
        %v568 = vrot.slane %v559, %v567
        %v570 = vunpack.c.l.s4 1966171168
        %v571 = vunpack.c.0.s8 %v570
        %v572 = vlaneseq
        %v573 = vshrl.u32 %v572, 7
        %v574 = vsub.s32 %v571, %v573
        %v575 = vrot.slane %v561, %v574
        %v576 = vcombine.high %v568, %v568
        %v577 = vcombine.high %v575, %v575
        %v579 = vunpack.c.l.s4 1966171168
        %v580 = vunpack.c.0.s8 %v579
        %v581 = vlaneseq
        %v582 = vshrl.u32 %v581, 7
        %v583 = vsub.s32 %v580, %v582
        %v584 = vrot.slane %v568, %v583
        %v586 = vunpack.c.l.s4 1966171168
        %v587 = vunpack.c.0.s8 %v586
        %v588 = vlaneseq
        %v589 = vshrl.u32 %v588, 7
        %v590 = vsub.s32 %v587, %v589
        %v591 = vrot.slane %v575, %v590
        %v593 = vunpack.c.l.s4 1966171168
        %v594 = vunpack.c.0.s8 %v593
        %v595 = vlaneseq
        %v596 = vshrl.u32 %v595, 7
        %v597 = vsub.s32 %v594, %v596
        %v598 = vrot.slane %v576, %v597
        %v600 = vunpack.c.l.s4 1966171168
        %v601 = vunpack.c.0.s8 %v600
        %v602 = vlaneseq
        %v603 = vshrl.u32 %v602, 7
        %v604 = vsub.s32 %v601, %v603
        %v605 = vrot.slane %v577, %v604
        %v606 = vcombine.high %v584, %v584
        %v607 = vcombine.high %v591, %v591
        %v608 = vcombine.high %v598, %v598
        %v609 = vcombine.high %v605, %v605
        %vm618 = vcmask 57344
        %619 = vst.msk [vmem:[%s391] sm:$0x1] %vm618, %v584
        %620 = vst.msk [vmem:[%s391 + $0x4] sm:$0x1] %vm618, %v598
        %621 = vst.msk [vmem:[%s391 + $0x8] sm:$0x1] %vm618, %v606
        %622 = vst.msk [vmem:[%s391 + $0xc] sm:$0x1] %vm618, %v608
        %623 = vst.msk [vmem:[%s391 + $0x10] sm:$0x1] %vm618, %v591
        %624 = vst.msk [vmem:[%s391 + $0x14] sm:$0x1] %vm618, %v605
        %625 = vst.msk [vmem:[%s391 + $0x18] sm:$0x1] %vm618, %v607
        %626 = vst.msk [vmem:[%s391 + $0x1c] sm:$0x1] %vm618, %v609
        %v627 = vld [vmem:[%s331] sm:$0x1]
        %v628 = vld [vmem:[%s331 + $0x4] sm:$0x1]
        %v629 = vld [vmem:[%s331 + $0x8] sm:$0x1]
        %v630 = vld [vmem:[%s331 + $0xc] sm:$0x1]
        %v631 = vld [vmem:[%s331 + $0x10] sm:$0x1]
        %v632 = vld [vmem:[%s331 + $0x14] sm:$0x1]
        %v633 = vld [vmem:[%s331 + $0x18] sm:$0x1]
        %v634 = vld [vmem:[%s331 + $0x1c] sm:$0x1]
        %v643 = vrot.slane %v628, 7
        %v644 = vsel %vm453, %v643, %v627
        %v645 = vrot.slane %v629, 6
        %v646 = vsel %vm456, %v645, %v644
        %v647 = vrot.slane %v630, 5
        %v648 = vsel %vm459, %v647, %v646
        %v649 = vrot.slane %v631, 4
        %v650 = vsel %vm462, %v649, %v648
        %v651 = vrot.slane %v632, 3
        %v652 = vsel %vm465, %v651, %v650
        %v653 = vrot.slane %v633, 2
        %v654 = vsel %vm468, %v653, %v652
        %v655 = vrot.slane %v634, 1
        %v656 = vsel %vm471, %v655, %v654
        %v658 = vsel %vm547, %v559, 0
        %660 = vmatprep.subr.mxu0 0.0
        %661 = vmatpush1.msra.mxu0 %v656
        %662 = vmatprep.subr.mxu0 0.0
        %663 = vmatpush1.msra.mxu0 0.0
        %664 = vmatprep.subr.mxu0 0.0
        %665 = vmatpush1.msra.mxu0 0.0
        %666 = vmatprep.subr.mxu0 0.0
        %667 = vmatpush1.msra.mxu0 0.0
        %668 = vmatprep.subr.mxu0 0.0
        %669 = vmatpush1.msra.mxu0 0.0
        %670 = vmatprep.subr.mxu0 0.0
        %671 = vmatpush1.msra.mxu0 0.0
        %672 = vmatprep.subr.mxu0 0.0
        %673 = vmatpush1.msra.mxu0 0.0
        %674 = vmatprep.subr.mxu0 0.0
        %675 = vmatpush1.msra.mxu0 0.0
        %676 = vmatprep.subr.mxu0 0.0
        %677 = vmatpush1.msra.mxu0 0.0
        %678 = vmatprep.subr.mxu0 0.0
        %679 = vmatpush1.msra.mxu0 0.0
        %680 = vmatprep.subr.mxu0 0.0
        %681 = vmatpush1.msra.mxu0 0.0
        %682 = vmatprep.subr.mxu0 0.0
        %683 = vmatpush1.msra.mxu0 0.0
        %684 = vmatprep.subr.mxu0 0.0
        %685 = vmatpush1.msra.mxu0 0.0
        %686 = vmatprep.subr.mxu0 0.0
        %687 = vmatpush1.msra.mxu0 0.0
        %688 = vmatprep.subr.mxu0 0.0
        %689 = vmatpush1.msra.mxu0 0.0
        %690 = vmatprep.subr.mxu0 0.0
        %691 = vmatpush1.msra.mxu0 0.0
        %692 = vmatprep.subr.mxu0 0.0
        %693 = vmatpush1.msra.mxu0 0.0
        %694 = vmatprep.subr.mxu0 0.0
        %695 = vmatpush1.msra.mxu0 0.0
        %696 = vmatprep.subr.mxu0 0.0
        %697 = vmatpush1.msra.mxu0 0.0
        %698 = vmatprep.subr.mxu0 0.0
        %699 = vmatpush1.msra.mxu0 0.0
        %700 = vmatprep.subr.mxu0 0.0
        %701 = vmatpush1.msra.mxu0 0.0
        %702 = vmatprep.subr.mxu0 0.0
        %703 = vmatpush1.msra.mxu0 0.0
        %704 = vmatprep.subr.mxu0 0.0
        %705 = vmatpush1.msra.mxu0 0.0
        %706 = vmatprep.subr.mxu0 0.0
        %707 = vmatpush1.msra.mxu0 0.0
        %708 = vmatprep.subr.mxu0 0.0
        %709 = vmatpush1.msra.mxu0 0.0
        %710 = vmatprep.subr.mxu0 0.0
        %711 = vmatpush1.msra.mxu0 0.0
        %712 = vmatprep.subr.mxu0 0.0
        %713 = vmatpush1.msra.mxu0 0.0
        %714 = vmatprep.subr.mxu0 0.0
        %715 = vmatpush1.msra.mxu0 0.0
        %716 = vmatprep.subr.mxu0 0.0
        %717 = vmatpush1.msra.mxu0 0.0
        %718 = vmatprep.subr.mxu0 0.0
        %719 = vmatpush1.msra.mxu0 0.0
        %720 = vmatprep.subr.mxu0 0.0
        %721 = vmatpush1.msra.mxu0 0.0
        %722 = vmatprep.subr.mxu0 0.0
        %723 = vmatpush1.msra.mxu0 0.0
        %724 = vmatprep.mubr.f32.mxu0 0.0
        %725 = vmatmul.mubr.f32.gmra.mrb[0].mxu0 %v658
        %v726 = vpop.f32.mrb[0].mxu0
        %v727 = vadd.f32 0.0, %v726
        %v728 = vpop.f32.mrb[0].mxu0
        %729 = vdwg.mxu0
        %v731 = vcombine.high %v727, %v727
        %v733 = vunpack.c.l.s4 1966171168
        %v734 = vunpack.c.0.s8 %v733
        %v735 = vlaneseq
        %v736 = vshrl.u32 %v735, 7
        %v737 = vsub.s32 %v734, %v736
        %v738 = vrot.slane %v727, %v737
        %v740 = vunpack.c.l.s4 1966171168
        %v741 = vunpack.c.0.s8 %v740
        %v742 = vlaneseq
        %v743 = vshrl.u32 %v742, 7
        %v744 = vsub.s32 %v741, %v743
        %v745 = vrot.slane %v731, %v744
        %v746 = vcombine.high %v738, %v738
        %v747 = vcombine.high %v745, %v745
        %v749 = vunpack.c.l.s4 1966171168
        %v750 = vunpack.c.0.s8 %v749
        %v751 = vlaneseq
        %v752 = vshrl.u32 %v751, 7
        %v753 = vsub.s32 %v750, %v752
        %v754 = vrot.slane %v738, %v753
        %v756 = vunpack.c.l.s4 1966171168
        %v757 = vunpack.c.0.s8 %v756
        %v758 = vlaneseq
        %v759 = vshrl.u32 %v758, 7
        %v760 = vsub.s32 %v757, %v759
        %v761 = vrot.slane %v745, %v760
        %v763 = vunpack.c.l.s4 1966171168
        %v764 = vunpack.c.0.s8 %v763
        %v765 = vlaneseq
        %v766 = vshrl.u32 %v765, 7
        %v767 = vsub.s32 %v764, %v766
        %v768 = vrot.slane %v746, %v767
        %v770 = vunpack.c.l.s4 1966171168
        %v771 = vunpack.c.0.s8 %v770
        %v772 = vlaneseq
        %v773 = vshrl.u32 %v772, 7
        %v774 = vsub.s32 %v771, %v773
        %v775 = vrot.slane %v747, %v774
        %v776 = vcombine.high %v754, %v754
        %v777 = vcombine.high %v761, %v761
        %v778 = vcombine.high %v768, %v768
        %v779 = vcombine.high %v775, %v775
        %vm788 = vcmask 253952
        %789 = vst.msk [vmem:[%s384] sm:$0x1] %vm788, %v754
        %790 = vst.msk [vmem:[%s384 + $0x4] sm:$0x1] %vm788, %v768
        %791 = vst.msk [vmem:[%s384 + $0x8] sm:$0x1] %vm788, %v776
        %792 = vst.msk [vmem:[%s384 + $0xc] sm:$0x1] %vm788, %v778
        %793 = vst.msk [vmem:[%s384 + $0x10] sm:$0x1] %vm788, %v761
        %794 = vst.msk [vmem:[%s384 + $0x14] sm:$0x1] %vm788, %v775
        %795 = vst.msk [vmem:[%s384 + $0x18] sm:$0x1] %vm788, %v777
        %796 = vst.msk [vmem:[%s384 + $0x1c] sm:$0x1] %vm788, %v779
        %v797 = vld [vmem:[%s413 + $0x1] sm:$0x1]
        %v798 = vld [vmem:[%s413 + $0x5] sm:$0x1]
        %v799 = vld [vmem:[%s413 + $0x9] sm:$0x1]
        %v800 = vld [vmem:[%s413 + $0xd] sm:$0x1]
        %v801 = vld [vmem:[%s413 + $0x11] sm:$0x1]
        %v802 = vld [vmem:[%s413 + $0x15] sm:$0x1]
        %v803 = vld [vmem:[%s413 + $0x19] sm:$0x1]
        %v804 = vld [vmem:[%s413 + $0x1d] sm:$0x1]
        %v813 = vrot.slane %v798, 7
        %v814 = vsel %vm453, %v813, %v797
        %v815 = vrot.slane %v799, 6
        %v816 = vsel %vm456, %v815, %v814
        %v817 = vrot.slane %v800, 5
        %v818 = vsel %vm459, %v817, %v816
        %v819 = vrot.slane %v801, 4
        %v820 = vsel %vm462, %v819, %v818
        %v821 = vrot.slane %v802, 3
        %v822 = vsel %vm465, %v821, %v820
        %v823 = vrot.slane %v803, 2
        %v824 = vsel %vm468, %v823, %v822
        %v825 = vrot.slane %v804, 1
        %v826 = vsel %vm471, %v825, %v824
        %v827 = vsel %vm473, %v826, 0
        %829 = vmatprep.subr.mxu0 0.0
        %830 = vmatpush1.msra.mxu0 %v422
        %831 = vmatprep.subr.mxu0 0.0
        %832 = vmatpush1.msra.mxu0 %v423
        %833 = vmatprep.subr.mxu0 0.0
        %834 = vmatpush1.msra.mxu0 %v424
        %835 = vmatprep.subr.mxu0 0.0
        %836 = vmatpush1.msra.mxu0 %v425
        %837 = vmatprep.subr.mxu0 0.0
        %838 = vmatpush1.msra.mxu0 0.0
        %839 = vmatprep.subr.mxu0 0.0
        %840 = vmatpush1.msra.mxu0 0.0
        %841 = vmatprep.subr.mxu0 0.0
        %842 = vmatpush1.msra.mxu0 0.0
        %843 = vmatprep.subr.mxu0 0.0
        %844 = vmatpush1.msra.mxu0 0.0
        %845 = vmatprep.subr.mxu0 0.0
        %846 = vmatpush1.msra.mxu0 0.0
        %847 = vmatprep.subr.mxu0 0.0
        %848 = vmatpush1.msra.mxu0 0.0
        %849 = vmatprep.subr.mxu0 0.0
        %850 = vmatpush1.msra.mxu0 0.0
        %851 = vmatprep.subr.mxu0 0.0
        %852 = vmatpush1.msra.mxu0 0.0
        %853 = vmatprep.subr.mxu0 0.0
        %854 = vmatpush1.msra.mxu0 0.0
        %855 = vmatprep.subr.mxu0 0.0
        %856 = vmatpush1.msra.mxu0 0.0
        %857 = vmatprep.subr.mxu0 0.0
        %858 = vmatpush1.msra.mxu0 0.0
        %859 = vmatprep.subr.mxu0 0.0
        %860 = vmatpush1.msra.mxu0 0.0
        %861 = vmatprep.subr.mxu0 0.0
        %862 = vmatpush1.msra.mxu0 0.0
        %863 = vmatprep.subr.mxu0 0.0
        %864 = vmatpush1.msra.mxu0 0.0
        %865 = vmatprep.subr.mxu0 0.0
        %866 = vmatpush1.msra.mxu0 0.0
        %867 = vmatprep.subr.mxu0 0.0
        %868 = vmatpush1.msra.mxu0 0.0
        %869 = vmatprep.subr.mxu0 0.0
        %870 = vmatpush1.msra.mxu0 0.0
        %871 = vmatprep.subr.mxu0 0.0
        %872 = vmatpush1.msra.mxu0 0.0
        %873 = vmatprep.subr.mxu0 0.0
        %874 = vmatpush1.msra.mxu0 0.0
        %875 = vmatprep.subr.mxu0 0.0
        %876 = vmatpush1.msra.mxu0 0.0
        %877 = vmatprep.subr.mxu0 0.0
        %878 = vmatpush1.msra.mxu0 0.0
        %879 = vmatprep.subr.mxu0 0.0
        %880 = vmatpush1.msra.mxu0 0.0
        %881 = vmatprep.subr.mxu0 0.0
        %882 = vmatpush1.msra.mxu0 0.0
        %883 = vmatprep.subr.mxu0 0.0
        %884 = vmatpush1.msra.mxu0 0.0
        %885 = vmatprep.subr.mxu0 0.0
        %886 = vmatpush1.msra.mxu0 0.0
        %887 = vmatprep.subr.mxu0 0.0
        %888 = vmatpush1.msra.mxu0 0.0
        %889 = vmatprep.subr.mxu0 0.0
        %890 = vmatpush1.msra.mxu0 0.0
        %891 = vmatprep.subr.mxu0 0.0
        %892 = vmatpush1.msra.mxu0 0.0
        %893 = vmatprep.mubr.f32.mxu0 0.0
        %894 = vmatmul.mubr.f32.gmra.mrb[0].mxu0 %v827
        %v895 = vpop.f32.mrb[0].mxu0
        %v896 = vadd.f32 0.0, %v895
        %v897 = vpop.f32.mrb[0].mxu0
        %898 = vdwg.mxu0
        %v899 = vsel %vm435, %v896, -inf
        %v900 = vsel %vm547, %v899, -inf
        %901 = vmax.xlane.f32.xlu0 %v900
        %v902 = vpop.xlane.xlu0 %901
        %v903 = vsub.f32 %v899, %v902
        %v904 = vmul.f32 %v903, 1.442695
        %v905 = vpow.pop %v904
        %v906 = vsel %vm547, %v905, 0.0
        %907 = vadd.xlane.f32.xlu0 %v906
        %v908 = vpop.xlane.xlu0 %907
        %v909 = vrcp.pop %v908
        %v910 = vmul.f32 1.0, %v909
        %v911 = vmul.f32 %v905, %v910
        %v913 = vcombine.high %v911, %v911
        %v915 = vunpack.c.l.s4 1966171168
        %v916 = vunpack.c.0.s8 %v915
        %v917 = vlaneseq
        %v918 = vshrl.u32 %v917, 7
        %v919 = vsub.s32 %v916, %v918
        %v920 = vrot.slane %v911, %v919
        %v922 = vunpack.c.l.s4 1966171168
        %v923 = vunpack.c.0.s8 %v922
        %v924 = vlaneseq
        %v925 = vshrl.u32 %v924, 7
        %v926 = vsub.s32 %v923, %v925
        %v927 = vrot.slane %v913, %v926
        %v928 = vcombine.high %v920, %v920
        %v929 = vcombine.high %v927, %v927
        %v931 = vunpack.c.l.s4 1966171168
        %v932 = vunpack.c.0.s8 %v931
        %v933 = vlaneseq
        %v934 = vshrl.u32 %v933, 7
        %v935 = vsub.s32 %v932, %v934
        %v936 = vrot.slane %v920, %v935
        %v938 = vunpack.c.l.s4 1966171168
        %v939 = vunpack.c.0.s8 %v938
        %v940 = vlaneseq
        %v941 = vshrl.u32 %v940, 7
        %v942 = vsub.s32 %v939, %v941
        %v943 = vrot.slane %v927, %v942
        %v945 = vunpack.c.l.s4 1966171168
        %v946 = vunpack.c.0.s8 %v945
        %v947 = vlaneseq
        %v948 = vshrl.u32 %v947, 7
        %v949 = vsub.s32 %v946, %v948
        %v950 = vrot.slane %v928, %v949
        %v952 = vunpack.c.l.s4 1966171168
        %v953 = vunpack.c.0.s8 %v952
        %v954 = vlaneseq
        %v955 = vshrl.u32 %v954, 7
        %v956 = vsub.s32 %v953, %v955
        %v957 = vrot.slane %v929, %v956
        %v958 = vcombine.high %v936, %v936
        %v959 = vcombine.high %v943, %v943
        %v960 = vcombine.high %v950, %v950
        %v961 = vcombine.high %v957, %v957
        %970 = vst.msk [vmem:[%s391 + $0x1] sm:$0x1] %vm618, %v936
        %971 = vst.msk [vmem:[%s391 + $0x5] sm:$0x1] %vm618, %v950
        %972 = vst.msk [vmem:[%s391 + $0x9] sm:$0x1] %vm618, %v958
        %973 = vst.msk [vmem:[%s391 + $0xd] sm:$0x1] %vm618, %v960
        %974 = vst.msk [vmem:[%s391 + $0x11] sm:$0x1] %vm618, %v943
        %975 = vst.msk [vmem:[%s391 + $0x15] sm:$0x1] %vm618, %v957
        %976 = vst.msk [vmem:[%s391 + $0x19] sm:$0x1] %vm618, %v959
        %977 = vst.msk [vmem:[%s391 + $0x1d] sm:$0x1] %vm618, %v961
        %v978 = vld [vmem:[%s331 + $0x1] sm:$0x1]
        %v979 = vld [vmem:[%s331 + $0x5] sm:$0x1]
        %v980 = vld [vmem:[%s331 + $0x9] sm:$0x1]
        %v981 = vld [vmem:[%s331 + $0xd] sm:$0x1]
        %v982 = vld [vmem:[%s331 + $0x11] sm:$0x1]
        %v983 = vld [vmem:[%s331 + $0x15] sm:$0x1]
        %v984 = vld [vmem:[%s331 + $0x19] sm:$0x1]
        %v985 = vld [vmem:[%s331 + $0x1d] sm:$0x1]
        %v994 = vrot.slane %v979, 7
        %v995 = vsel %vm453, %v994, %v978
        %v996 = vrot.slane %v980, 6
        %v997 = vsel %vm456, %v996, %v995
        %v998 = vrot.slane %v981, 5
        %v999 = vsel %vm459, %v998, %v997
        %v1000 = vrot.slane %v982, 4
        %v1001 = vsel %vm462, %v1000, %v999
        %v1002 = vrot.slane %v983, 3
        %v1003 = vsel %vm465, %v1002, %v1001
        %v1004 = vrot.slane %v984, 2
        %v1005 = vsel %vm468, %v1004, %v1003
        %v1006 = vrot.slane %v985, 1
        %v1007 = vsel %vm471, %v1006, %v1005
        %v1009 = vsel %vm547, %v911, 0
        %1011 = vmatprep.subr.mxu0 0.0
        %1012 = vmatpush1.msra.mxu0 %v1007
        %1013 = vmatprep.subr.mxu0 0.0
        %1014 = vmatpush1.msra.mxu0 0.0
        %1015 = vmatprep.subr.mxu0 0.0
        %1016 = vmatpush1.msra.mxu0 0.0
        %1017 = vmatprep.subr.mxu0 0.0
        %1018 = vmatpush1.msra.mxu0 0.0
        %1019 = vmatprep.subr.mxu0 0.0
        %1020 = vmatpush1.msra.mxu0 0.0
        %1021 = vmatprep.subr.mxu0 0.0
        %1022 = vmatpush1.msra.mxu0 0.0
        %1023 = vmatprep.subr.mxu0 0.0
        %1024 = vmatpush1.msra.mxu0 0.0
        %1025 = vmatprep.subr.mxu0 0.0
        %1026 = vmatpush1.msra.mxu0 0.0
        %1027 = vmatprep.subr.mxu0 0.0
        %1028 = vmatpush1.msra.mxu0 0.0
        %1029 = vmatprep.subr.mxu0 0.0
        %1030 = vmatpush1.msra.mxu0 0.0
        %1031 = vmatprep.subr.mxu0 0.0
        %1032 = vmatpush1.msra.mxu0 0.0
        %1033 = vmatprep.subr.mxu0 0.0
        %1034 = vmatpush1.msra.mxu0 0.0
        %1035 = vmatprep.subr.mxu0 0.0
        %1036 = vmatpush1.msra.mxu0 0.0
        %1037 = vmatprep.subr.mxu0 0.0
        %1038 = vmatpush1.msra.mxu0 0.0
        %1039 = vmatprep.subr.mxu0 0.0
        %1040 = vmatpush1.msra.mxu0 0.0
        %1041 = vmatprep.subr.mxu0 0.0
        %1042 = vmatpush1.msra.mxu0 0.0
        %1043 = vmatprep.subr.mxu0 0.0
        %1044 = vmatpush1.msra.mxu0 0.0
        %1045 = vmatprep.subr.mxu0 0.0
        %1046 = vmatpush1.msra.mxu0 0.0
        %1047 = vmatprep.subr.mxu0 0.0
        %1048 = vmatpush1.msra.mxu0 0.0
        %1049 = vmatprep.subr.mxu0 0.0
        %1050 = vmatpush1.msra.mxu0 0.0
        %1051 = vmatprep.subr.mxu0 0.0
        %1052 = vmatpush1.msra.mxu0 0.0
        %1053 = vmatprep.subr.mxu0 0.0
        %1054 = vmatpush1.msra.mxu0 0.0
        %1055 = vmatprep.subr.mxu0 0.0
        %1056 = vmatpush1.msra.mxu0 0.0
        %1057 = vmatprep.subr.mxu0 0.0
        %1058 = vmatpush1.msra.mxu0 0.0
        %1059 = vmatprep.subr.mxu0 0.0
        %1060 = vmatpush1.msra.mxu0 0.0
        %1061 = vmatprep.subr.mxu0 0.0
        %1062 = vmatpush1.msra.mxu0 0.0
        %1063 = vmatprep.subr.mxu0 0.0
        %1064 = vmatpush1.msra.mxu0 0.0
        %1065 = vmatprep.subr.mxu0 0.0
        %1066 = vmatpush1.msra.mxu0 0.0
        %1067 = vmatprep.subr.mxu0 0.0
        %1068 = vmatpush1.msra.mxu0 0.0
        %1069 = vmatprep.subr.mxu0 0.0
        %1070 = vmatpush1.msra.mxu0 0.0
        %1071 = vmatprep.subr.mxu0 0.0
        %1072 = vmatpush1.msra.mxu0 0.0
        %1073 = vmatprep.subr.mxu0 0.0
        %1074 = vmatpush1.msra.mxu0 0.0
        %1075 = vmatprep.mubr.f32.mxu0 0.0
        %1076 = vmatmul.mubr.f32.gmra.mrb[0].mxu0 %v1009
        %v1077 = vpop.f32.mrb[0].mxu0
        %v1078 = vadd.f32 0.0, %v1077
        %v1079 = vpop.f32.mrb[0].mxu0
        %1080 = vdwg.mxu0
        %v1082 = vcombine.high %v1078, %v1078
        %v1084 = vunpack.c.l.s4 1966171168
        %v1085 = vunpack.c.0.s8 %v1084
        %v1086 = vlaneseq
        %v1087 = vshrl.u32 %v1086, 7
        %v1088 = vsub.s32 %v1085, %v1087
        %v1089 = vrot.slane %v1078, %v1088
        %v1091 = vunpack.c.l.s4 1966171168
        %v1092 = vunpack.c.0.s8 %v1091
        %v1093 = vlaneseq
        %v1094 = vshrl.u32 %v1093, 7
        %v1095 = vsub.s32 %v1092, %v1094
        %v1096 = vrot.slane %v1082, %v1095
        %v1097 = vcombine.high %v1089, %v1089
        %v1098 = vcombine.high %v1096, %v1096
        %v1100 = vunpack.c.l.s4 1966171168
        %v1101 = vunpack.c.0.s8 %v1100
        %v1102 = vlaneseq
        %v1103 = vshrl.u32 %v1102, 7
        %v1104 = vsub.s32 %v1101, %v1103
        %v1105 = vrot.slane %v1089, %v1104
        %v1107 = vunpack.c.l.s4 1966171168
        %v1108 = vunpack.c.0.s8 %v1107
        %v1109 = vlaneseq
        %v1110 = vshrl.u32 %v1109, 7
        %v1111 = vsub.s32 %v1108, %v1110
        %v1112 = vrot.slane %v1096, %v1111
        %v1114 = vunpack.c.l.s4 1966171168
        %v1115 = vunpack.c.0.s8 %v1114
        %v1116 = vlaneseq
        %v1117 = vshrl.u32 %v1116, 7
        %v1118 = vsub.s32 %v1115, %v1117
        %v1119 = vrot.slane %v1097, %v1118
        %v1121 = vunpack.c.l.s4 1966171168
        %v1122 = vunpack.c.0.s8 %v1121
        %v1123 = vlaneseq
        %v1124 = vshrl.u32 %v1123, 7
        %v1125 = vsub.s32 %v1122, %v1124
        %v1126 = vrot.slane %v1098, %v1125
        %v1127 = vcombine.high %v1105, %v1105
        %v1128 = vcombine.high %v1112, %v1112
        %v1129 = vcombine.high %v1119, %v1119
        %v1130 = vcombine.high %v1126, %v1126
        %1139 = vst.msk [vmem:[%s384 + $0x1] sm:$0x1] %vm788, %v1105
        %1140 = vst.msk [vmem:[%s384 + $0x5] sm:$0x1] %vm788, %v1119
        %1141 = vst.msk [vmem:[%s384 + $0x9] sm:$0x1] %vm788, %v1127
        %1142 = vst.msk [vmem:[%s384 + $0xd] sm:$0x1] %vm788, %v1129
        %1143 = vst.msk [vmem:[%s384 + $0x11] sm:$0x1] %vm788, %v1112
        %1144 = vst.msk [vmem:[%s384 + $0x15] sm:$0x1] %vm788, %v1126
        %1145 = vst.msk [vmem:[%s384 + $0x19] sm:$0x1] %vm788, %v1128
        %1146 = vst.msk [vmem:[%s384 + $0x1d] sm:$0x1] %vm788, %v1130
        %v1147 = vld [vmem:[%s413 + $0x2] sm:$0x1]
        %v1148 = vld [vmem:[%s413 + $0x6] sm:$0x1]
        %v1149 = vld [vmem:[%s413 + $0xa] sm:$0x1]
        %v1150 = vld [vmem:[%s413 + $0xe] sm:$0x1]
        %v1151 = vld [vmem:[%s413 + $0x12] sm:$0x1]
        %v1152 = vld [vmem:[%s413 + $0x16] sm:$0x1]
        %v1153 = vld [vmem:[%s413 + $0x1a] sm:$0x1]
        %v1154 = vld [vmem:[%s413 + $0x1e] sm:$0x1]
        %v1163 = vrot.slane %v1148, 7
        %v1164 = vsel %vm453, %v1163, %v1147
        %v1165 = vrot.slane %v1149, 6
        %v1166 = vsel %vm456, %v1165, %v1164
        %v1167 = vrot.slane %v1150, 5
        %v1168 = vsel %vm459, %v1167, %v1166
        %v1169 = vrot.slane %v1151, 4
        %v1170 = vsel %vm462, %v1169, %v1168
        %v1171 = vrot.slane %v1152, 3
        %v1172 = vsel %vm465, %v1171, %v1170
        %v1173 = vrot.slane %v1153, 2
        %v1174 = vsel %vm468, %v1173, %v1172
        %v1175 = vrot.slane %v1154, 1
        %v1176 = vsel %vm471, %v1175, %v1174
        %v1177 = vsel %vm473, %v1176, 0
        %1179 = vmatprep.subr.mxu0 0.0
        %1180 = vmatpush1.msra.mxu0 %v422
        %1181 = vmatprep.subr.mxu0 0.0
        %1182 = vmatpush1.msra.mxu0 %v423
        %1183 = vmatprep.subr.mxu0 0.0
        %1184 = vmatpush1.msra.mxu0 %v424
        %1185 = vmatprep.subr.mxu0 0.0
        %1186 = vmatpush1.msra.mxu0 %v425
        %1187 = vmatprep.subr.mxu0 0.0
        %1188 = vmatpush1.msra.mxu0 0.0
        %1189 = vmatprep.subr.mxu0 0.0
        %1190 = vmatpush1.msra.mxu0 0.0
        %1191 = vmatprep.subr.mxu0 0.0
        %1192 = vmatpush1.msra.mxu0 0.0
        %1193 = vmatprep.subr.mxu0 0.0
        %1194 = vmatpush1.msra.mxu0 0.0
        %1195 = vmatprep.subr.mxu0 0.0
        %1196 = vmatpush1.msra.mxu0 0.0
        %1197 = vmatprep.subr.mxu0 0.0
        %1198 = vmatpush1.msra.mxu0 0.0
        %1199 = vmatprep.subr.mxu0 0.0
        %1200 = vmatpush1.msra.mxu0 0.0
        %1201 = vmatprep.subr.mxu0 0.0
        %1202 = vmatpush1.msra.mxu0 0.0
        %1203 = vmatprep.subr.mxu0 0.0
        %1204 = vmatpush1.msra.mxu0 0.0
        %1205 = vmatprep.subr.mxu0 0.0
        %1206 = vmatpush1.msra.mxu0 0.0
        %1207 = vmatprep.subr.mxu0 0.0
        %1208 = vmatpush1.msra.mxu0 0.0
        %1209 = vmatprep.subr.mxu0 0.0
        %1210 = vmatpush1.msra.mxu0 0.0
        %1211 = vmatprep.subr.mxu0 0.0
        %1212 = vmatpush1.msra.mxu0 0.0
        %1213 = vmatprep.subr.mxu0 0.0
        %1214 = vmatpush1.msra.mxu0 0.0
        %1215 = vmatprep.subr.mxu0 0.0
        %1216 = vmatpush1.msra.mxu0 0.0
        %1217 = vmatprep.subr.mxu0 0.0
        %1218 = vmatpush1.msra.mxu0 0.0
        %1219 = vmatprep.subr.mxu0 0.0
        %1220 = vmatpush1.msra.mxu0 0.0
        %1221 = vmatprep.subr.mxu0 0.0
        %1222 = vmatpush1.msra.mxu0 0.0
        %1223 = vmatprep.subr.mxu0 0.0
        %1224 = vmatpush1.msra.mxu0 0.0
        %1225 = vmatprep.subr.mxu0 0.0
        %1226 = vmatpush1.msra.mxu0 0.0
        %1227 = vmatprep.subr.mxu0 0.0
        %1228 = vmatpush1.msra.mxu0 0.0
        %1229 = vmatprep.subr.mxu0 0.0
        %1230 = vmatpush1.msra.mxu0 0.0
        %1231 = vmatprep.subr.mxu0 0.0
        %1232 = vmatpush1.msra.mxu0 0.0
        %1233 = vmatprep.subr.mxu0 0.0
        %1234 = vmatpush1.msra.mxu0 0.0
        %1235 = vmatprep.subr.mxu0 0.0
        %1236 = vmatpush1.msra.mxu0 0.0
        %1237 = vmatprep.subr.mxu0 0.0
        %1238 = vmatpush1.msra.mxu0 0.0
        %1239 = vmatprep.subr.mxu0 0.0
        %1240 = vmatpush1.msra.mxu0 0.0
        %1241 = vmatprep.subr.mxu0 0.0
        %1242 = vmatpush1.msra.mxu0 0.0
        %1243 = vmatprep.mubr.f32.mxu0 0.0
        %1244 = vmatmul.mubr.f32.gmra.mrb[0].mxu0 %v1177
        %v1245 = vpop.f32.mrb[0].mxu0
        %v1246 = vadd.f32 0.0, %v1245
        %v1247 = vpop.f32.mrb[0].mxu0
        %1248 = vdwg.mxu0
        %v1249 = vsel %vm435, %v1246, -inf
        %v1250 = vsel %vm547, %v1249, -inf
        %1251 = vmax.xlane.f32.xlu0 %v1250
        %v1252 = vpop.xlane.xlu0 %1251
        %v1253 = vsub.f32 %v1249, %v1252
        %v1254 = vmul.f32 %v1253, 1.442695
        %v1255 = vpow.pop %v1254
        %v1256 = vsel %vm547, %v1255, 0.0
        %1257 = vadd.xlane.f32.xlu0 %v1256
        %v1258 = vpop.xlane.xlu0 %1257
        %v1259 = vrcp.pop %v1258
        %v1260 = vmul.f32 1.0, %v1259
        %v1261 = vmul.f32 %v1255, %v1260
        %v1263 = vcombine.high %v1261, %v1261
        %v1265 = vunpack.c.l.s4 1966171168
        %v1266 = vunpack.c.0.s8 %v1265
        %v1267 = vlaneseq
        %v1268 = vshrl.u32 %v1267, 7
        %v1269 = vsub.s32 %v1266, %v1268
        %v1270 = vrot.slane %v1261, %v1269
        %v1272 = vunpack.c.l.s4 1966171168
        %v1273 = vunpack.c.0.s8 %v1272
        %v1274 = vlaneseq
        %v1275 = vshrl.u32 %v1274, 7
        %v1276 = vsub.s32 %v1273, %v1275
        %v1277 = vrot.slane %v1263, %v1276
        %v1278 = vcombine.high %v1270, %v1270
        %v1279 = vcombine.high %v1277, %v1277
        %v1281 = vunpack.c.l.s4 1966171168
        %v1282 = vunpack.c.0.s8 %v1281
        %v1283 = vlaneseq
        %v1284 = vshrl.u32 %v1283, 7
        %v1285 = vsub.s32 %v1282, %v1284
        %v1286 = vrot.slane %v1270, %v1285
        %v1288 = vunpack.c.l.s4 1966171168
        %v1289 = vunpack.c.0.s8 %v1288
        %v1290 = vlaneseq
        %v1291 = vshrl.u32 %v1290, 7
        %v1292 = vsub.s32 %v1289, %v1291
        %v1293 = vrot.slane %v1277, %v1292
        %v1295 = vunpack.c.l.s4 1966171168
        %v1296 = vunpack.c.0.s8 %v1295
        %v1297 = vlaneseq
        %v1298 = vshrl.u32 %v1297, 7
        %v1299 = vsub.s32 %v1296, %v1298
        %v1300 = vrot.slane %v1278, %v1299
        %v1302 = vunpack.c.l.s4 1966171168
        %v1303 = vunpack.c.0.s8 %v1302
        %v1304 = vlaneseq
        %v1305 = vshrl.u32 %v1304, 7
        %v1306 = vsub.s32 %v1303, %v1305
        %v1307 = vrot.slane %v1279, %v1306
        %v1308 = vcombine.high %v1286, %v1286
        %v1309 = vcombine.high %v1293, %v1293
        %v1310 = vcombine.high %v1300, %v1300
        %v1311 = vcombine.high %v1307, %v1307
        %1320 = vst.msk [vmem:[%s391 + $0x2] sm:$0x1] %vm618, %v1286
        %1321 = vst.msk [vmem:[%s391 + $0x6] sm:$0x1] %vm618, %v1300
        %1322 = vst.msk [vmem:[%s391 + $0xa] sm:$0x1] %vm618, %v1308
        %1323 = vst.msk [vmem:[%s391 + $0xe] sm:$0x1] %vm618, %v1310
        %1324 = vst.msk [vmem:[%s391 + $0x12] sm:$0x1] %vm618, %v1293
        %1325 = vst.msk [vmem:[%s391 + $0x16] sm:$0x1] %vm618, %v1307
        %1326 = vst.msk [vmem:[%s391 + $0x1a] sm:$0x1] %vm618, %v1309
        %1327 = vst.msk [vmem:[%s391 + $0x1e] sm:$0x1] %vm618, %v1311
        %v1328 = vld [vmem:[%s331 + $0x2] sm:$0x1]
        %v1329 = vld [vmem:[%s331 + $0x6] sm:$0x1]
        %v1330 = vld [vmem:[%s331 + $0xa] sm:$0x1]
        %v1331 = vld [vmem:[%s331 + $0xe] sm:$0x1]
        %v1332 = vld [vmem:[%s331 + $0x12] sm:$0x1]
        %v1333 = vld [vmem:[%s331 + $0x16] sm:$0x1]
        %v1334 = vld [vmem:[%s331 + $0x1a] sm:$0x1]
        %v1335 = vld [vmem:[%s331 + $0x1e] sm:$0x1]
        %v1344 = vrot.slane %v1329, 7
        %v1345 = vsel %vm453, %v1344, %v1328
        %v1346 = vrot.slane %v1330, 6
        %v1347 = vsel %vm456, %v1346, %v1345
        %v1348 = vrot.slane %v1331, 5
        %v1349 = vsel %vm459, %v1348, %v1347
        %v1350 = vrot.slane %v1332, 4
        %v1351 = vsel %vm462, %v1350, %v1349
        %v1352 = vrot.slane %v1333, 3
        %v1353 = vsel %vm465, %v1352, %v1351
        %v1354 = vrot.slane %v1334, 2
        %v1355 = vsel %vm468, %v1354, %v1353
        %v1356 = vrot.slane %v1335, 1
        %v1357 = vsel %vm471, %v1356, %v1355
        %v1359 = vsel %vm547, %v1261, 0
        %1361 = vmatprep.subr.mxu0 0.0
        %1362 = vmatpush1.msra.mxu0 %v1357
        %1363 = vmatprep.subr.mxu0 0.0
        %1364 = vmatpush1.msra.mxu0 0.0
        %1365 = vmatprep.subr.mxu0 0.0
        %1366 = vmatpush1.msra.mxu0 0.0
        %1367 = vmatprep.subr.mxu0 0.0
        %1368 = vmatpush1.msra.mxu0 0.0
        %1369 = vmatprep.subr.mxu0 0.0
        %1370 = vmatpush1.msra.mxu0 0.0
        %1371 = vmatprep.subr.mxu0 0.0
        %1372 = vmatpush1.msra.mxu0 0.0
        %1373 = vmatprep.subr.mxu0 0.0
        %1374 = vmatpush1.msra.mxu0 0.0
        %1375 = vmatprep.subr.mxu0 0.0
        %1376 = vmatpush1.msra.mxu0 0.0
        %1377 = vmatprep.subr.mxu0 0.0
        %1378 = vmatpush1.msra.mxu0 0.0
        %1379 = vmatprep.subr.mxu0 0.0
        %1380 = vmatpush1.msra.mxu0 0.0
        %1381 = vmatprep.subr.mxu0 0.0
        %1382 = vmatpush1.msra.mxu0 0.0
        %1383 = vmatprep.subr.mxu0 0.0
        %1384 = vmatpush1.msra.mxu0 0.0
        %1385 = vmatprep.subr.mxu0 0.0
        %1386 = vmatpush1.msra.mxu0 0.0
        %1387 = vmatprep.subr.mxu0 0.0
        %1388 = vmatpush1.msra.mxu0 0.0
        %1389 = vmatprep.subr.mxu0 0.0
        %1390 = vmatpush1.msra.mxu0 0.0
        %1391 = vmatprep.subr.mxu0 0.0
        %1392 = vmatpush1.msra.mxu0 0.0
        %1393 = vmatprep.subr.mxu0 0.0
        %1394 = vmatpush1.msra.mxu0 0.0
        %1395 = vmatprep.subr.mxu0 0.0
        %1396 = vmatpush1.msra.mxu0 0.0
        %1397 = vmatprep.subr.mxu0 0.0
        %1398 = vmatpush1.msra.mxu0 0.0
        %1399 = vmatprep.subr.mxu0 0.0
        %1400 = vmatpush1.msra.mxu0 0.0
        %1401 = vmatprep.subr.mxu0 0.0
        %1402 = vmatpush1.msra.mxu0 0.0
        %1403 = vmatprep.subr.mxu0 0.0
        %1404 = vmatpush1.msra.mxu0 0.0
        %1405 = vmatprep.subr.mxu0 0.0
        %1406 = vmatpush1.msra.mxu0 0.0
        %1407 = vmatprep.subr.mxu0 0.0
        %1408 = vmatpush1.msra.mxu0 0.0
        %1409 = vmatprep.subr.mxu0 0.0
        %1410 = vmatpush1.msra.mxu0 0.0
        %1411 = vmatprep.subr.mxu0 0.0
        %1412 = vmatpush1.msra.mxu0 0.0
        %1413 = vmatprep.subr.mxu0 0.0
        %1414 = vmatpush1.msra.mxu0 0.0
        %1415 = vmatprep.subr.mxu0 0.0
        %1416 = vmatpush1.msra.mxu0 0.0
        %1417 = vmatprep.subr.mxu0 0.0
        %1418 = vmatpush1.msra.mxu0 0.0
        %1419 = vmatprep.subr.mxu0 0.0
        %1420 = vmatpush1.msra.mxu0 0.0
        %1421 = vmatprep.subr.mxu0 0.0
        %1422 = vmatpush1.msra.mxu0 0.0
        %1423 = vmatprep.subr.mxu0 0.0
        %1424 = vmatpush1.msra.mxu0 0.0
        %1425 = vmatprep.mubr.f32.mxu0 0.0
        %1426 = vmatmul.mubr.f32.gmra.mrb[0].mxu0 %v1359
        %v1427 = vpop.f32.mrb[0].mxu0
        %v1428 = vadd.f32 0.0, %v1427
        %v1429 = vpop.f32.mrb[0].mxu0
        %1430 = vdwg.mxu0
        %v1432 = vcombine.high %v1428, %v1428
        %v1434 = vunpack.c.l.s4 1966171168
        %v1435 = vunpack.c.0.s8 %v1434
        %v1436 = vlaneseq
        %v1437 = vshrl.u32 %v1436, 7
        %v1438 = vsub.s32 %v1435, %v1437
        %v1439 = vrot.slane %v1428, %v1438
        %v1441 = vunpack.c.l.s4 1966171168
        %v1442 = vunpack.c.0.s8 %v1441
        %v1443 = vlaneseq
        %v1444 = vshrl.u32 %v1443, 7
        %v1445 = vsub.s32 %v1442, %v1444
        %v1446 = vrot.slane %v1432, %v1445
        %v1447 = vcombine.high %v1439, %v1439
        %v1448 = vcombine.high %v1446, %v1446
        %v1450 = vunpack.c.l.s4 1966171168
        %v1451 = vunpack.c.0.s8 %v1450
        %v1452 = vlaneseq
        %v1453 = vshrl.u32 %v1452, 7
        %v1454 = vsub.s32 %v1451, %v1453
        %v1455 = vrot.slane %v1439, %v1454
        %v1457 = vunpack.c.l.s4 1966171168
        %v1458 = vunpack.c.0.s8 %v1457
        %v1459 = vlaneseq
        %v1460 = vshrl.u32 %v1459, 7
        %v1461 = vsub.s32 %v1458, %v1460
        %v1462 = vrot.slane %v1446, %v1461
        %v1464 = vunpack.c.l.s4 1966171168
        %v1465 = vunpack.c.0.s8 %v1464
        %v1466 = vlaneseq
        %v1467 = vshrl.u32 %v1466, 7
        %v1468 = vsub.s32 %v1465, %v1467
        %v1469 = vrot.slane %v1447, %v1468
        %v1471 = vunpack.c.l.s4 1966171168
        %v1472 = vunpack.c.0.s8 %v1471
        %v1473 = vlaneseq
        %v1474 = vshrl.u32 %v1473, 7
        %v1475 = vsub.s32 %v1472, %v1474
        %v1476 = vrot.slane %v1448, %v1475
        %v1477 = vcombine.high %v1455, %v1455
        %v1478 = vcombine.high %v1462, %v1462
        %v1479 = vcombine.high %v1469, %v1469
        %v1480 = vcombine.high %v1476, %v1476
        %1489 = vst.msk [vmem:[%s384 + $0x2] sm:$0x1] %vm788, %v1455
        %1490 = vst.msk [vmem:[%s384 + $0x6] sm:$0x1] %vm788, %v1469
        %1491 = vst.msk [vmem:[%s384 + $0xa] sm:$0x1] %vm788, %v1477
        %1492 = vst.msk [vmem:[%s384 + $0xe] sm:$0x1] %vm788, %v1479
        %1493 = vst.msk [vmem:[%s384 + $0x12] sm:$0x1] %vm788, %v1462
        %1494 = vst.msk [vmem:[%s384 + $0x16] sm:$0x1] %vm788, %v1476
        %1495 = vst.msk [vmem:[%s384 + $0x1a] sm:$0x1] %vm788, %v1478
        %1496 = vst.msk [vmem:[%s384 + $0x1e] sm:$0x1] %vm788, %v1480
        %v1497 = vld [vmem:[%s413 + $0x3] sm:$0x1]
        %v1498 = vld [vmem:[%s413 + $0x7] sm:$0x1]
        %v1499 = vld [vmem:[%s413 + $0xb] sm:$0x1]
        %v1500 = vld [vmem:[%s413 + $0xf] sm:$0x1]
        %v1501 = vld [vmem:[%s413 + $0x13] sm:$0x1]
        %v1502 = vld [vmem:[%s413 + $0x17] sm:$0x1]
        %v1503 = vld [vmem:[%s413 + $0x1b] sm:$0x1]
        %v1504 = vld [vmem:[%s413 + $0x1f] sm:$0x1]
        %v1513 = vrot.slane %v1498, 7
        %v1514 = vsel %vm453, %v1513, %v1497
        %v1515 = vrot.slane %v1499, 6
        %v1516 = vsel %vm456, %v1515, %v1514
        %v1517 = vrot.slane %v1500, 5
        %v1518 = vsel %vm459, %v1517, %v1516
        %v1519 = vrot.slane %v1501, 4
        %v1520 = vsel %vm462, %v1519, %v1518
        %v1521 = vrot.slane %v1502, 3
        %v1522 = vsel %vm465, %v1521, %v1520
        %v1523 = vrot.slane %v1503, 2
        %v1524 = vsel %vm468, %v1523, %v1522
        %v1525 = vrot.slane %v1504, 1
        %v1526 = vsel %vm471, %v1525, %v1524
        %v1527 = vsel %vm473, %v1526, 0
        %1529 = vmatprep.subr.mxu0 0.0
        %1530 = vmatpush1.msra.mxu0 %v422
        %1531 = vmatprep.subr.mxu0 0.0
        %1532 = vmatpush1.msra.mxu0 %v423
        %1533 = vmatprep.subr.mxu0 0.0
        %1534 = vmatpush1.msra.mxu0 %v424
        %1535 = vmatprep.subr.mxu0 0.0
        %1536 = vmatpush1.msra.mxu0 %v425
        %1537 = vmatprep.subr.mxu0 0.0
        %1538 = vmatpush1.msra.mxu0 0.0
        %1539 = vmatprep.subr.mxu0 0.0
        %1540 = vmatpush1.msra.mxu0 0.0
        %1541 = vmatprep.subr.mxu0 0.0
        %1542 = vmatpush1.msra.mxu0 0.0
        %1543 = vmatprep.subr.mxu0 0.0
        %1544 = vmatpush1.msra.mxu0 0.0
        %1545 = vmatprep.subr.mxu0 0.0
        %1546 = vmatpush1.msra.mxu0 0.0
        %1547 = vmatprep.subr.mxu0 0.0
        %1548 = vmatpush1.msra.mxu0 0.0
        %1549 = vmatprep.subr.mxu0 0.0
        %1550 = vmatpush1.msra.mxu0 0.0
        %1551 = vmatprep.subr.mxu0 0.0
        %1552 = vmatpush1.msra.mxu0 0.0
        %1553 = vmatprep.subr.mxu0 0.0
        %1554 = vmatpush1.msra.mxu0 0.0
        %1555 = vmatprep.subr.mxu0 0.0
        %1556 = vmatpush1.msra.mxu0 0.0
        %1557 = vmatprep.subr.mxu0 0.0
        %1558 = vmatpush1.msra.mxu0 0.0
        %1559 = vmatprep.subr.mxu0 0.0
        %1560 = vmatpush1.msra.mxu0 0.0
        %1561 = vmatprep.subr.mxu0 0.0
        %1562 = vmatpush1.msra.mxu0 0.0
        %1563 = vmatprep.subr.mxu0 0.0
        %1564 = vmatpush1.msra.mxu0 0.0
        %1565 = vmatprep.subr.mxu0 0.0
        %1566 = vmatpush1.msra.mxu0 0.0
        %1567 = vmatprep.subr.mxu0 0.0
        %1568 = vmatpush1.msra.mxu0 0.0
        %1569 = vmatprep.subr.mxu0 0.0
        %1570 = vmatpush1.msra.mxu0 0.0
        %1571 = vmatprep.subr.mxu0 0.0
        %1572 = vmatpush1.msra.mxu0 0.0
        %1573 = vmatprep.subr.mxu0 0.0
        %1574 = vmatpush1.msra.mxu0 0.0
        %1575 = vmatprep.subr.mxu0 0.0
        %1576 = vmatpush1.msra.mxu0 0.0
        %1577 = vmatprep.subr.mxu0 0.0
        %1578 = vmatpush1.msra.mxu0 0.0
        %1579 = vmatprep.subr.mxu0 0.0
        %1580 = vmatpush1.msra.mxu0 0.0
        %1581 = vmatprep.subr.mxu0 0.0
        %1582 = vmatpush1.msra.mxu0 0.0
        %1583 = vmatprep.subr.mxu0 0.0
        %1584 = vmatpush1.msra.mxu0 0.0
        %1585 = vmatprep.subr.mxu0 0.0
        %1586 = vmatpush1.msra.mxu0 0.0
        %1587 = vmatprep.subr.mxu0 0.0
        %1588 = vmatpush1.msra.mxu0 0.0
        %1589 = vmatprep.subr.mxu0 0.0
        %1590 = vmatpush1.msra.mxu0 0.0
        %1591 = vmatprep.subr.mxu0 0.0
        %1592 = vmatpush1.msra.mxu0 0.0
        %1593 = vmatprep.mubr.f32.mxu0 0.0
        %1594 = vmatmul.mubr.f32.gmra.mrb[0].mxu0 %v1527
        %v1595 = vpop.f32.mrb[0].mxu0
        %v1596 = vadd.f32 0.0, %v1595
        %v1597 = vpop.f32.mrb[0].mxu0
        %1598 = vdwg.mxu0
        %v1599 = vsel %vm435, %v1596, -inf
        %v1600 = vsel %vm547, %v1599, -inf
        %1601 = vmax.xlane.f32.xlu0 %v1600
        %v1602 = vpop.xlane.xlu0 %1601
        %v1603 = vsub.f32 %v1599, %v1602
        %v1604 = vmul.f32 %v1603, 1.442695
        %v1605 = vpow.pop %v1604
        %v1606 = vsel %vm547, %v1605, 0.0
        %1607 = vadd.xlane.f32.xlu0 %v1606
        %v1608 = vpop.xlane.xlu0 %1607
        %v1609 = vrcp.pop %v1608
        %v1610 = vmul.f32 1.0, %v1609
        %v1611 = vmul.f32 %v1605, %v1610
        %v1613 = vcombine.high %v1611, %v1611
        %v1615 = vunpack.c.l.s4 1966171168
        %v1616 = vunpack.c.0.s8 %v1615
        %v1617 = vlaneseq
        %v1618 = vshrl.u32 %v1617, 7
        %v1619 = vsub.s32 %v1616, %v1618
        %v1620 = vrot.slane %v1611, %v1619
        %v1622 = vunpack.c.l.s4 1966171168
        %v1623 = vunpack.c.0.s8 %v1622
        %v1624 = vlaneseq
        %v1625 = vshrl.u32 %v1624, 7
        %v1626 = vsub.s32 %v1623, %v1625
        %v1627 = vrot.slane %v1613, %v1626
        %v1628 = vcombine.high %v1620, %v1620
        %v1629 = vcombine.high %v1627, %v1627
        %v1631 = vunpack.c.l.s4 1966171168
        %v1632 = vunpack.c.0.s8 %v1631
        %v1633 = vlaneseq
        %v1634 = vshrl.u32 %v1633, 7
        %v1635 = vsub.s32 %v1632, %v1634
        %v1636 = vrot.slane %v1620, %v1635
        %v1638 = vunpack.c.l.s4 1966171168
        %v1639 = vunpack.c.0.s8 %v1638
        %v1640 = vlaneseq
        %v1641 = vshrl.u32 %v1640, 7
        %v1642 = vsub.s32 %v1639, %v1641
        %v1643 = vrot.slane %v1627, %v1642
        %v1645 = vunpack.c.l.s4 1966171168
        %v1646 = vunpack.c.0.s8 %v1645
        %v1647 = vlaneseq
        %v1648 = vshrl.u32 %v1647, 7
        %v1649 = vsub.s32 %v1646, %v1648
        %v1650 = vrot.slane %v1628, %v1649
        %v1652 = vunpack.c.l.s4 1966171168
        %v1653 = vunpack.c.0.s8 %v1652
        %v1654 = vlaneseq
        %v1655 = vshrl.u32 %v1654, 7
        %v1656 = vsub.s32 %v1653, %v1655
        %v1657 = vrot.slane %v1629, %v1656
        %v1658 = vcombine.high %v1636, %v1636
        %v1659 = vcombine.high %v1643, %v1643
        %v1660 = vcombine.high %v1650, %v1650
        %v1661 = vcombine.high %v1657, %v1657
        %1670 = vst.msk [vmem:[%s391 + $0x3] sm:$0x1] %vm618, %v1636
        %1671 = vst.msk [vmem:[%s391 + $0x7] sm:$0x1] %vm618, %v1650
        %1672 = vst.msk [vmem:[%s391 + $0xb] sm:$0x1] %vm618, %v1658
        %1673 = vst.msk [vmem:[%s391 + $0xf] sm:$0x1] %vm618, %v1660
        %1674 = vst.msk [vmem:[%s391 + $0x13] sm:$0x1] %vm618, %v1643
        %1675 = vst.msk [vmem:[%s391 + $0x17] sm:$0x1] %vm618, %v1657
        %1676 = vst.msk [vmem:[%s391 + $0x1b] sm:$0x1] %vm618, %v1659
        %1677 = vst.msk [vmem:[%s391 + $0x1f] sm:$0x1] %vm618, %v1661
        %v1678 = vld [vmem:[%s331 + $0x3] sm:$0x1]
        %v1679 = vld [vmem:[%s331 + $0x7] sm:$0x1]
        %v1680 = vld [vmem:[%s331 + $0xb] sm:$0x1]
        %v1681 = vld [vmem:[%s331 + $0xf] sm:$0x1]
        %v1682 = vld [vmem:[%s331 + $0x13] sm:$0x1]
        %v1683 = vld [vmem:[%s331 + $0x17] sm:$0x1]
        %v1684 = vld [vmem:[%s331 + $0x1b] sm:$0x1]
        %v1685 = vld [vmem:[%s331 + $0x1f] sm:$0x1]
        %v1694 = vrot.slane %v1679, 7
        %v1695 = vsel %vm453, %v1694, %v1678
        %v1696 = vrot.slane %v1680, 6
        %v1697 = vsel %vm456, %v1696, %v1695
        %v1698 = vrot.slane %v1681, 5
        %v1699 = vsel %vm459, %v1698, %v1697
        %v1700 = vrot.slane %v1682, 4
        %v1701 = vsel %vm462, %v1700, %v1699
        %v1702 = vrot.slane %v1683, 3
        %v1703 = vsel %vm465, %v1702, %v1701
        %v1704 = vrot.slane %v1684, 2
        %v1705 = vsel %vm468, %v1704, %v1703
        %v1706 = vrot.slane %v1685, 1
        %v1707 = vsel %vm471, %v1706, %v1705
        %v1709 = vsel %vm547, %v1611, 0
        %1711 = vmatprep.subr.mxu0 0.0
        %1712 = vmatpush1.msra.mxu0 %v1707
        %1713 = vmatprep.subr.mxu0 0.0
        %1714 = vmatpush1.msra.mxu0 0.0
        %1715 = vmatprep.subr.mxu0 0.0
        %1716 = vmatpush1.msra.mxu0 0.0
        %1717 = vmatprep.subr.mxu0 0.0
        %1718 = vmatpush1.msra.mxu0 0.0
        %1719 = vmatprep.subr.mxu0 0.0
        %1720 = vmatpush1.msra.mxu0 0.0
        %1721 = vmatprep.subr.mxu0 0.0
        %1722 = vmatpush1.msra.mxu0 0.0
        %1723 = vmatprep.subr.mxu0 0.0
        %1724 = vmatpush1.msra.mxu0 0.0
        %1725 = vmatprep.subr.mxu0 0.0
        %1726 = vmatpush1.msra.mxu0 0.0
        %1727 = vmatprep.subr.mxu0 0.0
        %1728 = vmatpush1.msra.mxu0 0.0
        %1729 = vmatprep.subr.mxu0 0.0
        %1730 = vmatpush1.msra.mxu0 0.0
        %1731 = vmatprep.subr.mxu0 0.0
        %1732 = vmatpush1.msra.mxu0 0.0
        %1733 = vmatprep.subr.mxu0 0.0
        %1734 = vmatpush1.msra.mxu0 0.0
        %1735 = vmatprep.subr.mxu0 0.0
        %1736 = vmatpush1.msra.mxu0 0.0
        %1737 = vmatprep.subr.mxu0 0.0
        %1738 = vmatpush1.msra.mxu0 0.0
        %1739 = vmatprep.subr.mxu0 0.0
        %1740 = vmatpush1.msra.mxu0 0.0
        %1741 = vmatprep.subr.mxu0 0.0
        %1742 = vmatpush1.msra.mxu0 0.0
        %1743 = vmatprep.subr.mxu0 0.0
        %1744 = vmatpush1.msra.mxu0 0.0
        %1745 = vmatprep.subr.mxu0 0.0
        %1746 = vmatpush1.msra.mxu0 0.0
        %1747 = vmatprep.subr.mxu0 0.0
        %1748 = vmatpush1.msra.mxu0 0.0
        %1749 = vmatprep.subr.mxu0 0.0
        %1750 = vmatpush1.msra.mxu0 0.0
        %1751 = vmatprep.subr.mxu0 0.0
        %1752 = vmatpush1.msra.mxu0 0.0
        %1753 = vmatprep.subr.mxu0 0.0
        %1754 = vmatpush1.msra.mxu0 0.0
        %1755 = vmatprep.subr.mxu0 0.0
        %1756 = vmatpush1.msra.mxu0 0.0
        %1757 = vmatprep.subr.mxu0 0.0
        %1758 = vmatpush1.msra.mxu0 0.0
        %1759 = vmatprep.subr.mxu0 0.0
        %1760 = vmatpush1.msra.mxu0 0.0
        %1761 = vmatprep.subr.mxu0 0.0
        %1762 = vmatpush1.msra.mxu0 0.0
        %1763 = vmatprep.subr.mxu0 0.0
        %1764 = vmatpush1.msra.mxu0 0.0
        %1765 = vmatprep.subr.mxu0 0.0
        %1766 = vmatpush1.msra.mxu0 0.0
        %1767 = vmatprep.subr.mxu0 0.0
        %1768 = vmatpush1.msra.mxu0 0.0
        %1769 = vmatprep.subr.mxu0 0.0
        %1770 = vmatpush1.msra.mxu0 0.0
        %1771 = vmatprep.subr.mxu0 0.0
        %1772 = vmatpush1.msra.mxu0 0.0
        %1773 = vmatprep.subr.mxu0 0.0
        %1774 = vmatpush1.msra.mxu0 0.0
        %1775 = vmatprep.mubr.f32.mxu0 0.0
        %1776 = vmatmul.mubr.f32.gmra.mrb[0].mxu0 %v1709
        %v1777 = vpop.f32.mrb[0].mxu0
        %v1778 = vadd.f32 0.0, %v1777
        %v1779 = vpop.f32.mrb[0].mxu0
        %1780 = vdwg.mxu0
        %v1782 = vcombine.high %v1778, %v1778
        %v1784 = vunpack.c.l.s4 1966171168
        %v1785 = vunpack.c.0.s8 %v1784
        %v1786 = vlaneseq
        %v1787 = vshrl.u32 %v1786, 7
        %v1788 = vsub.s32 %v1785, %v1787
        %v1789 = vrot.slane %v1778, %v1788
        %v1791 = vunpack.c.l.s4 1966171168
        %v1792 = vunpack.c.0.s8 %v1791
        %v1793 = vlaneseq
        %v1794 = vshrl.u32 %v1793, 7
        %v1795 = vsub.s32 %v1792, %v1794
        %v1796 = vrot.slane %v1782, %v1795
        %v1797 = vcombine.high %v1789, %v1789
        %v1798 = vcombine.high %v1796, %v1796
        %v1800 = vunpack.c.l.s4 1966171168
        %v1801 = vunpack.c.0.s8 %v1800
        %v1802 = vlaneseq
        %v1803 = vshrl.u32 %v1802, 7
        %v1804 = vsub.s32 %v1801, %v1803
        %v1805 = vrot.slane %v1789, %v1804
        %v1807 = vunpack.c.l.s4 1966171168
        %v1808 = vunpack.c.0.s8 %v1807
        %v1809 = vlaneseq
        %v1810 = vshrl.u32 %v1809, 7
        %v1811 = vsub.s32 %v1808, %v1810
        %v1812 = vrot.slane %v1796, %v1811
        %v1814 = vunpack.c.l.s4 1966171168
        %v1815 = vunpack.c.0.s8 %v1814
        %v1816 = vlaneseq
        %v1817 = vshrl.u32 %v1816, 7
        %v1818 = vsub.s32 %v1815, %v1817
        %v1819 = vrot.slane %v1797, %v1818
        %v1821 = vunpack.c.l.s4 1966171168
        %v1822 = vunpack.c.0.s8 %v1821
        %v1823 = vlaneseq
        %v1824 = vshrl.u32 %v1823, 7
        %v1825 = vsub.s32 %v1822, %v1824
        %v1826 = vrot.slane %v1798, %v1825
        %v1827 = vcombine.high %v1805, %v1805
        %v1828 = vcombine.high %v1812, %v1812
        %v1829 = vcombine.high %v1819, %v1819
        %v1830 = vcombine.high %v1826, %v1826
        %1839 = vst.msk [vmem:[%s384 + $0x3] sm:$0x1] %vm788, %v1805
        %1840 = vst.msk [vmem:[%s384 + $0x7] sm:$0x1] %vm788, %v1819
        %1841 = vst.msk [vmem:[%s384 + $0xb] sm:$0x1] %vm788, %v1827
        %1842 = vst.msk [vmem:[%s384 + $0xf] sm:$0x1] %vm788, %v1829
        %1843 = vst.msk [vmem:[%s384 + $0x13] sm:$0x1] %vm788, %v1812
        %1844 = vst.msk [vmem:[%s384 + $0x17] sm:$0x1] %vm788, %v1826
        %1845 = vst.msk [vmem:[%s384 + $0x1b] sm:$0x1] %vm788, %v1828
        %1846 = vst.msk [vmem:[%s384 + $0x1f] sm:$0x1] %vm788, %v1830
        %s1847 = sand.u32 %s196, 1
        %s1848 = scalar_lea.sflag [#allocation4], %s1847
        %s1849 = sand.u32 %s196, 1
        %s1850 = smul.addr %s1849, 32
        %s1851 = scalar_lea.vmem [#allocation5], %s1850
        %s1852 = sand.u32 %s226, 1
        %s1853 = scalar_lea.sflag [#allocation7], %s1852
        %s1854 = sand.u32 %s226, 1
        %s1855 = smul.addr %s1854, 32
        %s1856 = scalar_lea.vmem [#allocation6], %s1855
        // Predicated region
        $region45: #{tpu_custom_call.1} parent=39 // pred_check
          %p1857 = pneg %p206
        $region46: #{tpu_custom_call.1} parent=39 // pred_check_branch
          %1859 = sbr.rel (%p1857) target = $region48
        $region47: #{tpu_custom_call.1} parent=39 // pred_region
          %s1860 = smul.u32 8, %s34
          %s1862 = ssub.s32 512, 512
          %1863 = vsyncadd %s1848, %s1862
          %s1864 = sadd.s32 %s33, %s1860
          %s1865 = smul.addr %s32, 8
          %s1866 = sadd.s32 %s1864, %s1865
          %s1867 = smul.addr %s1866, 64
          %s1868 = scalar_lea.hbm %s5, %s1867
          %s1869 = sshll.u32 %s1851, 4
          %s1870 = int_to_ptr.vmem [resolvable:$true] %s1869
          %1875 = dma.vmem_to_hbm [thread:$0]  %s1870, 512, %s1868, %s1848, 64, 64, 4
        $region48: #{tpu_custom_call.1} parent=39 // pred_fallthru
          _
        // Predicated region
        $region49: #{tpu_custom_call.1} parent=39 // pred_check
          %p1876 = pneg %p236
        $region50: #{tpu_custom_call.1} parent=39 // pred_check_branch
          %1878 = sbr.rel (%p1876) target = $region52
        $region51: #{tpu_custom_call.1} parent=39 // pred_region
          %s1879 = smul.u32 8, %s34
          %s1881 = ssub.s32 512, 512
          %1882 = vsyncadd %s1853, %s1881
          %s1883 = sadd.s32 %s33, %s1879
          %s1884 = smul.addr %s32, 8
          %s1885 = sadd.s32 %s1883, %s1884
          %s1886 = smul.addr %s1885, 64
          %s1887 = scalar_lea.hbm %s6, %s1886
          %s1888 = sshll.u32 %s1856, 4
          %s1889 = int_to_ptr.vmem [resolvable:$true] %s1888
          %1894 = dma.vmem_to_hbm [thread:$0]  %s1889, 512, %s1887, %s1853, 64, 64, 4
        $region52: #{tpu_custom_call.1} parent=39 // pred_fallthru
          _
      $region40: #{tpu_custom_call.1} parent=5 // pred_fallthru
        _
      %p1895 = scmp.le.s32.totalorder 2, %s22
      // Predicated region
      $region53: #{tpu_custom_call.1} parent=5 // pred_check
        %p1896 = pneg %p1895
      $region54: #{tpu_custom_call.1} parent=5 // pred_check_branch
        %1898 = sbr.rel (%p1896) target = $region56
      $region55: #{tpu_custom_call.1} parent=5 // pred_region
        %s1899 = ssub.s32 %s22, 2
        // Predicated region
        $region57: #{tpu_custom_call.1} parent=55 // pred_check
          %p1900 = pneg %p212
        $region58: #{tpu_custom_call.1} parent=55 // pred_check_branch
          %1902 = sbr.rel (%p1900) target = $region60
        $region59: #{tpu_custom_call.1} parent=55 // pred_region
          %s1903 = sand.u32 %s197, 1
          %s1904 = scalar_lea.sflag [#allocation4], %s1903
          %s1905 = sand.u32 %s197, 1
          %s1906 = smul.addr %s1905, 32
          %s1907 = scalar_lea.vmem [#allocation5], %s1906
          %1908 = dma.done %s1904, 512
        $region60: #{tpu_custom_call.1} parent=55 // pred_fallthru
          _
        // Predicated region
        $region61: #{tpu_custom_call.1} parent=55 // pred_check
          %p1909 = pneg %p242
        $region62: #{tpu_custom_call.1} parent=55 // pred_check_branch
          %1911 = sbr.rel (%p1909) target = $region64
        $region63: #{tpu_custom_call.1} parent=55 // pred_region
          %s1912 = sand.u32 %s227, 1
          %s1913 = scalar_lea.sflag [#allocation7], %s1912
          %s1914 = sand.u32 %s227, 1
          %s1915 = smul.addr %s1914, 32
          %s1916 = scalar_lea.vmem [#allocation6], %s1915
          %1917 = dma.done %s1913, 512
        $region64: #{tpu_custom_call.1} parent=55 // pred_fallthru
          _
      $region56: #{tpu_custom_call.1} parent=5 // pred_fallthru
        _
    $region6: #{tpu_custom_call.1} parent=1 // loop_footer
      %s26 = sadd.s32 1, %s22
    $region7: #{tpu_custom_call.1} parent=1 // loop_footer_branch
      %21 = sbr.rel target = $region3
    $region8: #{tpu_custom_call.1} parent=1 // loop_exit
      _
    %1918 = vsyncpa [#allocation3], 1
    %s1919 = scalar_lea.sflag [#allocation3], 1
    %1920 = vsyncpa %s1919, 1
    %1921 = vsyncpa [#allocation4], 1
    %s1922 = scalar_lea.sflag [#allocation4], 1
    %1923 = vsyncpa %s1922, 1
    %1924 = vsyncpa [#allocation7], 1
    %s1925 = scalar_lea.sflag [#allocation7], 1
    %1926 = vsyncpa %s1925, 1

// kernel: tpu_custom_call.1
$region0: #{tpu_custom_call.1}
  #allocation0 [shape = 'u32[]', space=smem, size = 0x4, offset = 0x4, fixed_abs, tag = 'smem constant byte address 0x4 - core index']
  #allocation1 [shape = 'u32[144,128]{1,0:T(1,128)}', space=vmem, size = 0x12000, scoped, tag = 'internal scratch']
  %s0 = inlined_call_operand.vmem [shape: s32[2,8,1], index: 0, kind: input, shape index: {}]
  %s1 = inlined_call_operand.vmem [shape: s32[2,1,8], index: 1, kind: input, shape index: {}]
  %s2 = inlined_call_operand.vmem [shape: f32[2,8,4,32], index: 2, kind: input, shape index: {}]
  %s3 = inlined_call_operand.vmem [shape: f32[2,32,8], index: 3, kind: input, shape index: {}]
  %s4 = inlined_call_operand.hbm [shape: f32[2,8,4,32], index: 4, kind: input, shape index: {}]
  %s5 = inlined_call_operand.hbm [shape: f32[2,8,4,32], index: 5, kind: output, shape index: {0}]
  %s6 = inlined_call_operand.hbm [shape: f32[2,8,4,8], index: 6, kind: output, shape index: {1}]
  %7 = xla_tuple %s5, %s6
  %s8 = sld [smem:[#allocation0]]
  $region65: #{tpu_custom_call.1} parent=0
    _
  %s10 = ssub.s32 1, %s8
  %s11 = scalar_select 0, %s10, %s8
  $region1: #{tpu_custom_call.1} parent=0
    #allocation2 [shape = 'u8[32768]{0}', space=vmem, size = 0x8000, scoped, tag = 'input window, operand 4']
    #allocation3 [shape = 's32[2]{0}', space=sflag, size = 0x8, scoped, tag = 'scoped memory for tpu_custom_call.1']
    #allocation4 [shape = 's32[2]{0}', space=sflag, size = 0x8, scoped, tag = 'scoped memory for tpu_custom_call.1']
    #allocation5 [shape = 'u8[32768]{0}', space=vmem, size = 0x8000, scoped, tag = 'output window, operand 0']
    #allocation6 [shape = 'u8[32768]{0}', space=vmem, size = 0x8000, scoped, tag = 'output window, operand 1']
    #allocation7 [shape = 's32[2]{0}', space=sflag, size = 0x8, scoped, tag = 'scoped memory for tpu_custom_call.1']
    %12 = vsyncpa [#allocation3], 0
    %s13 = scalar_lea.sflag [#allocation3], 1
    %14 = vsyncpa %s13, 0
    %15 = vsyncpa [#allocation4], 0
    %s16 = scalar_lea.sflag [#allocation4], 1
    %17 = vsyncpa %s16, 0
    %18 = vsyncpa [#allocation7], 0
    %s19 = scalar_lea.sflag [#allocation7], 1
    %20 = vsyncpa %s19, 0
    loop: start=0, step=1, limit=4
    $region2: #{tpu_custom_call.1} parent=1 // loop_pre_header
      _
    $region3: #{tpu_custom_call.1} parent=1 // loop_header
      %s22 = sphi 0, %s26
      %p23 = scmp.ge.s32.totalorder %s22, 4
      %s29 = sphi 0, %s48
      %s30 = sphi 0, %s44
      %s31 = sphi 0, %s40
      %s32 = sphi 0, %s29
      %s33 = sphi 0, %s30
      %s34 = sphi 0, %s31
      %s35 = sphi 0, %s32
      %s36 = sphi 0, %s33
      %s37 = sphi 0, %s34
      %s53 = sphi 0, %s55
      %s56 = sphi 0, %s53
      %s57 = sphi 0, %s56
      %s73 = sphi 0, %s57
      %s79 = sphi 0, %s81
      %s82 = sphi 0, %s79
      %s83 = sphi 0, %s82
      %s99 = sphi 0, %s83
      %s109 = sphi 0, %s111
      %s112 = sphi 0, %s109
      %s113 = sphi 0, %s112
      %s129 = sphi 0, %s113
      %s135 = sphi 0, %s137
      %s138 = sphi 0, %s135
      %s139 = sphi 0, %s138
      %s155 = sphi 0, %s139
      %s163 = sphi 0, %s165
      %s166 = sphi 0, %s163
      %s167 = sphi 0, %s166
      %s183 = sphi 0, %s167
      %s193 = sphi 0, %s195
      %s196 = sphi 0, %s193
      %s197 = sphi 0, %s196
      %s213 = sphi 0, %s197
      %s223 = sphi 0, %s225
      %s226 = sphi 0, %s223
      %s227 = sphi 0, %s226
      %s243 = sphi 0, %s227
    $region4: #{tpu_custom_call.1} parent=1 // loop_header_branch
      %25 = sbr.rel (%p23) target = $region8
    $region5: #{tpu_custom_call.1} parent=1 // loop_body
      %s27 = ssub.s32 %s22, 1
      %s28 = ssub.s32 %s22, 2
      %s38 = sadd.s32 1, %s31
      %p39 = scmp.ge.s32.totalorder %s38, 1
      %s40 = scalar_select %p39, 0, %s38
      %s41 = sadd.s32 1, %s30
      %s42 = scalar_select %p39, %s41, %s30
      %p43 = scmp.ge.s32.totalorder %s42, 1
      %s44 = scalar_select %p43, 0, %s42
      %s45 = sadd.s32 1, %s29
      %s46 = scalar_select %p43, %s45, %s29
      %p47 = scmp.ge.s32.totalorder %s46, 2
      %s48 = scalar_select %p47, 0, %s46
      %s49 = ssub.s32 %s29, %s48
      %s50 = ssub.s32 %s31, %s40
      %s51 = sor.u32 %s49, %s50
      %p52 = scmp.eq.s32.totalorder %s51, 0
      %s54 = sadd.s32 %s53, 1
      %s55 = scalar_select %p52, %s53, %s54
      %p58 = pneg %p52
      %p59 = scmp.eq.s32.totalorder %s22, 1
      %p60 = por %p58, %p59
      %p61 = scmp.ne.s32.totalorder %s53, %s56
      %p62 = scmp.eq.s32.totalorder %s22, 0
      %p63 = por %p61, %p62
      %p64 = scmp.ne.s32.totalorder %s53, %s56
      %p65 = scmp.eq.s32.totalorder %s27, 1
      %p66 = por %p64, %p65
      %p67 = scmp.ne.s32.totalorder %s56, %s57
      %p68 = scmp.eq.s32.totalorder %s27, 0
      %p69 = por %p67, %p68
      %p70 = scmp.ne.s32.totalorder %s56, %s57
      %p71 = scmp.eq.s32.totalorder %s28, 1
      %p72 = por %p70, %p71
      %p74 = scmp.ne.s32.totalorder %s57, %s73
      %p75 = scmp.eq.s32.totalorder %s28, 0
      %p76 = por %p74, %p75
      %s77 = ssub.s32 %s29, %s48
      %p78 = scmp.eq.s32.totalorder %s77, 0
      %s80 = sadd.s32 %s79, 1
      %s81 = scalar_select %p78, %s79, %s80
      %p84 = pneg %p78
      %p85 = scmp.eq.s32.totalorder %s22, 1
      %p86 = por %p84, %p85
      %p87 = scmp.ne.s32.totalorder %s79, %s82
      %p88 = scmp.eq.s32.totalorder %s22, 0
      %p89 = por %p87, %p88
      %p90 = scmp.ne.s32.totalorder %s79, %s82
      %p91 = scmp.eq.s32.totalorder %s27, 1
      %p92 = por %p90, %p91
      %p93 = scmp.ne.s32.totalorder %s82, %s83
      %p94 = scmp.eq.s32.totalorder %s27, 0
      %p95 = por %p93, %p94
      %p96 = scmp.ne.s32.totalorder %s82, %s83
      %p97 = scmp.eq.s32.totalorder %s28, 1
      %p98 = por %p96, %p97
      %p100 = scmp.ne.s32.totalorder %s83, %s99
      %p101 = scmp.eq.s32.totalorder %s28, 0
      %p102 = por %p100, %p101
      %s103 = ssub.s32 %s29, %s48
      %s104 = ssub.s32 %s31, %s40
      %s105 = sor.u32 %s103, %s104
      %s106 = ssub.s32 %s30, %s44
      %s107 = sor.u32 %s105, %s106
      %p108 = scmp.eq.s32.totalorder %s107, 0
      %s110 = sadd.s32 %s109, 1
      %s111 = scalar_select %p108, %s109, %s110
      %p114 = pneg %p108
      %p115 = scmp.eq.s32.totalorder %s22, 1
      %p116 = por %p114, %p115
      %p117 = scmp.ne.s32.totalorder %s109, %s112
      %p118 = scmp.eq.s32.totalorder %s22, 0
      %p119 = por %p117, %p118
      %p120 = scmp.ne.s32.totalorder %s109, %s112
      %p121 = scmp.eq.s32.totalorder %s27, 1
      %p122 = por %p120, %p121
      %p123 = scmp.ne.s32.totalorder %s112, %s113
      %p124 = scmp.eq.s32.totalorder %s27, 0
      %p125 = por %p123, %p124
      %p126 = scmp.ne.s32.totalorder %s112, %s113
      %p127 = scmp.eq.s32.totalorder %s28, 1
      %p128 = por %p126, %p127
      %p130 = scmp.ne.s32.totalorder %s113, %s129
      %p131 = scmp.eq.s32.totalorder %s28, 0
      %p132 = por %p130, %p131
      %s133 = ssub.s32 %s29, %s48
      %p134 = scmp.eq.s32.totalorder %s133, 0
      %s136 = sadd.s32 %s135, 1
      %s137 = scalar_select %p134, %s135, %s136
      %p140 = pneg %p134
      %p141 = scmp.eq.s32.totalorder %s22, 1
      %p142 = por %p140, %p141
      %p143 = scmp.ne.s32.totalorder %s135, %s138
      %p144 = scmp.eq.s32.totalorder %s22, 0
      %p145 = por %p143, %p144
      %p146 = scmp.ne.s32.totalorder %s135, %s138
      %p147 = scmp.eq.s32.totalorder %s27, 1
      %p148 = por %p146, %p147
      %p149 = scmp.ne.s32.totalorder %s138, %s139
      %p150 = scmp.eq.s32.totalorder %s27, 0
      %p151 = por %p149, %p150
      %p152 = scmp.ne.s32.totalorder %s138, %s139
      %p153 = scmp.eq.s32.totalorder %s28, 1
      %p154 = por %p152, %p153
      %p156 = scmp.ne.s32.totalorder %s139, %s155
      %p157 = scmp.eq.s32.totalorder %s28, 0
      %p158 = por %p156, %p157
      %s159 = ssub.s32 %s29, %s48
      %s160 = ssub.s32 %s30, %s44
      %s161 = sor.u32 %s159, %s160
      %p162 = scmp.eq.s32.totalorder %s161, 0
      %s164 = sadd.s32 %s163, 1
      %s165 = scalar_select %p162, %s163, %s164
      %p168 = pneg %p162
      %p169 = scmp.eq.s32.totalorder %s22, 1
      %p170 = por %p168, %p169
      %p171 = scmp.ne.s32.totalorder %s163, %s166
      %p172 = scmp.eq.s32.totalorder %s22, 0
      %p173 = por %p171, %p172
      %p174 = scmp.ne.s32.totalorder %s163, %s166
      %p175 = scmp.eq.s32.totalorder %s27, 1
      %p176 = por %p174, %p175
      %p177 = scmp.ne.s32.totalorder %s166, %s167
      %p178 = scmp.eq.s32.totalorder %s27, 0
      %p179 = por %p177, %p178
      %p180 = scmp.ne.s32.totalorder %s166, %s167
      %p181 = scmp.eq.s32.totalorder %s28, 1
      %p182 = por %p180, %p181
      %p184 = scmp.ne.s32.totalorder %s167, %s183
      %p185 = scmp.eq.s32.totalorder %s28, 0
      %p186 = por %p184, %p185
      %s187 = ssub.s32 %s29, %s48
      %s188 = ssub.s32 %s31, %s40
      %s189 = sor.u32 %s187, %s188
      %s190 = ssub.s32 %s30, %s44
      %s191 = sor.u32 %s189, %s190
      %p192 = scmp.eq.s32.totalorder %s191, 0
      %s194 = sadd.s32 %s193, 1
      %s195 = scalar_select %p192, %s193, %s194
      %p198 = pneg %p192
      %p199 = scmp.eq.s32.totalorder %s22, 1
      %p200 = por %p198, %p199
      %p201 = scmp.ne.s32.totalorder %s193, %s196
      %p202 = scmp.eq.s32.totalorder %s22, 0
      %p203 = por %p201, %p202
      %p204 = scmp.ne.s32.totalorder %s193, %s196
      %p205 = scmp.eq.s32.totalorder %s27, 1
      %p206 = por %p204, %p205
      %p207 = scmp.ne.s32.totalorder %s196, %s197
      %p208 = scmp.eq.s32.totalorder %s27, 0
      %p209 = por %p207, %p208
      %p210 = scmp.ne.s32.totalorder %s196, %s197
      %p211 = scmp.eq.s32.totalorder %s28, 1
      %p212 = por %p210, %p211
      %p214 = scmp.ne.s32.totalorder %s197, %s213
      %p215 = scmp.eq.s32.totalorder %s28, 0
      %p216 = por %p214, %p215
      %s217 = ssub.s32 %s29, %s48
      %s218 = ssub.s32 %s31, %s40
      %s219 = sor.u32 %s217, %s218
      %s220 = ssub.s32 %s30, %s44
      %s221 = sor.u32 %s219, %s220
      %p222 = scmp.eq.s32.totalorder %s221, 0
      %s224 = sadd.s32 %s223, 1
      %s225 = scalar_select %p222, %s223, %s224
      %p228 = pneg %p222
      %p229 = scmp.eq.s32.totalorder %s22, 1
      %p230 = por %p228, %p229
      %p231 = scmp.ne.s32.totalorder %s223, %s226
      %p232 = scmp.eq.s32.totalorder %s22, 0
      %p233 = por %p231, %p232
      %p234 = scmp.ne.s32.totalorder %s223, %s226
      %p235 = scmp.eq.s32.totalorder %s27, 1
      %p236 = por %p234, %p235
      %p237 = scmp.ne.s32.totalorder %s226, %s227
      %p238 = scmp.eq.s32.totalorder %s27, 0
      %p239 = por %p237, %p238
      %p240 = scmp.ne.s32.totalorder %s226, %s227
      %p241 = scmp.eq.s32.totalorder %s28, 1
      %p242 = por %p240, %p241
      %p244 = scmp.ne.s32.totalorder %s227, %s243
      %p245 = scmp.eq.s32.totalorder %s28, 0
      %p246 = por %p244, %p245
      %p247 = scmp.le.s32.totalorder 1, %s22
      %p248 = scmp.lt.s32.totalorder %s22, 3
      %p249 = pnand %p247, %p248
      %p250 = pneg %p249
      // Predicated region
      $region9: #{tpu_custom_call.1} parent=5 // pred_check
        _
      $region10: #{tpu_custom_call.1} parent=5 // pred_check_branch
        %252 = sbr.rel (%p249) target = $region12
      $region11: #{tpu_custom_call.1} parent=5 // pred_region
        %s253 = ssub.s32 %s22, 1
      $region12: #{tpu_custom_call.1} parent=5 // pred_fallthru
        _
      %p254 = scmp.lt.s32.totalorder %s22, 2
      // Predicated region
      $region13: #{tpu_custom_call.1} parent=5 // pred_check
        %p255 = pneg %p254
      $region14: #{tpu_custom_call.1} parent=5 // pred_check_branch
        %257 = sbr.rel (%p255) target = $region16
      $region15: #{tpu_custom_call.1} parent=5 // pred_region
        // Predicated region
        $region17: #{tpu_custom_call.1} parent=15 // pred_check
          %p258 = pneg %p63
        $region18: #{tpu_custom_call.1} parent=15 // pred_check_branch
          %260 = sbr.rel (%p258) target = $region20
        $region19: #{tpu_custom_call.1} parent=15 // pred_region
          %p261 = scmp.lt.s32.totalorder %s29, 1
          %s262 = scalar_select %p261, %s29, 1
          %p263 = scmp.lt.s32.totalorder %s31, 0
          %s264 = scalar_select %p263, %s31, 0
          %s265 = sadd.s32 %s264, %s262
          %s266 = smul.addr %s265, 8
          %s267 = scalar_lea.vmem %s0, %s266
        $region20: #{tpu_custom_call.1} parent=15 // pred_fallthru
          _
        // Predicated region
        $region21: #{tpu_custom_call.1} parent=15 // pred_check
          %p268 = pneg %p89
        $region22: #{tpu_custom_call.1} parent=15 // pred_check_branch
          %270 = sbr.rel (%p268) target = $region24
        $region23: #{tpu_custom_call.1} parent=15 // pred_region
          %p271 = scmp.lt.s32.totalorder %s29, 1
          %s272 = scalar_select %p271, %s29, 1
          %s273 = scalar_lea.vmem %s1, %s272
        $region24: #{tpu_custom_call.1} parent=15 // pred_fallthru
          _
        // Predicated region
        $region25: #{tpu_custom_call.1} parent=15 // pred_check
          %p274 = pneg %p119
        $region26: #{tpu_custom_call.1} parent=15 // pred_check_branch
          %276 = sbr.rel (%p274) target = $region28
        $region27: #{tpu_custom_call.1} parent=15 // pred_region
          %s277 = smul.u32 8, %s31
          %p278 = scmp.lt.s32.totalorder %s29, 1
          %s279 = scalar_select %p278, %s29, 1
          %p280 = scmp.lt.s32.totalorder %s277, 7
          %s281 = scalar_select %p280, %s277, 7
          %p282 = scmp.lt.s32.totalorder %s30, 0
          %s283 = scalar_select %p282, %s30, 0
          %s284 = sadd.s32 %s283, %s281
          %s285 = smul.addr %s279, 8
          %s286 = sadd.s32 %s284, %s285
          %s287 = smul.addr %s286, 4
          %s288 = scalar_lea.vmem %s2, %s287
          %s289 = smul.u32 8, %s31
        $region28: #{tpu_custom_call.1} parent=15 // pred_fallthru
          _
        // Predicated region
        $region29: #{tpu_custom_call.1} parent=15 // pred_check
          %p290 = pneg %p145
        $region30: #{tpu_custom_call.1} parent=15 // pred_check_branch
          %292 = sbr.rel (%p290) target = $region32
        $region31: #{tpu_custom_call.1} parent=15 // pred_region
          %p293 = scmp.lt.s32.totalorder %s29, 1
          %s294 = scalar_select %p293, %s29, 1
          %s295 = smul.addr %s294, 4
          %s296 = smul.addr %s295, 8
          %s297 = scalar_lea.vmem %s3, %s296
        $region32: #{tpu_custom_call.1} parent=15 // pred_fallthru
          _
        // Predicated region
        $region33: #{tpu_custom_call.1} parent=15 // pred_check
          %p298 = pneg %p173
        $region34: #{tpu_custom_call.1} parent=15 // pred_check_branch
          %300 = sbr.rel (%p298) target = $region36
        $region35: #{tpu_custom_call.1} parent=15 // pred_region
          %s301 = sand.u32 %s163, 1
          %s302 = scalar_lea.sflag [#allocation3], %s301
          %s303 = sand.u32 %s163, 1
          %s304 = smul.addr %s303, 32
          %s305 = scalar_lea.vmem [#allocation2], %s304
          %s307 = ssub.s32 512, 512
          %308 = vsyncadd %s302, %s307
          %s309 = smul.addr %s29, 8
          %s310 = sadd.s32 %s30, %s309
          %s311 = smul.addr %s310, 64
          %s312 = scalar_lea.hbm %s4, %s311
          %s313 = sshll.u32 %s305, 4
          %s314 = int_to_ptr.vmem [resolvable:$true] %s313
          %319 = dma.hbm_to_vmem [thread:$0]  %s312, 512, %s314, %s302, 64, 64, 4
        $region36: #{tpu_custom_call.1} parent=15 // pred_fallthru
          _
      $region16: #{tpu_custom_call.1} parent=5 // pred_fallthru
        _
      %p320 = scmp.le.s32.totalorder 1, %s22
      %p321 = scmp.lt.s32.totalorder %s22, 3
      %p322 = pnand %p320, %p321
      %p323 = pneg %p322
      // Predicated region
      $region37: #{tpu_custom_call.1} parent=5 // pred_check
        _
      $region38: #{tpu_custom_call.1} parent=5 // pred_check_branch
        %325 = sbr.rel (%p322) target = $region40
      $region39: #{tpu_custom_call.1} parent=5 // pred_region
        %s326 = ssub.s32 %s22, 1
        %s327 = sand.u32 %s166, 1
        %s328 = scalar_lea.sflag [#allocation3], %s327
        %s329 = sand.u32 %s166, 1
        %s330 = smul.addr %s329, 32
        %s331 = scalar_lea.vmem [#allocation2], %s330
        // Predicated region
        $region41: #{tpu_custom_call.1} parent=39 // pred_check
          %p332 = pneg %p179
        $region42: #{tpu_custom_call.1} parent=39 // pred_check_branch
          %334 = sbr.rel (%p332) target = $region44
        $region43: #{tpu_custom_call.1} parent=39 // pred_region
          %335 = dma.done %s328, 512
        $region44: #{tpu_custom_call.1} parent=39 // pred_fallthru
          _
        %p336 = scmp.lt.s32.totalorder %s32, 1
        %s337 = scalar_select %p336, %s32, 1
        %p338 = scmp.lt.s32.totalorder %s34, 0
        %s339 = scalar_select %p338, %s34, 0
        %s340 = sadd.s32 %s339, %s337
        %s341 = smul.addr %s340, 8
        %s342 = scalar_lea.vmem %s0, %s341
        %p343 = pneg %p69
        %p344 = pneg %p66
        %p345 = scmp.lt.s32.totalorder %s32, 1
        %s346 = scalar_select %p345, %s32, 1
        %s347 = scalar_lea.vmem %s1, %s346
        %p348 = pneg %p95
        %p349 = pneg %p92
        %s350 = smul.u32 8, %s34
        %p351 = scmp.lt.s32.totalorder %s32, 1
        %s352 = scalar_select %p351, %s32, 1
        %p353 = scmp.lt.s32.totalorder %s350, 7
        %s354 = scalar_select %p353, %s350, 7
        %p355 = scmp.lt.s32.totalorder %s33, 0
        %s356 = scalar_select %p355, %s33, 0
        %s357 = sadd.s32 %s356, %s354
        %s358 = smul.addr %s352, 8
        %s359 = sadd.s32 %s357, %s358
        %s360 = smul.addr %s359, 4
        %s361 = scalar_lea.vmem %s2, %s360
        %p362 = pneg %p125
        %p363 = pneg %p122
        %p364 = scmp.lt.s32.totalorder %s32, 1
        %s365 = scalar_select %p364, %s32, 1
        %s366 = smul.addr %s365, 4
        %s367 = smul.addr %s366, 8
        %s368 = scalar_lea.vmem %s3, %s367
        %p369 = pneg %p151
        %p370 = pneg %p148
        %s371 = sand.u32 %s166, 1
        %s372 = scalar_lea.sflag [#allocation3], %s371
        %s373 = sand.u32 %s166, 1
        %s374 = smul.addr %s373, 32
        %s375 = scalar_lea.vmem [#allocation2], %s374
        %p376 = pneg %p179
        %p377 = pneg %p176
        %p378 = pneg %p209
        %p379 = pneg %p206
        %s380 = sand.u32 %s196, 1
        %s381 = scalar_lea.sflag [#allocation4], %s380
        %s382 = sand.u32 %s196, 1
        %s383 = smul.addr %s382, 32
        %s384 = scalar_lea.vmem [#allocation5], %s383
        %p385 = pneg %p239
        %p386 = pneg %p236
        %s387 = sand.u32 %s226, 1
        %s388 = scalar_lea.sflag [#allocation7], %s387
        %s389 = sand.u32 %s226, 1
        %s390 = smul.addr %s389, 32
        %s391 = scalar_lea.vmem [#allocation6], %s390
        %p392 = scmp.lt.s32.totalorder %s32, 1
        %s393 = scalar_select %p392, %s32, 1
        %p394 = scmp.lt.s32.totalorder %s34, 0
        %s395 = scalar_select %p394, %s34, 0
        %s396 = sadd.s32 %s395, %s393
        %s397 = smul.addr %s396, 8
        %s398 = scalar_lea.vmem %s0, %s397
        %p399 = scmp.lt.s32.totalorder %s32, 1
        %s400 = scalar_select %p399, %s32, 1
        %s401 = scalar_lea.vmem %s1, %s400
        %s402 = smul.u32 8, %s34
        %p403 = scmp.lt.s32.totalorder %s32, 1
        %s404 = scalar_select %p403, %s32, 1
        %p405 = scmp.lt.s32.totalorder %s402, 7
        %s406 = scalar_select %p405, %s402, 7
        %p407 = scmp.lt.s32.totalorder %s33, 0
        %s408 = scalar_select %p407, %s33, 0
        %s409 = sadd.s32 %s408, %s406
        %s410 = smul.addr %s404, 8
        %s411 = sadd.s32 %s409, %s410
        %s412 = smul.addr %s411, 4
        %s413 = scalar_lea.vmem %s2, %s412
        %s414 = smul.u32 8, %s34
        %p415 = scmp.lt.s32.totalorder %s32, 1
        %s416 = scalar_select %p415, %s32, 1
        %s417 = smul.addr %s416, 4
        %s418 = smul.addr %s417, 8
        %s419 = scalar_lea.vmem %s3, %s418
        %s420 = smul.u32 8, %s34
        %s421 = smul.u32 8, %s34
        %v422 = vld [vmem:[%s419] sm:$0xff]
        %v423 = vld [vmem:[%s419 + $0x8] sm:$0xff]
        %v424 = vld [vmem:[%s419 + $0x10] sm:$0xff]
        %v425 = vld [vmem:[%s419 + $0x18] sm:$0xff]
        %v426 = vld [vmem:[%s398] sm:$0xff]
        %v427 = vld [vmem:[%s401] sm:$0x1]
        %428 = vset.pattern.permute.xlu0 0
        %429 = vperm.xlu0 %428, %v426
        %v430 = vpop.permute.xlu0 %429
        %v431 = vlaneseq
        %v432 = vshrl.u32 %v431, 7
        %v433 = vsub.s32 0, %v432
        %v434 = vrot.slane %v427, %v433
        %vm435 = vcmp.eq.s32.totalorder %v430, %v434
        %v436 = vld [vmem:[%s413] sm:$0x1]
        %v437 = vld [vmem:[%s413 + $0x4] sm:$0x1]
        %v438 = vld [vmem:[%s413 + $0x8] sm:$0x1]
        %v439 = vld [vmem:[%s413 + $0xc] sm:$0x1]
        %v440 = vld [vmem:[%s413 + $0x10] sm:$0x1]
        %v441 = vld [vmem:[%s413 + $0x14] sm:$0x1]
        %v442 = vld [vmem:[%s413 + $0x18] sm:$0x1]
        %v443 = vld [vmem:[%s413 + $0x1c] sm:$0x1]
        %v452 = vrot.slane %v437, 7
        %vm453 = vcmask 1041409
        %v454 = vsel %vm453, %v452, %v436
        %v455 = vrot.slane %v438, 6
        %vm456 = vcmask 1042434
        %v457 = vsel %vm456, %v455, %v454
        %v458 = vrot.slane %v439, 5
        %vm459 = vcmask 1043459
        %v460 = vsel %vm459, %v458, %v457
        %v461 = vrot.slane %v440, 4
        %vm462 = vcmask 1044484
        %v463 = vsel %vm462, %v461, %v460
        %v464 = vrot.slane %v441, 3
        %vm465 = vcmask 1045509
        %v466 = vsel %vm465, %v464, %v463
        %v467 = vrot.slane %v442, 2
        %vm468 = vcmask 1046534
        %v469 = vsel %vm468, %v467, %v466
        %v470 = vrot.slane %v443, 1
        %vm471 = vcmask 1047559
        %v472 = vsel %vm471, %v470, %v469
        %vm473 = vcmask 261120
        %v474 = vsel %vm473, %v472, 0
        %476 = vmatprep.subr.mxu0 0.0
        %477 = vmatpush1.msra.mxu0 %v422
        %478 = vmatprep.subr.mxu0 0.0
        %479 = vmatpush1.msra.mxu0 %v423
        %480 = vmatprep.subr.mxu0 0.0
        %481 = vmatpush1.msra.mxu0 %v424
        %482 = vmatprep.subr.mxu0 0.0
        %483 = vmatpush1.msra.mxu0 %v425
        %484 = vmatprep.subr.mxu0 0.0
        %485 = vmatpush1.msra.mxu0 0.0
        %486 = vmatprep.subr.mxu0 0.0
        %487 = vmatpush1.msra.mxu0 0.0
        %488 = vmatprep.subr.mxu0 0.0
        %489 = vmatpush1.msra.mxu0 0.0
        %490 = vmatprep.subr.mxu0 0.0
        %491 = vmatpush1.msra.mxu0 0.0
        %492 = vmatprep.subr.mxu0 0.0
        %493 = vmatpush1.msra.mxu0 0.0
        %494 = vmatprep.subr.mxu0 0.0
        %495 = vmatpush1.msra.mxu0 0.0
        %496 = vmatprep.subr.mxu0 0.0
        %497 = vmatpush1.msra.mxu0 0.0
        %498 = vmatprep.subr.mxu0 0.0
        %499 = vmatpush1.msra.mxu0 0.0
        %500 = vmatprep.subr.mxu0 0.0
        %501 = vmatpush1.msra.mxu0 0.0
        %502 = vmatprep.subr.mxu0 0.0
        %503 = vmatpush1.msra.mxu0 0.0
        %504 = vmatprep.subr.mxu0 0.0
        %505 = vmatpush1.msra.mxu0 0.0
        %506 = vmatprep.subr.mxu0 0.0
        %507 = vmatpush1.msra.mxu0 0.0
        %508 = vmatprep.subr.mxu0 0.0
        %509 = vmatpush1.msra.mxu0 0.0
        %510 = vmatprep.subr.mxu0 0.0
        %511 = vmatpush1.msra.mxu0 0.0
        %512 = vmatprep.subr.mxu0 0.0
        %513 = vmatpush1.msra.mxu0 0.0
        %514 = vmatprep.subr.mxu0 0.0
        %515 = vmatpush1.msra.mxu0 0.0
        %516 = vmatprep.subr.mxu0 0.0
        %517 = vmatpush1.msra.mxu0 0.0
        %518 = vmatprep.subr.mxu0 0.0
        %519 = vmatpush1.msra.mxu0 0.0
        %520 = vmatprep.subr.mxu0 0.0
        %521 = vmatpush1.msra.mxu0 0.0
        %522 = vmatprep.subr.mxu0 0.0
        %523 = vmatpush1.msra.mxu0 0.0
        %524 = vmatprep.subr.mxu0 0.0
        %525 = vmatpush1.msra.mxu0 0.0
        %526 = vmatprep.subr.mxu0 0.0
        %527 = vmatpush1.msra.mxu0 0.0
        %528 = vmatprep.subr.mxu0 0.0
        %529 = vmatpush1.msra.mxu0 0.0
        %530 = vmatprep.subr.mxu0 0.0
        %531 = vmatpush1.msra.mxu0 0.0
        %532 = vmatprep.subr.mxu0 0.0
        %533 = vmatpush1.msra.mxu0 0.0
        %534 = vmatprep.subr.mxu0 0.0
        %535 = vmatpush1.msra.mxu0 0.0
        %536 = vmatprep.subr.mxu0 0.0
        %537 = vmatpush1.msra.mxu0 0.0
        %538 = vmatprep.subr.mxu0 0.0
        %539 = vmatpush1.msra.mxu0 0.0
        %540 = vmatprep.mubr.f32.mxu0 0.0
        %541 = vmatmul.mubr.f32.gmra.mrb[0].mxu0 %v474
        %v542 = vpop.f32.mrb[0].mxu0
        %v543 = vadd.f32 0.0, %v542
        %v544 = vpop.f32.mrb[0].mxu0
        %545 = vdwg.mxu0
        %v546 = vsel %vm435, %v543, -inf
        %vm547 = vcmask 64512
        %v548 = vsel %vm547, %v546, -inf
        %549 = vmax.xlane.f32.xlu0 %v548
        %v550 = vpop.xlane.xlu0 %549
        %v551 = vsub.f32 %v546, %v550
        %v552 = vmul.f32 %v551, 1.442695
        %v553 = vpow.pop %v552
        %v554 = vsel %vm547, %v553, 0.0
        %555 = vadd.xlane.f32.xlu0 %v554
        %v556 = vpop.xlane.xlu0 %555
        %v557 = vrcp.pop %v556
        %v558 = vmul.f32 1.0, %v557
        %v559 = vmul.f32 %v553, %v558
        %v561 = vcombine.high %v559, %v559
        %v563 = vunpack.c.l.s4 1966171168
        %v564 = vunpack.c.0.s8 %v563
        %v565 = vlaneseq
        %v566 = vshrl.u32 %v565, 7
        %v567 = vsub.s32 %v564, %v566
        %v568 = vrot.slane %v559, %v567
        %v570 = vunpack.c.l.s4 1966171168
        %v571 = vunpack.c.0.s8 %v570
        %v572 = vlaneseq
        %v573 = vshrl.u32 %v572, 7
        %v574 = vsub.s32 %v571, %v573
        %v575 = vrot.slane %v561, %v574
        %v576 = vcombine.high %v568, %v568
        %v577 = vcombine.high %v575, %v575
        %v579 = vunpack.c.l.s4 1966171168
        %v580 = vunpack.c.0.s8 %v579
        %v581 = vlaneseq
        %v582 = vshrl.u32 %v581, 7
        %v583 = vsub.s32 %v580, %v582
        %v584 = vrot.slane %v568, %v583
        %v586 = vunpack.c.l.s4 1966171168
        %v587 = vunpack.c.0.s8 %v586
        %v588 = vlaneseq
        %v589 = vshrl.u32 %v588, 7
        %v590 = vsub.s32 %v587, %v589
        %v591 = vrot.slane %v575, %v590
        %v593 = vunpack.c.l.s4 1966171168
        %v594 = vunpack.c.0.s8 %v593
        %v595 = vlaneseq
        %v596 = vshrl.u32 %v595, 7
        %v597 = vsub.s32 %v594, %v596
        %v598 = vrot.slane %v576, %v597
        %v600 = vunpack.c.l.s4 1966171168
        %v601 = vunpack.c.0.s8 %v600
        %v602 = vlaneseq
        %v603 = vshrl.u32 %v602, 7
        %v604 = vsub.s32 %v601, %v603
        %v605 = vrot.slane %v577, %v604
        %v606 = vcombine.high %v584, %v584
        %v607 = vcombine.high %v591, %v591
        %v608 = vcombine.high %v598, %v598
        %v609 = vcombine.high %v605, %v605
        %vm618 = vcmask 57344
        %619 = vst.msk [vmem:[%s391] sm:$0x1] %vm618, %v584
        %620 = vst.msk [vmem:[%s391 + $0x4] sm:$0x1] %vm618, %v598
        %621 = vst.msk [vmem:[%s391 + $0x8] sm:$0x1] %vm618, %v606
        %622 = vst.msk [vmem:[%s391 + $0xc] sm:$0x1] %vm618, %v608
        %623 = vst.msk [vmem:[%s391 + $0x10] sm:$0x1] %vm618, %v591
        %624 = vst.msk [vmem:[%s391 + $0x14] sm:$0x1] %vm618, %v605
        %625 = vst.msk [vmem:[%s391 + $0x18] sm:$0x1] %vm618, %v607
        %626 = vst.msk [vmem:[%s391 + $0x1c] sm:$0x1] %vm618, %v609
        %v627 = vld [vmem:[%s331] sm:$0x1]
        %v628 = vld [vmem:[%s331 + $0x4] sm:$0x1]
        %v629 = vld [vmem:[%s331 + $0x8] sm:$0x1]
        %v630 = vld [vmem:[%s331 + $0xc] sm:$0x1]
        %v631 = vld [vmem:[%s331 + $0x10] sm:$0x1]
        %v632 = vld [vmem:[%s331 + $0x14] sm:$0x1]
        %v633 = vld [vmem:[%s331 + $0x18] sm:$0x1]
        %v634 = vld [vmem:[%s331 + $0x1c] sm:$0x1]
        %v643 = vrot.slane %v628, 7
        %v644 = vsel %vm453, %v643, %v627
        %v645 = vrot.slane %v629, 6
        %v646 = vsel %vm456, %v645, %v644
        %v647 = vrot.slane %v630, 5
        %v648 = vsel %vm459, %v647, %v646
        %v649 = vrot.slane %v631, 4
        %v650 = vsel %vm462, %v649, %v648
        %v651 = vrot.slane %v632, 3
        %v652 = vsel %vm465, %v651, %v650
        %v653 = vrot.slane %v633, 2
        %v654 = vsel %vm468, %v653, %v652
        %v655 = vrot.slane %v634, 1
        %v656 = vsel %vm471, %v655, %v654
        %v658 = vsel %vm547, %v559, 0
        %660 = vmatprep.subr.mxu0 0.0
        %661 = vmatpush1.msra.mxu0 %v656
        %662 = vmatprep.subr.mxu0 0.0
        %663 = vmatpush1.msra.mxu0 0.0
        %664 = vmatprep.subr.mxu0 0.0
        %665 = vmatpush1.msra.mxu0 0.0
        %666 = vmatprep.subr.mxu0 0.0
        %667 = vmatpush1.msra.mxu0 0.0
        %668 = vmatprep.subr.mxu0 0.0
        %669 = vmatpush1.msra.mxu0 0.0
        %670 = vmatprep.subr.mxu0 0.0
        %671 = vmatpush1.msra.mxu0 0.0
        %672 = vmatprep.subr.mxu0 0.0
        %673 = vmatpush1.msra.mxu0 0.0
        %674 = vmatprep.subr.mxu0 0.0
        %675 = vmatpush1.msra.mxu0 0.0
        %676 = vmatprep.subr.mxu0 0.0
        %677 = vmatpush1.msra.mxu0 0.0
        %678 = vmatprep.subr.mxu0 0.0
        %679 = vmatpush1.msra.mxu0 0.0
        %680 = vmatprep.subr.mxu0 0.0
        %681 = vmatpush1.msra.mxu0 0.0
        %682 = vmatprep.subr.mxu0 0.0
        %683 = vmatpush1.msra.mxu0 0.0
        %684 = vmatprep.subr.mxu0 0.0
        %685 = vmatpush1.msra.mxu0 0.0
        %686 = vmatprep.subr.mxu0 0.0
        %687 = vmatpush1.msra.mxu0 0.0
        %688 = vmatprep.subr.mxu0 0.0
        %689 = vmatpush1.msra.mxu0 0.0
        %690 = vmatprep.subr.mxu0 0.0
        %691 = vmatpush1.msra.mxu0 0.0
        %692 = vmatprep.subr.mxu0 0.0
        %693 = vmatpush1.msra.mxu0 0.0
        %694 = vmatprep.subr.mxu0 0.0
        %695 = vmatpush1.msra.mxu0 0.0
        %696 = vmatprep.subr.mxu0 0.0
        %697 = vmatpush1.msra.mxu0 0.0
        %698 = vmatprep.subr.mxu0 0.0
        %699 = vmatpush1.msra.mxu0 0.0
        %700 = vmatprep.subr.mxu0 0.0
        %701 = vmatpush1.msra.mxu0 0.0
        %702 = vmatprep.subr.mxu0 0.0
        %703 = vmatpush1.msra.mxu0 0.0
        %704 = vmatprep.subr.mxu0 0.0
        %705 = vmatpush1.msra.mxu0 0.0
        %706 = vmatprep.subr.mxu0 0.0
        %707 = vmatpush1.msra.mxu0 0.0
        %708 = vmatprep.subr.mxu0 0.0
        %709 = vmatpush1.msra.mxu0 0.0
        %710 = vmatprep.subr.mxu0 0.0
        %711 = vmatpush1.msra.mxu0 0.0
        %712 = vmatprep.subr.mxu0 0.0
        %713 = vmatpush1.msra.mxu0 0.0
        %714 = vmatprep.subr.mxu0 0.0
        %715 = vmatpush1.msra.mxu0 0.0
        %716 = vmatprep.subr.mxu0 0.0
        %717 = vmatpush1.msra.mxu0 0.0
        %718 = vmatprep.subr.mxu0 0.0
        %719 = vmatpush1.msra.mxu0 0.0
        %720 = vmatprep.subr.mxu0 0.0
        %721 = vmatpush1.msra.mxu0 0.0
        %722 = vmatprep.subr.mxu0 0.0
        %723 = vmatpush1.msra.mxu0 0.0
        %724 = vmatprep.mubr.f32.mxu0 0.0
        %725 = vmatmul.mubr.f32.gmra.mrb[0].mxu0 %v658
        %v726 = vpop.f32.mrb[0].mxu0
        %v727 = vadd.f32 0.0, %v726
        %v728 = vpop.f32.mrb[0].mxu0
        %729 = vdwg.mxu0
        %v731 = vcombine.high %v727, %v727
        %v733 = vunpack.c.l.s4 1966171168
        %v734 = vunpack.c.0.s8 %v733
        %v735 = vlaneseq
        %v736 = vshrl.u32 %v735, 7
        %v737 = vsub.s32 %v734, %v736
        %v738 = vrot.slane %v727, %v737
        %v740 = vunpack.c.l.s4 1966171168
        %v741 = vunpack.c.0.s8 %v740
        %v742 = vlaneseq
        %v743 = vshrl.u32 %v742, 7
        %v744 = vsub.s32 %v741, %v743
        %v745 = vrot.slane %v731, %v744
        %v746 = vcombine.high %v738, %v738
        %v747 = vcombine.high %v745, %v745
        %v749 = vunpack.c.l.s4 1966171168
        %v750 = vunpack.c.0.s8 %v749
        %v751 = vlaneseq
        %v752 = vshrl.u32 %v751, 7
        %v753 = vsub.s32 %v750, %v752
        %v754 = vrot.slane %v738, %v753
        %v756 = vunpack.c.l.s4 1966171168
        %v757 = vunpack.c.0.s8 %v756
        %v758 = vlaneseq
        %v759 = vshrl.u32 %v758, 7
        %v760 = vsub.s32 %v757, %v759
        %v761 = vrot.slane %v745, %v760
        %v763 = vunpack.c.l.s4 1966171168
        %v764 = vunpack.c.0.s8 %v763
        %v765 = vlaneseq
        %v766 = vshrl.u32 %v765, 7
        %v767 = vsub.s32 %v764, %v766
        %v768 = vrot.slane %v746, %v767
        %v770 = vunpack.c.l.s4 1966171168
        %v771 = vunpack.c.0.s8 %v770
        %v772 = vlaneseq
        %v773 = vshrl.u32 %v772, 7
        %v774 = vsub.s32 %v771, %v773
        %v775 = vrot.slane %v747, %v774
        %v776 = vcombine.high %v754, %v754
        %v777 = vcombine.high %v761, %v761
        %v778 = vcombine.high %v768, %v768
        %v779 = vcombine.high %v775, %v775
        %vm788 = vcmask 253952
        %789 = vst.msk [vmem:[%s384] sm:$0x1] %vm788, %v754
        %790 = vst.msk [vmem:[%s384 + $0x4] sm:$0x1] %vm788, %v768
        %791 = vst.msk [vmem:[%s384 + $0x8] sm:$0x1] %vm788, %v776
        %792 = vst.msk [vmem:[%s384 + $0xc] sm:$0x1] %vm788, %v778
        %793 = vst.msk [vmem:[%s384 + $0x10] sm:$0x1] %vm788, %v761
        %794 = vst.msk [vmem:[%s384 + $0x14] sm:$0x1] %vm788, %v775
        %795 = vst.msk [vmem:[%s384 + $0x18] sm:$0x1] %vm788, %v777
        %796 = vst.msk [vmem:[%s384 + $0x1c] sm:$0x1] %vm788, %v779
        %v797 = vld [vmem:[%s413 + $0x1] sm:$0x1]
        %v798 = vld [vmem:[%s413 + $0x5] sm:$0x1]
        %v799 = vld [vmem:[%s413 + $0x9] sm:$0x1]
        %v800 = vld [vmem:[%s413 + $0xd] sm:$0x1]
        %v801 = vld [vmem:[%s413 + $0x11] sm:$0x1]
        %v802 = vld [vmem:[%s413 + $0x15] sm:$0x1]
        %v803 = vld [vmem:[%s413 + $0x19] sm:$0x1]
        %v804 = vld [vmem:[%s413 + $0x1d] sm:$0x1]
        %v813 = vrot.slane %v798, 7
        %v814 = vsel %vm453, %v813, %v797
        %v815 = vrot.slane %v799, 6
        %v816 = vsel %vm456, %v815, %v814
        %v817 = vrot.slane %v800, 5
        %v818 = vsel %vm459, %v817, %v816
        %v819 = vrot.slane %v801, 4
        %v820 = vsel %vm462, %v819, %v818
        %v821 = vrot.slane %v802, 3
        %v822 = vsel %vm465, %v821, %v820
        %v823 = vrot.slane %v803, 2
        %v824 = vsel %vm468, %v823, %v822
        %v825 = vrot.slane %v804, 1
        %v826 = vsel %vm471, %v825, %v824
        %v827 = vsel %vm473, %v826, 0
        %829 = vmatprep.subr.mxu0 0.0
        %830 = vmatpush1.msra.mxu0 %v422
        %831 = vmatprep.subr.mxu0 0.0
        %832 = vmatpush1.msra.mxu0 %v423
        %833 = vmatprep.subr.mxu0 0.0
        %834 = vmatpush1.msra.mxu0 %v424
        %835 = vmatprep.subr.mxu0 0.0
        %836 = vmatpush1.msra.mxu0 %v425
        %837 = vmatprep.subr.mxu0 0.0
        %838 = vmatpush1.msra.mxu0 0.0
        %839 = vmatprep.subr.mxu0 0.0
        %840 = vmatpush1.msra.mxu0 0.0
        %841 = vmatprep.subr.mxu0 0.0
        %842 = vmatpush1.msra.mxu0 0.0
        %843 = vmatprep.subr.mxu0 0.0
        %844 = vmatpush1.msra.mxu0 0.0
        %845 = vmatprep.subr.mxu0 0.0
        %846 = vmatpush1.msra.mxu0 0.0
        %847 = vmatprep.subr.mxu0 0.0
        %848 = vmatpush1.msra.mxu0 0.0
        %849 = vmatprep.subr.mxu0 0.0
        %850 = vmatpush1.msra.mxu0 0.0
        %851 = vmatprep.subr.mxu0 0.0
        %852 = vmatpush1.msra.mxu0 0.0
        %853 = vmatprep.subr.mxu0 0.0
        %854 = vmatpush1.msra.mxu0 0.0
        %855 = vmatprep.subr.mxu0 0.0
        %856 = vmatpush1.msra.mxu0 0.0
        %857 = vmatprep.subr.mxu0 0.0
        %858 = vmatpush1.msra.mxu0 0.0
        %859 = vmatprep.subr.mxu0 0.0
        %860 = vmatpush1.msra.mxu0 0.0
        %861 = vmatprep.subr.mxu0 0.0
        %862 = vmatpush1.msra.mxu0 0.0
        %863 = vmatprep.subr.mxu0 0.0
        %864 = vmatpush1.msra.mxu0 0.0
        %865 = vmatprep.subr.mxu0 0.0
        %866 = vmatpush1.msra.mxu0 0.0
        %867 = vmatprep.subr.mxu0 0.0
        %868 = vmatpush1.msra.mxu0 0.0
        %869 = vmatprep.subr.mxu0 0.0
        %870 = vmatpush1.msra.mxu0 0.0
        %871 = vmatprep.subr.mxu0 0.0
        %872 = vmatpush1.msra.mxu0 0.0
        %873 = vmatprep.subr.mxu0 0.0
        %874 = vmatpush1.msra.mxu0 0.0
        %875 = vmatprep.subr.mxu0 0.0
        %876 = vmatpush1.msra.mxu0 0.0
        %877 = vmatprep.subr.mxu0 0.0
        %878 = vmatpush1.msra.mxu0 0.0
        %879 = vmatprep.subr.mxu0 0.0
        %880 = vmatpush1.msra.mxu0 0.0
        %881 = vmatprep.subr.mxu0 0.0
        %882 = vmatpush1.msra.mxu0 0.0
        %883 = vmatprep.subr.mxu0 0.0
        %884 = vmatpush1.msra.mxu0 0.0
        %885 = vmatprep.subr.mxu0 0.0
        %886 = vmatpush1.msra.mxu0 0.0
        %887 = vmatprep.subr.mxu0 0.0
        %888 = vmatpush1.msra.mxu0 0.0
        %889 = vmatprep.subr.mxu0 0.0
        %890 = vmatpush1.msra.mxu0 0.0
        %891 = vmatprep.subr.mxu0 0.0
        %892 = vmatpush1.msra.mxu0 0.0
        %893 = vmatprep.mubr.f32.mxu0 0.0
        %894 = vmatmul.mubr.f32.gmra.mrb[0].mxu0 %v827
        %v895 = vpop.f32.mrb[0].mxu0
        %v896 = vadd.f32 0.0, %v895
        %v897 = vpop.f32.mrb[0].mxu0
        %898 = vdwg.mxu0
        %v899 = vsel %vm435, %v896, -inf
        %v900 = vsel %vm547, %v899, -inf
        %901 = vmax.xlane.f32.xlu0 %v900
        %v902 = vpop.xlane.xlu0 %901
        %v903 = vsub.f32 %v899, %v902
        %v904 = vmul.f32 %v903, 1.442695
        %v905 = vpow.pop %v904
        %v906 = vsel %vm547, %v905, 0.0
        %907 = vadd.xlane.f32.xlu0 %v906
        %v908 = vpop.xlane.xlu0 %907
        %v909 = vrcp.pop %v908
        %v910 = vmul.f32 1.0, %v909
        %v911 = vmul.f32 %v905, %v910
        %v913 = vcombine.high %v911, %v911
        %v915 = vunpack.c.l.s4 1966171168
        %v916 = vunpack.c.0.s8 %v915
        %v917 = vlaneseq
        %v918 = vshrl.u32 %v917, 7
        %v919 = vsub.s32 %v916, %v918
        %v920 = vrot.slane %v911, %v919
        %v922 = vunpack.c.l.s4 1966171168
        %v923 = vunpack.c.0.s8 %v922
        %v924 = vlaneseq
        %v925 = vshrl.u32 %v924, 7
        %v926 = vsub.s32 %v923, %v925
        %v927 = vrot.slane %v913, %v926
        %v928 = vcombine.high %v920, %v920
        %v929 = vcombine.high %v927, %v927
        %v931 = vunpack.c.l.s4 1966171168
        %v932 = vunpack.c.0.s8 %v931
        %v933 = vlaneseq
        %v934 = vshrl.u32 %v933, 7
        %v935 = vsub.s32 %v932, %v934
        %v936 = vrot.slane %v920, %v935
        %v938 = vunpack.c.l.s4 1966171168
        %v939 = vunpack.c.0.s8 %v938
        %v940 = vlaneseq
        %v941 = vshrl.u32 %v940, 7
        %v942 = vsub.s32 %v939, %v941
        %v943 = vrot.slane %v927, %v942
        %v945 = vunpack.c.l.s4 1966171168
        %v946 = vunpack.c.0.s8 %v945
        %v947 = vlaneseq
        %v948 = vshrl.u32 %v947, 7
        %v949 = vsub.s32 %v946, %v948
        %v950 = vrot.slane %v928, %v949
        %v952 = vunpack.c.l.s4 1966171168
        %v953 = vunpack.c.0.s8 %v952
        %v954 = vlaneseq
        %v955 = vshrl.u32 %v954, 7
        %v956 = vsub.s32 %v953, %v955
        %v957 = vrot.slane %v929, %v956
        %v958 = vcombine.high %v936, %v936
        %v959 = vcombine.high %v943, %v943
        %v960 = vcombine.high %v950, %v950
        %v961 = vcombine.high %v957, %v957
        %970 = vst.msk [vmem:[%s391 + $0x1] sm:$0x1] %vm618, %v936
        %971 = vst.msk [vmem:[%s391 + $0x5] sm:$0x1] %vm618, %v950
        %972 = vst.msk [vmem:[%s391 + $0x9] sm:$0x1] %vm618, %v958
        %973 = vst.msk [vmem:[%s391 + $0xd] sm:$0x1] %vm618, %v960
        %974 = vst.msk [vmem:[%s391 + $0x11] sm:$0x1] %vm618, %v943
        %975 = vst.msk [vmem:[%s391 + $0x15] sm:$0x1] %vm618, %v957
        %976 = vst.msk [vmem:[%s391 + $0x19] sm:$0x1] %vm618, %v959
        %977 = vst.msk [vmem:[%s391 + $0x1d] sm:$0x1] %vm618, %v961
        %v978 = vld [vmem:[%s331 + $0x1] sm:$0x1]
        %v979 = vld [vmem:[%s331 + $0x5] sm:$0x1]
        %v980 = vld [vmem:[%s331 + $0x9] sm:$0x1]
        %v981 = vld [vmem:[%s331 + $0xd] sm:$0x1]
        %v982 = vld [vmem:[%s331 + $0x11] sm:$0x1]
        %v983 = vld [vmem:[%s331 + $0x15] sm:$0x1]
        %v984 = vld [vmem:[%s331 + $0x19] sm:$0x1]
        %v985 = vld [vmem:[%s331 + $0x1d] sm:$0x1]
        %v994 = vrot.slane %v979, 7
        %v995 = vsel %vm453, %v994, %v978
        %v996 = vrot.slane %v980, 6
        %v997 = vsel %vm456, %v996, %v995
        %v998 = vrot.slane %v981, 5
        %v999 = vsel %vm459, %v998, %v997
        %v1000 = vrot.slane %v982, 4
        %v1001 = vsel %vm462, %v1000, %v999
        %v1002 = vrot.slane %v983, 3
        %v1003 = vsel %vm465, %v1002, %v1001
        %v1004 = vrot.slane %v984, 2
        %v1005 = vsel %vm468, %v1004, %v1003
        %v1006 = vrot.slane %v985, 1
        %v1007 = vsel %vm471, %v1006, %v1005
        %v1009 = vsel %vm547, %v911, 0
        %1011 = vmatprep.subr.mxu0 0.0
        %1012 = vmatpush1.msra.mxu0 %v1007
        %1013 = vmatprep.subr.mxu0 0.0
        %1014 = vmatpush1.msra.mxu0 0.0
        %1015 = vmatprep.subr.mxu0 0.0
        %1016 = vmatpush1.msra.mxu0 0.0
        %1017 = vmatprep.subr.mxu0 0.0
        %1018 = vmatpush1.msra.mxu0 0.0
        %1019 = vmatprep.subr.mxu0 0.0
        %1020 = vmatpush1.msra.mxu0 0.0
        %1021 = vmatprep.subr.mxu0 0.0
        %1022 = vmatpush1.msra.mxu0 0.0
        %1023 = vmatprep.subr.mxu0 0.0
        %1024 = vmatpush1.msra.mxu0 0.0
        %1025 = vmatprep.subr.mxu0 0.0
        %1026 = vmatpush1.msra.mxu0 0.0
        %1027 = vmatprep.subr.mxu0 0.0
        %1028 = vmatpush1.msra.mxu0 0.0
        %1029 = vmatprep.subr.mxu0 0.0
        %1030 = vmatpush1.msra.mxu0 0.0
        %1031 = vmatprep.subr.mxu0 0.0
        %1032 = vmatpush1.msra.mxu0 0.0
        %1033 = vmatprep.subr.mxu0 0.0
        %1034 = vmatpush1.msra.mxu0 0.0
        %1035 = vmatprep.subr.mxu0 0.0
        %1036 = vmatpush1.msra.mxu0 0.0
        %1037 = vmatprep.subr.mxu0 0.0
        %1038 = vmatpush1.msra.mxu0 0.0
        %1039 = vmatprep.subr.mxu0 0.0
        %1040 = vmatpush1.msra.mxu0 0.0
        %1041 = vmatprep.subr.mxu0 0.0
        %1042 = vmatpush1.msra.mxu0 0.0
        %1043 = vmatprep.subr.mxu0 0.0
        %1044 = vmatpush1.msra.mxu0 0.0
        %1045 = vmatprep.subr.mxu0 0.0
        %1046 = vmatpush1.msra.mxu0 0.0
        %1047 = vmatprep.subr.mxu0 0.0
        %1048 = vmatpush1.msra.mxu0 0.0
        %1049 = vmatprep.subr.mxu0 0.0
        %1050 = vmatpush1.msra.mxu0 0.0
        %1051 = vmatprep.subr.mxu0 0.0
        %1052 = vmatpush1.msra.mxu0 0.0
        %1053 = vmatprep.subr.mxu0 0.0
        %1054 = vmatpush1.msra.mxu0 0.0
        %1055 = vmatprep.subr.mxu0 0.0
        %1056 = vmatpush1.msra.mxu0 0.0
        %1057 = vmatprep.subr.mxu0 0.0
        %1058 = vmatpush1.msra.mxu0 0.0
        %1059 = vmatprep.subr.mxu0 0.0
        %1060 = vmatpush1.msra.mxu0 0.0
        %1061 = vmatprep.subr.mxu0 0.0
        %1062 = vmatpush1.msra.mxu0 0.0
        %1063 = vmatprep.subr.mxu0 0.0
        %1064 = vmatpush1.msra.mxu0 0.0
        %1065 = vmatprep.subr.mxu0 0.0
        %1066 = vmatpush1.msra.mxu0 0.0
        %1067 = vmatprep.subr.mxu0 0.0
        %1068 = vmatpush1.msra.mxu0 0.0
        %1069 = vmatprep.subr.mxu0 0.0
        %1070 = vmatpush1.msra.mxu0 0.0
        %1071 = vmatprep.subr.mxu0 0.0
        %1072 = vmatpush1.msra.mxu0 0.0
        %1073 = vmatprep.subr.mxu0 0.0
        %1074 = vmatpush1.msra.mxu0 0.0
        %1075 = vmatprep.mubr.f32.mxu0 0.0
        %1076 = vmatmul.mubr.f32.gmra.mrb[0].mxu0 %v1009
        %v1077 = vpop.f32.mrb[0].mxu0
        %v1078 = vadd.f32 0.0, %v1077
        %v1079 = vpop.f32.mrb[0].mxu0
        %1080 = vdwg.mxu0
        %v1082 = vcombine.high %v1078, %v1078
        %v1084 = vunpack.c.l.s4 1966171168
        %v1085 = vunpack.c.0.s8 %v1084
        %v1086 = vlaneseq
        %v1087 = vshrl.u32 %v1086, 7
        %v1088 = vsub.s32 %v1085, %v1087
        %v1089 = vrot.slane %v1078, %v1088
        %v1091 = vunpack.c.l.s4 1966171168
        %v1092 = vunpack.c.0.s8 %v1091
        %v1093 = vlaneseq
        %v1094 = vshrl.u32 %v1093, 7
        %v1095 = vsub.s32 %v1092, %v1094
        %v1096 = vrot.slane %v1082, %v1095
        %v1097 = vcombine.high %v1089, %v1089
        %v1098 = vcombine.high %v1096, %v1096
        %v1100 = vunpack.c.l.s4 1966171168
        %v1101 = vunpack.c.0.s8 %v1100
        %v1102 = vlaneseq
        %v1103 = vshrl.u32 %v1102, 7
        %v1104 = vsub.s32 %v1101, %v1103
        %v1105 = vrot.slane %v1089, %v1104
        %v1107 = vunpack.c.l.s4 1966171168
        %v1108 = vunpack.c.0.s8 %v1107
        %v1109 = vlaneseq
        %v1110 = vshrl.u32 %v1109, 7
        %v1111 = vsub.s32 %v1108, %v1110
        %v1112 = vrot.slane %v1096, %v1111
        %v1114 = vunpack.c.l.s4 1966171168
        %v1115 = vunpack.c.0.s8 %v1114
        %v1116 = vlaneseq
        %v1117 = vshrl.u32 %v1116, 7
        %v1118 = vsub.s32 %v1115, %v1117
        %v1119 = vrot.slane %v1097, %v1118
        %v1121 = vunpack.c.l.s4 1966171168
        %v1122 = vunpack.c.0.s8 %v1121
        %v1123 = vlaneseq
        %v1124 = vshrl.u32 %v1123, 7
        %v1125 = vsub.s32 %v1122, %v1124
        %v1126 = vrot.slane %v1098, %v1125
        %v1127 = vcombine.high %v1105, %v1105
        %v1128 = vcombine.high %v1112, %v1112
        %v1129 = vcombine.high %v1119, %v1119
        %v1130 = vcombine.high %v1126, %v1126
        %1139 = vst.msk [vmem:[%s384 + $0x1] sm:$0x1] %vm788, %v1105
        %1140 = vst.msk [vmem:[%s384 + $0x5] sm:$0x1] %vm788, %v1119
        %1141 = vst.msk [vmem:[%s384 + $0x9] sm:$0x1] %vm788, %v1127
        %1142 = vst.msk [vmem:[%s384 + $0xd] sm:$0x1] %vm788, %v1129
        %1143 = vst.msk [vmem:[%s384 + $0x11] sm:$0x1] %vm788, %v1112
        %1144 = vst.msk [vmem:[%s384 + $0x15] sm:$0x1] %vm788, %v1126
        %1145 = vst.msk [vmem:[%s384 + $0x19] sm:$0x1] %vm788, %v1128
        %1146 = vst.msk [vmem:[%s384 + $0x1d] sm:$0x1] %vm788, %v1130
        %v1147 = vld [vmem:[%s413 + $0x2] sm:$0x1]
        %v1148 = vld [vmem:[%s413 + $0x6] sm:$0x1]
        %v1149 = vld [vmem:[%s413 + $0xa] sm:$0x1]
        %v1150 = vld [vmem:[%s413 + $0xe] sm:$0x1]
        %v1151 = vld [vmem:[%s413 + $0x12] sm:$0x1]
        %v1152 = vld [vmem:[%s413 + $0x16] sm:$0x1]
        %v1153 = vld [vmem:[%s413 + $0x1a] sm:$0x1]
        %v1154 = vld [vmem:[%s413 + $0x1e] sm:$0x1]
        %v1163 = vrot.slane %v1148, 7
        %v1164 = vsel %vm453, %v1163, %v1147
        %v1165 = vrot.slane %v1149, 6
        %v1166 = vsel %vm456, %v1165, %v1164
        %v1167 = vrot.slane %v1150, 5
        %v1168 = vsel %vm459, %v1167, %v1166
        %v1169 = vrot.slane %v1151, 4
        %v1170 = vsel %vm462, %v1169, %v1168
        %v1171 = vrot.slane %v1152, 3
        %v1172 = vsel %vm465, %v1171, %v1170
        %v1173 = vrot.slane %v1153, 2
        %v1174 = vsel %vm468, %v1173, %v1172
        %v1175 = vrot.slane %v1154, 1
        %v1176 = vsel %vm471, %v1175, %v1174
        %v1177 = vsel %vm473, %v1176, 0
        %1179 = vmatprep.subr.mxu0 0.0
        %1180 = vmatpush1.msra.mxu0 %v422
        %1181 = vmatprep.subr.mxu0 0.0
        %1182 = vmatpush1.msra.mxu0 %v423
        %1183 = vmatprep.subr.mxu0 0.0
        %1184 = vmatpush1.msra.mxu0 %v424
        %1185 = vmatprep.subr.mxu0 0.0
        %1186 = vmatpush1.msra.mxu0 %v425
        %1187 = vmatprep.subr.mxu0 0.0
        %1188 = vmatpush1.msra.mxu0 0.0
        %1189 = vmatprep.subr.mxu0 0.0
        %1190 = vmatpush1.msra.mxu0 0.0
        %1191 = vmatprep.subr.mxu0 0.0
        %1192 = vmatpush1.msra.mxu0 0.0
        %1193 = vmatprep.subr.mxu0 0.0
        %1194 = vmatpush1.msra.mxu0 0.0
        %1195 = vmatprep.subr.mxu0 0.0
        %1196 = vmatpush1.msra.mxu0 0.0
        %1197 = vmatprep.subr.mxu0 0.0
        %1198 = vmatpush1.msra.mxu0 0.0
        %1199 = vmatprep.subr.mxu0 0.0
        %1200 = vmatpush1.msra.mxu0 0.0
        %1201 = vmatprep.subr.mxu0 0.0
        %1202 = vmatpush1.msra.mxu0 0.0
        %1203 = vmatprep.subr.mxu0 0.0
        %1204 = vmatpush1.msra.mxu0 0.0
        %1205 = vmatprep.subr.mxu0 0.0
        %1206 = vmatpush1.msra.mxu0 0.0
        %1207 = vmatprep.subr.mxu0 0.0
        %1208 = vmatpush1.msra.mxu0 0.0
        %1209 = vmatprep.subr.mxu0 0.0
        %1210 = vmatpush1.msra.mxu0 0.0
        %1211 = vmatprep.subr.mxu0 0.0
        %1212 = vmatpush1.msra.mxu0 0.0
        %1213 = vmatprep.subr.mxu0 0.0
        %1214 = vmatpush1.msra.mxu0 0.0
        %1215 = vmatprep.subr.mxu0 0.0
        %1216 = vmatpush1.msra.mxu0 0.0
        %1217 = vmatprep.subr.mxu0 0.0
        %1218 = vmatpush1.msra.mxu0 0.0
        %1219 = vmatprep.subr.mxu0 0.0
        %1220 = vmatpush1.msra.mxu0 0.0
        %1221 = vmatprep.subr.mxu0 0.0
        %1222 = vmatpush1.msra.mxu0 0.0
        %1223 = vmatprep.subr.mxu0 0.0
        %1224 = vmatpush1.msra.mxu0 0.0
        %1225 = vmatprep.subr.mxu0 0.0
        %1226 = vmatpush1.msra.mxu0 0.0
        %1227 = vmatprep.subr.mxu0 0.0
        %1228 = vmatpush1.msra.mxu0 0.0
        %1229 = vmatprep.subr.mxu0 0.0
        %1230 = vmatpush1.msra.mxu0 0.0
        %1231 = vmatprep.subr.mxu0 0.0
        %1232 = vmatpush1.msra.mxu0 0.0
        %1233 = vmatprep.subr.mxu0 0.0
        %1234 = vmatpush1.msra.mxu0 0.0
        %1235 = vmatprep.subr.mxu0 0.0
        %1236 = vmatpush1.msra.mxu0 0.0
        %1237 = vmatprep.subr.mxu0 0.0
        %1238 = vmatpush1.msra.mxu0 0.0
        %1239 = vmatprep.subr.mxu0 0.0
        %1240 = vmatpush1.msra.mxu0 0.0
        %1241 = vmatprep.subr.mxu0 0.0
        %1242 = vmatpush1.msra.mxu0 0.0
        %1243 = vmatprep.mubr.f32.mxu0 0.0
        %1244 = vmatmul.mubr.f32.gmra.mrb[0].mxu0 %v1177
        %v1245 = vpop.f32.mrb[0].mxu0
        %v1246 = vadd.f32 0.0, %v1245
        %v1247 = vpop.f32.mrb[0].mxu0
        %1248 = vdwg.mxu0
        %v1249 = vsel %vm435, %v1246, -inf
        %v1250 = vsel %vm547, %v1249, -inf
        %1251 = vmax.xlane.f32.xlu0 %v1250
        %v1252 = vpop.xlane.xlu0 %1251
        %v1253 = vsub.f32 %v1249, %v1252
        %v1254 = vmul.f32 %v1253, 1.442695
        %v1255 = vpow.pop %v1254
        %v1256 = vsel %vm547, %v1255, 0.0
        %1257 = vadd.xlane.f32.xlu0 %v1256
        %v1258 = vpop.xlane.xlu0 %1257
        %v1259 = vrcp.pop %v1258
        %v1260 = vmul.f32 1.0, %v1259
        %v1261 = vmul.f32 %v1255, %v1260
        %v1263 = vcombine.high %v1261, %v1261
        %v1265 = vunpack.c.l.s4 1966171168
        %v1266 = vunpack.c.0.s8 %v1265
        %v1267 = vlaneseq
        %v1268 = vshrl.u32 %v1267, 7
        %v1269 = vsub.s32 %v1266, %v1268
        %v1270 = vrot.slane %v1261, %v1269
        %v1272 = vunpack.c.l.s4 1966171168
        %v1273 = vunpack.c.0.s8 %v1272
        %v1274 = vlaneseq
        %v1275 = vshrl.u32 %v1274, 7
        %v1276 = vsub.s32 %v1273, %v1275
        %v1277 = vrot.slane %v1263, %v1276
        %v1278 = vcombine.high %v1270, %v1270
        %v1279 = vcombine.high %v1277, %v1277
        %v1281 = vunpack.c.l.s4 1966171168
        %v1282 = vunpack.c.0.s8 %v1281
        %v1283 = vlaneseq
        %v1284 = vshrl.u32 %v1283, 7
        %v1285 = vsub.s32 %v1282, %v1284
        %v1286 = vrot.slane %v1270, %v1285
        %v1288 = vunpack.c.l.s4 1966171168
        %v1289 = vunpack.c.0.s8 %v1288
        %v1290 = vlaneseq
        %v1291 = vshrl.u32 %v1290, 7
        %v1292 = vsub.s32 %v1289, %v1291
        %v1293 = vrot.slane %v1277, %v1292
        %v1295 = vunpack.c.l.s4 1966171168
        %v1296 = vunpack.c.0.s8 %v1295
        %v1297 = vlaneseq
        %v1298 = vshrl.u32 %v1297, 7
        %v1299 = vsub.s32 %v1296, %v1298
        %v1300 = vrot.slane %v1278, %v1299
        %v1302 = vunpack.c.l.s4 1966171168
        %v1303 = vunpack.c.0.s8 %v1302
        %v1304 = vlaneseq
        %v1305 = vshrl.u32 %v1304, 7
        %v1306 = vsub.s32 %v1303, %v1305
        %v1307 = vrot.slane %v1279, %v1306
        %v1308 = vcombine.high %v1286, %v1286
        %v1309 = vcombine.high %v1293, %v1293
        %v1310 = vcombine.high %v1300, %v1300
        %v1311 = vcombine.high %v1307, %v1307
        %1320 = vst.msk [vmem:[%s391 + $0x2] sm:$0x1] %vm618, %v1286
        %1321 = vst.msk [vmem:[%s391 + $0x6] sm:$0x1] %vm618, %v1300
        %1322 = vst.msk [vmem:[%s391 + $0xa] sm:$0x1] %vm618, %v1308
        %1323 = vst.msk [vmem:[%s391 + $0xe] sm:$0x1] %vm618, %v1310
        %1324 = vst.msk [vmem:[%s391 + $0x12] sm:$0x1] %vm618, %v1293
        %1325 = vst.msk [vmem:[%s391 + $0x16] sm:$0x1] %vm618, %v1307
        %1326 = vst.msk [vmem:[%s391 + $0x1a] sm:$0x1] %vm618, %v1309
        %1327 = vst.msk [vmem:[%s391 + $0x1e] sm:$0x1] %vm618, %v1311
        %v1328 = vld [vmem:[%s331 + $0x2] sm:$0x1]
        %v1329 = vld [vmem:[%s331 + $0x6] sm:$0x1]
        %v1330 = vld [vmem:[%s331 + $0xa] sm:$0x1]
        %v1331 = vld [vmem:[%s331 + $0xe] sm:$0x1]
        %v1332 = vld [vmem:[%s331 + $0x12] sm:$0x1]
        %v1333 = vld [vmem:[%s331 + $0x16] sm:$0x1]
        %v1334 = vld [vmem:[%s331 + $0x1a] sm:$0x1]
        %v1335 = vld [vmem:[%s331 + $0x1e] sm:$0x1]
        %v1344 = vrot.slane %v1329, 7
        %v1345 = vsel %vm453, %v1344, %v1328
        %v1346 = vrot.slane %v1330, 6
        %v1347 = vsel %vm456, %v1346, %v1345
        %v1348 = vrot.slane %v1331, 5
        %v1349 = vsel %vm459, %v1348, %v1347
        %v1350 = vrot.slane %v1332, 4
        %v1351 = vsel %vm462, %v1350, %v1349
        %v1352 = vrot.slane %v1333, 3
        %v1353 = vsel %vm465, %v1352, %v1351
        %v1354 = vrot.slane %v1334, 2
        %v1355 = vsel %vm468, %v1354, %v1353
        %v1356 = vrot.slane %v1335, 1
        %v1357 = vsel %vm471, %v1356, %v1355
        %v1359 = vsel %vm547, %v1261, 0
        %1361 = vmatprep.subr.mxu0 0.0
        %1362 = vmatpush1.msra.mxu0 %v1357
        %1363 = vmatprep.subr.mxu0 0.0
        %1364 = vmatpush1.msra.mxu0 0.0
        %1365 = vmatprep.subr.mxu0 0.0
        %1366 = vmatpush1.msra.mxu0 0.0
        %1367 = vmatprep.subr.mxu0 0.0
        %1368 = vmatpush1.msra.mxu0 0.0
        %1369 = vmatprep.subr.mxu0 0.0
        %1370 = vmatpush1.msra.mxu0 0.0
        %1371 = vmatprep.subr.mxu0 0.0
        %1372 = vmatpush1.msra.mxu0 0.0
        %1373 = vmatprep.subr.mxu0 0.0
        %1374 = vmatpush1.msra.mxu0 0.0
        %1375 = vmatprep.subr.mxu0 0.0
        %1376 = vmatpush1.msra.mxu0 0.0
        %1377 = vmatprep.subr.mxu0 0.0
        %1378 = vmatpush1.msra.mxu0 0.0
        %1379 = vmatprep.subr.mxu0 0.0
        %1380 = vmatpush1.msra.mxu0 0.0
        %1381 = vmatprep.subr.mxu0 0.0
        %1382 = vmatpush1.msra.mxu0 0.0
        %1383 = vmatprep.subr.mxu0 0.0
        %1384 = vmatpush1.msra.mxu0 0.0
        %1385 = vmatprep.subr.mxu0 0.0
        %1386 = vmatpush1.msra.mxu0 0.0
        %1387 = vmatprep.subr.mxu0 0.0
        %1388 = vmatpush1.msra.mxu0 0.0
        %1389 = vmatprep.subr.mxu0 0.0
        %1390 = vmatpush1.msra.mxu0 0.0
        %1391 = vmatprep.subr.mxu0 0.0
        %1392 = vmatpush1.msra.mxu0 0.0
        %1393 = vmatprep.subr.mxu0 0.0
        %1394 = vmatpush1.msra.mxu0 0.0
        %1395 = vmatprep.subr.mxu0 0.0
        %1396 = vmatpush1.msra.mxu0 0.0
        %1397 = vmatprep.subr.mxu0 0.0
        %1398 = vmatpush1.msra.mxu0 0.0
        %1399 = vmatprep.subr.mxu0 0.0
        %1400 = vmatpush1.msra.mxu0 0.0
        %1401 = vmatprep.subr.mxu0 0.0
        %1402 = vmatpush1.msra.mxu0 0.0
        %1403 = vmatprep.subr.mxu0 0.0
        %1404 = vmatpush1.msra.mxu0 0.0
        %1405 = vmatprep.subr.mxu0 0.0
        %1406 = vmatpush1.msra.mxu0 0.0
        %1407 = vmatprep.subr.mxu0 0.0
        %1408 = vmatpush1.msra.mxu0 0.0
        %1409 = vmatprep.subr.mxu0 0.0
        %1410 = vmatpush1.msra.mxu0 0.0
        %1411 = vmatprep.subr.mxu0 0.0
        %1412 = vmatpush1.msra.mxu0 0.0
        %1413 = vmatprep.subr.mxu0 0.0
        %1414 = vmatpush1.msra.mxu0 0.0
        %1415 = vmatprep.subr.mxu0 0.0
        %1416 = vmatpush1.msra.mxu0 0.0
        %1417 = vmatprep.subr.mxu0 0.0
        %1418 = vmatpush1.msra.mxu0 0.0
        %1419 = vmatprep.subr.mxu0 0.0
        %1420 = vmatpush1.msra.mxu0 0.0
        %1421 = vmatprep.subr.mxu0 0.0
        %1422 = vmatpush1.msra.mxu0 0.0
        %1423 = vmatprep.subr.mxu0 0.0
        %1424 = vmatpush1.msra.mxu0 0.0
        %1425 = vmatprep.mubr.f32.mxu0 0.0
        %1426 = vmatmul.mubr.f32.gmra.mrb[0].mxu0 %v1359
        %v1427 = vpop.f32.mrb[0].mxu0
        %v1428 = vadd.f32 0.0, %v1427
        %v1429 = vpop.f32.mrb[0].mxu0
        %1430 = vdwg.mxu0
        %v1432 = vcombine.high %v1428, %v1428
        %v1434 = vunpack.c.l.s4 1966171168
        %v1435 = vunpack.c.0.s8 %v1434
        %v1436 = vlaneseq
        %v1437 = vshrl.u32 %v1436, 7
        %v1438 = vsub.s32 %v1435, %v1437
        %v1439 = vrot.slane %v1428, %v1438
        %v1441 = vunpack.c.l.s4 1966171168
        %v1442 = vunpack.c.0.s8 %v1441
        %v1443 = vlaneseq
        %v1444 = vshrl.u32 %v1443, 7
        %v1445 = vsub.s32 %v1442, %v1444
        %v1446 = vrot.slane %v1432, %v1445
        %v1447 = vcombine.high %v1439, %v1439
        %v1448 = vcombine.high %v1446, %v1446
        %v1450 = vunpack.c.l.s4 1966171168
        %v1451 = vunpack.c.0.s8 %v1450
        %v1452 = vlaneseq
        %v1453 = vshrl.u32 %v1452, 7
        %v1454 = vsub.s32 %v1451, %v1453
        %v1455 = vrot.slane %v1439, %v1454
        %v1457 = vunpack.c.l.s4 1966171168
        %v1458 = vunpack.c.0.s8 %v1457
        %v1459 = vlaneseq
        %v1460 = vshrl.u32 %v1459, 7
        %v1461 = vsub.s32 %v1458, %v1460
        %v1462 = vrot.slane %v1446, %v1461
        %v1464 = vunpack.c.l.s4 1966171168
        %v1465 = vunpack.c.0.s8 %v1464
        %v1466 = vlaneseq
        %v1467 = vshrl.u32 %v1466, 7
        %v1468 = vsub.s32 %v1465, %v1467
        %v1469 = vrot.slane %v1447, %v1468
        %v1471 = vunpack.c.l.s4 1966171168
        %v1472 = vunpack.c.0.s8 %v1471
        %v1473 = vlaneseq
        %v1474 = vshrl.u32 %v1473, 7
        %v1475 = vsub.s32 %v1472, %v1474
        %v1476 = vrot.slane %v1448, %v1475
        %v1477 = vcombine.high %v1455, %v1455
        %v1478 = vcombine.high %v1462, %v1462
        %v1479 = vcombine.high %v1469, %v1469
        %v1480 = vcombine.high %v1476, %v1476
        %1489 = vst.msk [vmem:[%s384 + $0x2] sm:$0x1] %vm788, %v1455
        %1490 = vst.msk [vmem:[%s384 + $0x6] sm:$0x1] %vm788, %v1469
        %1491 = vst.msk [vmem:[%s384 + $0xa] sm:$0x1] %vm788, %v1477
        %1492 = vst.msk [vmem:[%s384 + $0xe] sm:$0x1] %vm788, %v1479
        %1493 = vst.msk [vmem:[%s384 + $0x12] sm:$0x1] %vm788, %v1462
        %1494 = vst.msk [vmem:[%s384 + $0x16] sm:$0x1] %vm788, %v1476
        %1495 = vst.msk [vmem:[%s384 + $0x1a] sm:$0x1] %vm788, %v1478
        %1496 = vst.msk [vmem:[%s384 + $0x1e] sm:$0x1] %vm788, %v1480
        %v1497 = vld [vmem:[%s413 + $0x3] sm:$0x1]
        %v1498 = vld [vmem:[%s413 + $0x7] sm:$0x1]
        %v1499 = vld [vmem:[%s413 + $0xb] sm:$0x1]
        %v1500 = vld [vmem:[%s413 + $0xf] sm:$0x1]
        %v1501 = vld [vmem:[%s413 + $0x13] sm:$0x1]
        %v1502 = vld [vmem:[%s413 + $0x17] sm:$0x1]
        %v1503 = vld [vmem:[%s413 + $0x1b] sm:$0x1]
        %v1504 = vld [vmem:[%s413 + $0x1f] sm:$0x1]
        %v1513 = vrot.slane %v1498, 7
        %v1514 = vsel %vm453, %v1513, %v1497
        %v1515 = vrot.slane %v1499, 6
        %v1516 = vsel %vm456, %v1515, %v1514
        %v1517 = vrot.slane %v1500, 5
        %v1518 = vsel %vm459, %v1517, %v1516
        %v1519 = vrot.slane %v1501, 4
        %v1520 = vsel %vm462, %v1519, %v1518
        %v1521 = vrot.slane %v1502, 3
        %v1522 = vsel %vm465, %v1521, %v1520
        %v1523 = vrot.slane %v1503, 2
        %v1524 = vsel %vm468, %v1523, %v1522
        %v1525 = vrot.slane %v1504, 1
        %v1526 = vsel %vm471, %v1525, %v1524
        %v1527 = vsel %vm473, %v1526, 0
        %1529 = vmatprep.subr.mxu0 0.0
        %1530 = vmatpush1.msra.mxu0 %v422
        %1531 = vmatprep.subr.mxu0 0.0
        %1532 = vmatpush1.msra.mxu0 %v423
        %1533 = vmatprep.subr.mxu0 0.0
        %1534 = vmatpush1.msra.mxu0 %v424
        %1535 = vmatprep.subr.mxu0 0.0
        %1536 = vmatpush1.msra.mxu0 %v425
        %1537 = vmatprep.subr.mxu0 0.0
        %1538 = vmatpush1.msra.mxu0 0.0
        %1539 = vmatprep.subr.mxu0 0.0
        %1540 = vmatpush1.msra.mxu0 0.0
        %1541 = vmatprep.subr.mxu0 0.0
        %1542 = vmatpush1.msra.mxu0 0.0
        %1543 = vmatprep.subr.mxu0 0.0
        %1544 = vmatpush1.msra.mxu0 0.0
        %1545 = vmatprep.subr.mxu0 0.0
        %1546 = vmatpush1.msra.mxu0 0.0
        %1547 = vmatprep.subr.mxu0 0.0
        %1548 = vmatpush1.msra.mxu0 0.0
        %1549 = vmatprep.subr.mxu0 0.0
        %1550 = vmatpush1.msra.mxu0 0.0
        %1551 = vmatprep.subr.mxu0 0.0
        %1552 = vmatpush1.msra.mxu0 0.0
        %1553 = vmatprep.subr.mxu0 0.0
        %1554 = vmatpush1.msra.mxu0 0.0
        %1555 = vmatprep.subr.mxu0 0.0
        %1556 = vmatpush1.msra.mxu0 0.0
        %1557 = vmatprep.subr.mxu0 0.0
        %1558 = vmatpush1.msra.mxu0 0.0
        %1559 = vmatprep.subr.mxu0 0.0
        %1560 = vmatpush1.msra.mxu0 0.0
        %1561 = vmatprep.subr.mxu0 0.0
        %1562 = vmatpush1.msra.mxu0 0.0
        %1563 = vmatprep.subr.mxu0 0.0
        %1564 = vmatpush1.msra.mxu0 0.0
        %1565 = vmatprep.subr.mxu0 0.0
        %1566 = vmatpush1.msra.mxu0 0.0
        %1567 = vmatprep.subr.mxu0 0.0
        %1568 = vmatpush1.msra.mxu0 0.0
        %1569 = vmatprep.subr.mxu0 0.0
        %1570 = vmatpush1.msra.mxu0 0.0
        %1571 = vmatprep.subr.mxu0 0.0
        %1572 = vmatpush1.msra.mxu0 0.0
        %1573 = vmatprep.subr.mxu0 0.0
        %1574 = vmatpush1.msra.mxu0 0.0
        %1575 = vmatprep.subr.mxu0 0.0
        %1576 = vmatpush1.msra.mxu0 0.0
        %1577 = vmatprep.subr.mxu0 0.0
        %1578 = vmatpush1.msra.mxu0 0.0
        %1579 = vmatprep.subr.mxu0 0.0
        %1580 = vmatpush1.msra.mxu0 0.0
        %1581 = vmatprep.subr.mxu0 0.0
        %1582 = vmatpush1.msra.mxu0 0.0
        %1583 = vmatprep.subr.mxu0 0.0
        %1584 = vmatpush1.msra.mxu0 0.0
        %1585 = vmatprep.subr.mxu0 0.0
        %1586 = vmatpush1.msra.mxu0 0.0
        %1587 = vmatprep.subr.mxu0 0.0
        %1588 = vmatpush1.msra.mxu0 0.0
        %1589 = vmatprep.subr.mxu0 0.0
        %1590 = vmatpush1.msra.mxu0 0.0
        %1591 = vmatprep.subr.mxu0 0.0
        %1592 = vmatpush1.msra.mxu0 0.0
        %1593 = vmatprep.mubr.f32.mxu0 0.0
        %1594 = vmatmul.mubr.f32.gmra.mrb[0].mxu0 %v1527
        %v1595 = vpop.f32.mrb[0].mxu0
        %v1596 = vadd.f32 0.0, %v1595
        %v1597 = vpop.f32.mrb[0].mxu0
        %1598 = vdwg.mxu0
        %v1599 = vsel %vm435, %v1596, -inf
        %v1600 = vsel %vm547, %v1599, -inf
        %1601 = vmax.xlane.f32.xlu0 %v1600
        %v1602 = vpop.xlane.xlu0 %1601
        %v1603 = vsub.f32 %v1599, %v1602
        %v1604 = vmul.f32 %v1603, 1.442695
        %v1605 = vpow.pop %v1604
        %v1606 = vsel %vm547, %v1605, 0.0
        %1607 = vadd.xlane.f32.xlu0 %v1606
        %v1608 = vpop.xlane.xlu0 %1607
        %v1609 = vrcp.pop %v1608
        %v1610 = vmul.f32 1.0, %v1609
        %v1611 = vmul.f32 %v1605, %v1610
        %v1613 = vcombine.high %v1611, %v1611
        %v1615 = vunpack.c.l.s4 1966171168
        %v1616 = vunpack.c.0.s8 %v1615
        %v1617 = vlaneseq
        %v1618 = vshrl.u32 %v1617, 7
        %v1619 = vsub.s32 %v1616, %v1618
        %v1620 = vrot.slane %v1611, %v1619
        %v1622 = vunpack.c.l.s4 1966171168
        %v1623 = vunpack.c.0.s8 %v1622
        %v1624 = vlaneseq
        %v1625 = vshrl.u32 %v1624, 7
        %v1626 = vsub.s32 %v1623, %v1625
        %v1627 = vrot.slane %v1613, %v1626
        %v1628 = vcombine.high %v1620, %v1620
        %v1629 = vcombine.high %v1627, %v1627
        %v1631 = vunpack.c.l.s4 1966171168
        %v1632 = vunpack.c.0.s8 %v1631
        %v1633 = vlaneseq
        %v1634 = vshrl.u32 %v1633, 7
        %v1635 = vsub.s32 %v1632, %v1634
        %v1636 = vrot.slane %v1620, %v1635
        %v1638 = vunpack.c.l.s4 1966171168
        %v1639 = vunpack.c.0.s8 %v1638
        %v1640 = vlaneseq
        %v1641 = vshrl.u32 %v1640, 7
        %v1642 = vsub.s32 %v1639, %v1641
        %v1643 = vrot.slane %v1627, %v1642
        %v1645 = vunpack.c.l.s4 1966171168
        %v1646 = vunpack.c.0.s8 %v1645
        %v1647 = vlaneseq
        %v1648 = vshrl.u32 %v1647, 7
        %v1649 = vsub.s32 %v1646, %v1648
        %v1650 = vrot.slane %v1628, %v1649
        %v1652 = vunpack.c.l.s4 1966171168
        %v1653 = vunpack.c.0.s8 %v1652
        %v1654 = vlaneseq
        %v1655 = vshrl.u32 %v1654, 7
        %v1656 = vsub.s32 %v1653, %v1655
        %v1657 = vrot.slane %v1629, %v1656
        %v1658 = vcombine.high %v1636, %v1636
        %v1659 = vcombine.high %v1643, %v1643
        %v1660 = vcombine.high %v1650, %v1650
        %v1661 = vcombine.high %v1657, %v1657
        %1670 = vst.msk [vmem:[%s391 + $0x3] sm:$0x1] %vm618, %v1636
        %1671 = vst.msk [vmem:[%s391 + $0x7] sm:$0x1] %vm618, %v1650
        %1672 = vst.msk [vmem:[%s391 + $0xb] sm:$0x1] %vm618, %v1658
        %1673 = vst.msk [vmem:[%s391 + $0xf] sm:$0x1] %vm618, %v1660
        %1674 = vst.msk [vmem:[%s391 + $0x13] sm:$0x1] %vm618, %v1643
        %1675 = vst.msk [vmem:[%s391 + $0x17] sm:$0x1] %vm618, %v1657
        %1676 = vst.msk [vmem:[%s391 + $0x1b] sm:$0x1] %vm618, %v1659
        %1677 = vst.msk [vmem:[%s391 + $0x1f] sm:$0x1] %vm618, %v1661
        %v1678 = vld [vmem:[%s331 + $0x3] sm:$0x1]
        %v1679 = vld [vmem:[%s331 + $0x7] sm:$0x1]
        %v1680 = vld [vmem:[%s331 + $0xb] sm:$0x1]
        %v1681 = vld [vmem:[%s331 + $0xf] sm:$0x1]
        %v1682 = vld [vmem:[%s331 + $0x13] sm:$0x1]
        %v1683 = vld [vmem:[%s331 + $0x17] sm:$0x1]
        %v1684 = vld [vmem:[%s331 + $0x1b] sm:$0x1]
        %v1685 = vld [vmem:[%s331 + $0x1f] sm:$0x1]
        %v1694 = vrot.slane %v1679, 7
        %v1695 = vsel %vm453, %v1694, %v1678
        %v1696 = vrot.slane %v1680, 6
        %v1697 = vsel %vm456, %v1696, %v1695
        %v1698 = vrot.slane %v1681, 5
        %v1699 = vsel %vm459, %v1698, %v1697
        %v1700 = vrot.slane %v1682, 4
        %v1701 = vsel %vm462, %v1700, %v1699
        %v1702 = vrot.slane %v1683, 3
        %v1703 = vsel %vm465, %v1702, %v1701
        %v1704 = vrot.slane %v1684, 2
        %v1705 = vsel %vm468, %v1704, %v1703
        %v1706 = vrot.slane %v1685, 1
        %v1707 = vsel %vm471, %v1706, %v1705
        %v1709 = vsel %vm547, %v1611, 0
        %1711 = vmatprep.subr.mxu0 0.0
        %1712 = vmatpush1.msra.mxu0 %v1707
        %1713 = vmatprep.subr.mxu0 0.0
        %1714 = vmatpush1.msra.mxu0 0.0
        %1715 = vmatprep.subr.mxu0 0.0
        %1716 = vmatpush1.msra.mxu0 0.0
        %1717 = vmatprep.subr.mxu0 0.0
        %1718 = vmatpush1.msra.mxu0 0.0
        %1719 = vmatprep.subr.mxu0 0.0
        %1720 = vmatpush1.msra.mxu0 0.0
        %1721 = vmatprep.subr.mxu0 0.0
        %1722 = vmatpush1.msra.mxu0 0.0
        %1723 = vmatprep.subr.mxu0 0.0
        %1724 = vmatpush1.msra.mxu0 0.0
        %1725 = vmatprep.subr.mxu0 0.0
        %1726 = vmatpush1.msra.mxu0 0.0
        %1727 = vmatprep.subr.mxu0 0.0
        %1728 = vmatpush1.msra.mxu0 0.0
        %1729 = vmatprep.subr.mxu0 0.0
        %1730 = vmatpush1.msra.mxu0 0.0
        %1731 = vmatprep.subr.mxu0 0.0
        %1732 = vmatpush1.msra.mxu0 0.0
        %1733 = vmatprep.subr.mxu0 0.0
        %1734 = vmatpush1.msra.mxu0 0.0
        %1735 = vmatprep.subr.mxu0 0.0
        %1736 = vmatpush1.msra.mxu0 0.0
        %1737 = vmatprep.subr.mxu0 0.0
        %1738 = vmatpush1.msra.mxu0 0.0
        %1739 = vmatprep.subr.mxu0 0.0
        %1740 = vmatpush1.msra.mxu0 0.0
        %1741 = vmatprep.subr.mxu0 0.0
        %1742 = vmatpush1.msra.mxu0 0.0
        %1743 = vmatprep.subr.mxu0 0.0
        %1744 = vmatpush1.msra.mxu0 0.0
        %1745 = vmatprep.subr.mxu0 0.0
        %1746 = vmatpush1.msra.mxu0 0.0
        %1747 = vmatprep.subr.mxu0 0.0
        %1748 = vmatpush1.msra.mxu0 0.0
        %1749 = vmatprep.subr.mxu0 0.0
        %1750 = vmatpush1.msra.mxu0 0.0
        %1751 = vmatprep.subr.mxu0 0.0
        %1752 = vmatpush1.msra.mxu0 0.0
        %1753 = vmatprep.subr.mxu0 0.0
        %1754 = vmatpush1.msra.mxu0 0.0
        %1755 = vmatprep.subr.mxu0 0.0
        %1756 = vmatpush1.msra.mxu0 0.0
        %1757 = vmatprep.subr.mxu0 0.0
        %1758 = vmatpush1.msra.mxu0 0.0
        %1759 = vmatprep.subr.mxu0 0.0
        %1760 = vmatpush1.msra.mxu0 0.0
        %1761 = vmatprep.subr.mxu0 0.0
        %1762 = vmatpush1.msra.mxu0 0.0
        %1763 = vmatprep.subr.mxu0 0.0
        %1764 = vmatpush1.msra.mxu0 0.0
        %1765 = vmatprep.subr.mxu0 0.0
        %1766 = vmatpush1.msra.mxu0 0.0
        %1767 = vmatprep.subr.mxu0 0.0
        %1768 = vmatpush1.msra.mxu0 0.0
        %1769 = vmatprep.subr.mxu0 0.0
        %1770 = vmatpush1.msra.mxu0 0.0
        %1771 = vmatprep.subr.mxu0 0.0
        %1772 = vmatpush1.msra.mxu0 0.0
        %1773 = vmatprep.subr.mxu0 0.0
        %1774 = vmatpush1.msra.mxu0 0.0
        %1775 = vmatprep.mubr.f32.mxu0 0.0
        %1776 = vmatmul.mubr.f32.gmra.mrb[0].mxu0 %v1709
        %v1777 = vpop.f32.mrb[0].mxu0
        %v1778 = vadd.f32 0.0, %v1777
        %v1779 = vpop.f32.mrb[0].mxu0
        %1780 = vdwg.mxu0
        %v1782 = vcombine.high %v1778, %v1778
        %v1784 = vunpack.c.l.s4 1966171168
        %v1785 = vunpack.c.0.s8 %v1784
        %v1786 = vlaneseq
        %v1787 = vshrl.u32 %v1786, 7
        %v1788 = vsub.s32 %v1785, %v1787
        %v1789 = vrot.slane %v1778, %v1788
        %v1791 = vunpack.c.l.s4 1966171168
        %v1792 = vunpack.c.0.s8 %v1791
        %v1793 = vlaneseq
        %v1794 = vshrl.u32 %v1793, 7
        %v1795 = vsub.s32 %v1792, %v1794
        %v1796 = vrot.slane %v1782, %v1795
        %v1797 = vcombine.high %v1789, %v1789
        %v1798 = vcombine.high %v1796, %v1796
        %v1800 = vunpack.c.l.s4 1966171168
        %v1801 = vunpack.c.0.s8 %v1800
        %v1802 = vlaneseq
        %v1803 = vshrl.u32 %v1802, 7
        %v1804 = vsub.s32 %v1801, %v1803
        %v1805 = vrot.slane %v1789, %v1804
        %v1807 = vunpack.c.l.s4 1966171168
        %v1808 = vunpack.c.0.s8 %v1807
        %v1809 = vlaneseq
        %v1810 = vshrl.u32 %v1809, 7
        %v1811 = vsub.s32 %v1808, %v1810
        %v1812 = vrot.slane %v1796, %v1811
        %v1814 = vunpack.c.l.s4 1966171168
        %v1815 = vunpack.c.0.s8 %v1814
        %v1816 = vlaneseq
        %v1817 = vshrl.u32 %v1816, 7
        %v1818 = vsub.s32 %v1815, %v1817
        %v1819 = vrot.slane %v1797, %v1818
        %v1821 = vunpack.c.l.s4 1966171168
        %v1822 = vunpack.c.0.s8 %v1821
        %v1823 = vlaneseq
        %v1824 = vshrl.u32 %v1823, 7
        %v1825 = vsub.s32 %v1822, %v1824
        %v1826 = vrot.slane %v1798, %v1825
        %v1827 = vcombine.high %v1805, %v1805
        %v1828 = vcombine.high %v1812, %v1812
        %v1829 = vcombine.high %v1819, %v1819
        %v1830 = vcombine.high %v1826, %v1826
        %1839 = vst.msk [vmem:[%s384 + $0x3] sm:$0x1] %vm788, %v1805
        %1840 = vst.msk [vmem:[%s384 + $0x7] sm:$0x1] %vm788, %v1819
        %1841 = vst.msk [vmem:[%s384 + $0xb] sm:$0x1] %vm788, %v1827
        %1842 = vst.msk [vmem:[%s384 + $0xf] sm:$0x1] %vm788, %v1829
        %1843 = vst.msk [vmem:[%s384 + $0x13] sm:$0x1] %vm788, %v1812
        %1844 = vst.msk [vmem:[%s384 + $0x17] sm:$0x1] %vm788, %v1826
        %1845 = vst.msk [vmem:[%s384 + $0x1b] sm:$0x1] %vm788, %v1828
        %1846 = vst.msk [vmem:[%s384 + $0x1f] sm:$0x1] %vm788, %v1830
        %s1847 = sand.u32 %s196, 1
        %s1848 = scalar_lea.sflag [#allocation4], %s1847
        %s1849 = sand.u32 %s196, 1
        %s1850 = smul.addr %s1849, 32
        %s1851 = scalar_lea.vmem [#allocation5], %s1850
        %s1852 = sand.u32 %s226, 1
        %s1853 = scalar_lea.sflag [#allocation7], %s1852
        %s1854 = sand.u32 %s226, 1
        %s1855 = smul.addr %s1854, 32
        %s1856 = scalar_lea.vmem [#allocation6], %s1855
        // Predicated region
        $region45: #{tpu_custom_call.1} parent=39 // pred_check
          %p1857 = pneg %p206
        $region46: #{tpu_custom_call.1} parent=39 // pred_check_branch
          %1859 = sbr.rel (%p1857) target = $region48
        $region47: #{tpu_custom_call.1} parent=39 // pred_region
          %s1860 = smul.u32 8, %s34
          %s1862 = ssub.s32 512, 512
          %1863 = vsyncadd %s1848, %s1862
          %s1864 = sadd.s32 %s33, %s1860
          %s1865 = smul.addr %s32, 8
          %s1866 = sadd.s32 %s1864, %s1865
          %s1867 = smul.addr %s1866, 64
          %s1868 = scalar_lea.hbm %s5, %s1867
          %s1869 = sshll.u32 %s1851, 4
          %s1870 = int_to_ptr.vmem [resolvable:$true] %s1869
          %1875 = dma.vmem_to_hbm [thread:$0]  %s1870, 512, %s1868, %s1848, 64, 64, 4
        $region48: #{tpu_custom_call.1} parent=39 // pred_fallthru
          _
        // Predicated region
        $region49: #{tpu_custom_call.1} parent=39 // pred_check
          %p1876 = pneg %p236
        $region50: #{tpu_custom_call.1} parent=39 // pred_check_branch
          %1878 = sbr.rel (%p1876) target = $region52
        $region51: #{tpu_custom_call.1} parent=39 // pred_region
          %s1879 = smul.u32 8, %s34
          %s1881 = ssub.s32 512, 512
          %1882 = vsyncadd %s1853, %s1881
          %s1883 = sadd.s32 %s33, %s1879
          %s1884 = smul.addr %s32, 8
          %s1885 = sadd.s32 %s1883, %s1884
          %s1886 = smul.addr %s1885, 64
          %s1887 = scalar_lea.hbm %s6, %s1886
          %s1888 = sshll.u32 %s1856, 4
          %s1889 = int_to_ptr.vmem [resolvable:$true] %s1888
          %1894 = dma.vmem_to_hbm [thread:$0]  %s1889, 512, %s1887, %s1853, 64, 64, 4
        $region52: #{tpu_custom_call.1} parent=39 // pred_fallthru
          _
      $region40: #{tpu_custom_call.1} parent=5 // pred_fallthru
        _
      %p1895 = scmp.le.s32.totalorder 2, %s22
      // Predicated region
      $region53: #{tpu_custom_call.1} parent=5 // pred_check
        %p1896 = pneg %p1895
      $region54: #{tpu_custom_call.1} parent=5 // pred_check_branch
        %1898 = sbr.rel (%p1896) target = $region56
      $region55: #{tpu_custom_call.1} parent=5 // pred_region
        %s1899 = ssub.s32 %s22, 2
        // Predicated region
        $region57: #{tpu_custom_call.1} parent=55 // pred_check
          %p1900 = pneg %p212
        $region58: #{tpu_custom_call.1} parent=55 // pred_check_branch
          %1902 = sbr.rel (%p1900) target = $region60
        $region59: #{tpu_custom_call.1} parent=55 // pred_region
          %s1903 = sand.u32 %s197, 1
          %s1904 = scalar_lea.sflag [#allocation4], %s1903
          %s1905 = sand.u32 %s197, 1
          %s1906 = smul.addr %s1905, 32
          %s1907 = scalar_lea.vmem [#allocation5], %s1906
          %1908 = dma.done %s1904, 512
        $region60: #{tpu_custom_call.1} parent=55 // pred_fallthru
          _
        // Predicated region
        $region61: #{tpu_custom_call.1} parent=55 // pred_check
          %p1909 = pneg %p242
        $region62: #{tpu_custom_call.1} parent=55 // pred_check_branch
          %1911 = sbr.rel (%p1909) target = $region64
        $region63: #{tpu_custom_call.1} parent=55 // pred_region
          %s1912 = sand.u32 %s227, 1
          %s1913 = scalar_lea.sflag [#allocation7], %s1912
          %s1914 = sand.u32 %s227, 1
          %s1915 = smul.addr %s1914, 32
          %s1916 = scalar_lea.vmem [#allocation6], %s1915
          %1917 = dma.done %s1913, 512
        $region64: #{tpu_custom_call.1} parent=55 // pred_fallthru
          _
      $region56: #{tpu_custom_call.1} parent=5 // pred_fallthru
        _
    $region6: #{tpu_custom_call.1} parent=1 // loop_footer
      %s26 = sadd.s32 1, %s22
    $region7: #{tpu_custom_call.1} parent=1 // loop_footer_branch
      %21 = sbr.rel target = $region3
    $region8: #{tpu_custom_call.1} parent=1 // loop_exit
      _
    %1918 = vsyncpa [#allocation3], 1
    %s1919 = scalar_lea.sflag [#allocation3], 1
    %1920 = vsyncpa %s1919, 1
    %1921 = vsyncpa [#allocation4], 1
    %s1922 = scalar_lea.sflag [#allocation4], 1
    %1923 = vsyncpa %s1922, 1
    %1924 = vsyncpa [#allocation7], 1
    %s1925 = scalar_lea.sflag [#allocation7], 1
    %1926 = vsyncpa %s1925, 1

</llo_original>
